<compile_context>
chip_gen: v6e
topology: v6e:2x2x1
jax: 0.10.0
libtpu: 0.0.40
codegen_flags: <defaults>
</compile_context>

<pallas_src>
import jax
import jax.numpy as jnp
from jax.experimental import pallas as pl
from jax.experimental.pallas import tpu as pltpu

# ----- small synthetic CLIP-text config ---------------------------------------
B = 2          # batch
S = 8          # context length (n_ctx)
D = 32         # transformer width
H = 4          # attention heads
DH = D // H    # head dim
VOCAB = 64     # vocab size
LAYERS = 2     # transformer layers
EMBED = 16     # output embed dim (text_projection: D -> EMBED)
EPS = 1e-5


def _layer_norm(v, w, b):
    # v: (rows, D); w, b: (1, D)
    mu = jnp.mean(v, axis=-1, keepdims=True)
    var = jnp.mean((v - mu) ** 2, axis=-1, keepdims=True)
    return (v - mu) * jax.lax.rsqrt(var + EPS) * w + b


# ----- fused Pallas kernel: whole text transformer for one batch element -------
def text_encoder_kernel(eot_ref,                          # scalar prefetch: (B,) int32 SMEM
                        x_ref,                            # (1, S, D) activations
                        ln1w, ln1b, wqkv, bqkv, wout, bout,
                        ln2w, ln2b, wfc, bfc, wproj, bproj,
                        lnfw, lnfb, tproj,
                        o_ref):                           # (1, 1, EMBED)
    x = x_ref[0]                                          # (S, D) f32 residual stream

    # Causal additive mask: built ONCE per kernel invocation, reused by all layers.
    row = jax.lax.broadcasted_iota(jnp.int32, (S, S), 0)
    col = jax.lax.broadcasted_iota(jnp.int32, (S, S), 1)
    mask = jnp.where(col <= row, 0.0, -jnp.inf).astype(jnp.float32)

    scale = 1.0 / (DH ** 0.5)

    for li in range(LAYERS):                              # static unroll: all layers fused
        # ---- attention branch (pre-LN) ----
        h = _layer_norm(x, ln1w[li], ln1b[li])
        qkv = jnp.dot(h.astype(jnp.bfloat16), wqkv[li],
                      preferred_element_type=jnp.float32) + bqkv[li]        # (S, 3D)
        q = qkv[:, 0 * D:1 * D] * scale                   # fold 1/sqrt(DH) into q once
        k = qkv[:, 1 * D:2 * D]
        v = qkv[:, 2 * D:3 * D]

        # Per-head attention; each head's (p @ v) is folded directly into the output
        # projection (wout pre-split per head on the host) and accumulated -> no
        # head concat / relayout, out-proj epilogue disappears into the head loop.
        attn = jnp.zeros((S, D), jnp.float32)
        for hh in range(H):
            sl = slice(hh * DH, (hh + 1) * DH)
            s = jnp.dot(q[:, sl], k[:, sl].T,
                        preferred_element_type=jnp.float32) + mask           # (S, S)
            s = s - jnp.max(s, axis=-1, keepdims=True)
            p = jnp.exp(s)
            p = p * pl.reciprocal(jnp.sum(p, axis=-1, keepdims=True), approx=True)
            hv = jnp.dot(p, v[:, sl], preferred_element_type=jnp.float32)    # (S, DH)
            attn = attn + jnp.dot(hv.astype(jnp.bfloat16), wout[li, hh],
                                  preferred_element_type=jnp.float32)        # (S, D)
        x = x + attn + bout[li]

        # ---- MLP branch (pre-LN, QuickGELU) ----
        h2 = _layer_norm(x, ln2w[li], ln2b[li])
        f = jnp.dot(h2.astype(jnp.bfloat16), wfc[li],
                    preferred_element_type=jnp.float32) + bfc[li]            # (S, 4D)
        g = f * jax.nn.sigmoid(1.702 * f)                 # QuickGELU (f32 on VPU/EUP)
        x = x + jnp.dot(g.astype(jnp.bfloat16), wproj[li],
                        preferred_element_type=jnp.float32) + bproj[li]

    # ---- EOT gather (one-hot matmul, no dynamic sublane slice) + ln_final + proj ----
    eot = eot_ref[pl.program_id(0)]
    onehot = (jax.lax.broadcasted_iota(jnp.int32, (1, S), 1) == eot).astype(jnp.float32)
    x_eot = jnp.dot(onehot, x, preferred_element_type=jnp.float32)           # (1, D)
    hf = _layer_norm(x_eot, lnfw[...], lnfb[...])
    o_ref[0] = jnp.dot(hf.astype(jnp.bfloat16), tproj[...],
                       preferred_element_type=jnp.float32)                   # (1, EMBED)


def clip_encode_text_pallas(eot, x, p):
    weights = [p["ln1w"], p["ln1b"], p["wqkv"], p["bqkv"], p["wout"], p["bout"],
               p["ln2w"], p["ln2b"], p["wfc"], p["bfc"], p["wproj"], p["bproj"],
               p["ln_final_w"], p["ln_final_b"], p["text_projection"]]
    # Activations: one batch element per grid step.  Weights: full arrays, constant
    # block index so they are DMA'd once and stay VMEM-resident across grid steps.
    in_specs = [pl.BlockSpec((1, S, D), lambda b, eot_ref: (b, 0, 0))]
    for w in weights:
        in_specs.append(pl.BlockSpec(w.shape, lambda b, eot_ref, _n=w.ndim: (0,) * _n))
    out = pl.pallas_call(
        text_encoder_kernel,
        out_shape=jax.ShapeDtypeStruct((B, 1, EMBED), jnp.float32),
        grid_spec=pltpu.PrefetchScalarGridSpec(
            num_scalar_prefetch=1,                        # EOT indices -> SMEM
            grid=(B,),
            in_specs=in_specs,
            out_specs=pl.BlockSpec((1, 1, EMBED), lambda b, eot_ref: (b, 0, 0)),
        ),
        compiler_params=pltpu.CompilerParams(
            dimension_semantics=("parallel",)),           # batch stays parallel (v7x 2 TCs)
    )(eot, x, *weights)
    return out[:, 0, :]                                   # (B, EMBED)


# ----- parameter init (deterministic, synthetic) --------------------------------
def make_params(key):
    def nrm(k, shape, std=0.02):
        return jax.random.normal(k, shape, dtype=jnp.float32) * std

    keys = jax.random.split(key, 3 + LAYERS)
    wqkv, wout, wfc, wproj = [], [], [], []
    for li in range(LAYERS):
        lk = jax.random.split(keys[3 + li], 4)
        wqkv.append(nrm(lk[0], (D, 3 * D)))
        wout.append(nrm(lk[1], (D, D)))
        wfc.append(nrm(lk[2], (D, 4 * D)))
        wproj.append(nrm(lk[3], (4 * D, D)))

    bf16 = jnp.bfloat16
    params = {
        "token_embedding": nrm(keys[0], (VOCAB, D)),
        "pos_embedding": nrm(keys[1], (S, D), std=0.01),
        # per-layer weights stacked on a leading LAYERS axis; matmul weights in bf16
        "ln1w": jnp.ones((LAYERS, 1, D), jnp.float32),
        "ln1b": jnp.zeros((LAYERS, 1, D), jnp.float32),
        "wqkv": jnp.stack(wqkv).astype(bf16),                          # (L, D, 3D)
        "bqkv": jnp.zeros((LAYERS, 1, 3 * D), jnp.float32),
        # out-projection pre-split per head: (L, H, DH, D)
        "wout": jnp.stack(wout).reshape(LAYERS, H, DH, D).astype(bf16),
        "bout": jnp.zeros((LAYERS, 1, D), jnp.float32),
        "ln2w": jnp.ones((LAYERS, 1, D), jnp.float32),
        "ln2b": jnp.zeros((LAYERS, 1, D), jnp.float32),
        "wfc": jnp.stack(wfc).astype(bf16),                            # (L, D, 4D)
        "bfc": jnp.zeros((LAYERS, 1, 4 * D), jnp.float32),
        "wproj": jnp.stack(wproj).astype(bf16),                        # (L, 4D, D)
        "bproj": jnp.zeros((LAYERS, 1, D), jnp.float32),
        "ln_final_w": jnp.ones((1, D), jnp.float32),
        "ln_final_b": jnp.zeros((1, D), jnp.float32),
        "text_projection": nrm(keys[2], (D, EMBED), std=D ** -0.5).astype(bf16),
    }
    return params


# ----- full encode_text forward --------------------------------------------------
def encode_text(tokens, params):
    # embedding gather + positional add (plain-JAX glue)
    x = jnp.take(params["token_embedding"], tokens, axis=0) + params["pos_embedding"]
    # EOT token = highest token id per sequence (CLIP convention); scalar-prefetched
    eot = jnp.argmax(tokens, axis=-1).astype(jnp.int32)                # (B,)
    return clip_encode_text_pallas(eot, x, params)


if __name__ == "__main__":
    key = jax.random.PRNGKey(0)
    pkey, tkey = jax.random.split(key)
    params = make_params(pkey)

    # deterministic token ids; place EOT (= VOCAB-1, the max id) per sequence
    tokens = jax.random.randint(tkey, (B, S), minval=1, maxval=VOCAB - 1, dtype=jnp.int32)
    tokens = tokens.at[0, 5].set(VOCAB - 1)
    tokens = tokens.at[1, 7].set(VOCAB - 1)

    fwd = jax.jit(encode_text)
    out = jax.block_until_ready(fwd(tokens, params))
    assert out.shape == (B, EMBED) and out.dtype == jnp.float32
    print("KERNEL_OK")
</pallas_src>

<mosaic_0001>
module attributes {stable_mosaic.version = 11 : i64} {
  func.func @text_encoder_kernel(%arg0: i32, %arg1: memref<2xi32, #tpu.memory_space<smem>>, %arg2: memref<1x8x32xf32, #tpu.memory_space<vmem>>, %arg3: memref<2x1x32xf32, #tpu.memory_space<vmem>>, %arg4: memref<2x1x32xf32, #tpu.memory_space<vmem>>, %arg5: memref<2x32x96xbf16, #tpu.memory_space<vmem>>, %arg6: memref<2x1x96xf32, #tpu.memory_space<vmem>>, %arg7: memref<2x4x8x32xbf16, #tpu.memory_space<vmem>>, %arg8: memref<2x1x32xf32, #tpu.memory_space<vmem>>, %arg9: memref<2x1x32xf32, #tpu.memory_space<vmem>>, %arg10: memref<2x1x32xf32, #tpu.memory_space<vmem>>, %arg11: memref<2x32x128xbf16, #tpu.memory_space<vmem>>, %arg12: memref<2x1x128xf32, #tpu.memory_space<vmem>>, %arg13: memref<2x128x32xbf16, #tpu.memory_space<vmem>>, %arg14: memref<2x1x32xf32, #tpu.memory_space<vmem>>, %arg15: memref<1x32xf32, #tpu.memory_space<vmem>>, %arg16: memref<1x32xf32, #tpu.memory_space<vmem>>, %arg17: memref<32x16xbf16, #tpu.memory_space<vmem>>, %arg18: memref<1x1x16xf32, #tpu.memory_space<vmem>>) attributes {dimension_semantics = [#tpu.dimension_semantics<parallel>], iteration_bounds = array<i64: 2>, scalar_prefetch = 1 : i64, scratch_operands = 0 : i64, tpu.core_type = #tpu.core_type<tc>, window_params = [{transform_indices = @transform_0, window_bounds = array<i64: 1, 8, 32>}, {pipeline_mode = #tpu.pipeline_mode<synchronous>, transform_indices = @transform_1, window_bounds = array<i64: 2, 1, 32>}, {pipeline_mode = #tpu.pipeline_mode<synchronous>, transform_indices = @transform_2, window_bounds = array<i64: 2, 1, 32>}, {pipeline_mode = #tpu.pipeline_mode<synchronous>, transform_indices = @transform_3, window_bounds = array<i64: 2, 32, 96>}, {pipeline_mode = #tpu.pipeline_mode<synchronous>, transform_indices = @transform_4, window_bounds = array<i64: 2, 1, 96>}, {pipeline_mode = #tpu.pipeline_mode<synchronous>, transform_indices = @transform_5, window_bounds = array<i64: 2, 4, 8, 32>}, {pipeline_mode = #tpu.pipeline_mode<synchronous>, transform_indices = @transform_6, window_bounds = array<i64: 2, 1, 32>}, {pipeline_mode = #tpu.pipeline_mode<synchronous>, transform_indices = @transform_7, window_bounds = array<i64: 2, 1, 32>}, {pipeline_mode = #tpu.pipeline_mode<synchronous>, transform_indices = @transform_8, window_bounds = array<i64: 2, 1, 32>}, {pipeline_mode = #tpu.pipeline_mode<synchronous>, transform_indices = @transform_9, window_bounds = array<i64: 2, 32, 128>}, {pipeline_mode = #tpu.pipeline_mode<synchronous>, transform_indices = @transform_10, window_bounds = array<i64: 2, 1, 128>}, {pipeline_mode = #tpu.pipeline_mode<synchronous>, transform_indices = @transform_11, window_bounds = array<i64: 2, 128, 32>}, {pipeline_mode = #tpu.pipeline_mode<synchronous>, transform_indices = @transform_12, window_bounds = array<i64: 2, 1, 32>}, {pipeline_mode = #tpu.pipeline_mode<synchronous>, transform_indices = @transform_13, window_bounds = array<i64: 1, 32>}, {pipeline_mode = #tpu.pipeline_mode<synchronous>, transform_indices = @transform_14, window_bounds = array<i64: 1, 32>}, {pipeline_mode = #tpu.pipeline_mode<synchronous>, transform_indices = @transform_15, window_bounds = array<i64: 32, 16>}, {transform_indices = @transform_16, window_bounds = array<i64: 1, 1, 16>}]} {
    %c0 = arith.constant 0 : index
    %c0_0 = arith.constant 0 : index
    %c0_1 = arith.constant 0 : index
    %0 = vector.load %arg2[%c0, %c0_0, %c0_1] : memref<1x8x32xf32, #tpu.memory_space<vmem>>, vector<1x8x32xf32>
    %1 = vector.shape_cast %0 : vector<1x8x32xf32> to vector<8x32xf32>
    %2 = tpu.iota {dimensions = array<i32: 0>} : vector<8x8xi32>
    %3 = tpu.iota {dimensions = array<i32: 1>} : vector<8x8xi32>
    %4 = arith.cmpi sle, %3, %2 : vector<8x8xi32>
    %cst = arith.constant 0.000000e+00 : f32
    %cst_2 = arith.constant 0xFF800000 : f32
    %5 = vector.broadcast %cst : f32 to vector<8x8xf32>
    %6 = vector.broadcast %cst_2 : f32 to vector<8x8xf32>
    %7 = arith.select %4, %5, %6 : vector<8x8xi1>, vector<8x8xf32>
    %c0_3 = arith.constant 0 : index
    %c0_4 = arith.constant 0 : index
    %c0_5 = arith.constant 0 : index
    %8 = vector.load %arg3[%c0_3, %c0_4, %c0_5] : memref<2x1x32xf32, #tpu.memory_space<vmem>>, vector<1x1x32xf32>
    %9 = vector.shape_cast %8 : vector<1x1x32xf32> to vector<1x32xf32>
    %c0_6 = arith.constant 0 : index
    %c0_7 = arith.constant 0 : index
    %c0_8 = arith.constant 0 : index
    %10 = vector.load %arg4[%c0_6, %c0_7, %c0_8] : memref<2x1x32xf32, #tpu.memory_space<vmem>>, vector<1x1x32xf32>
    %11 = vector.shape_cast %10 : vector<1x1x32xf32> to vector<1x32xf32>
    %cst_9 = arith.constant dense<0.000000e+00> : vector<8xf32>
    %12 = vector.multi_reduction <add>, %1, %cst_9 [1] : vector<8x32xf32> to vector<8xf32>
    %13 = vector.shape_cast %12 : vector<8xf32> to vector<8x1xf32>
    %cst_10 = arith.constant 3.200000e+01 : f32
    %14 = vector.broadcast %cst_10 : f32 to vector<8x1xf32>
    %15 = arith.divf %13, %14 : vector<8x1xf32>
    %16 = vector.broadcast %15 : vector<8x1xf32> to vector<8x32xf32>
    %17 = arith.subf %1, %16 : vector<8x32xf32>
    %18 = arith.mulf %17, %17 : vector<8x32xf32>
    %cst_11 = arith.constant dense<0.000000e+00> : vector<8xf32>
    %19 = vector.multi_reduction <add>, %18, %cst_11 [1] : vector<8x32xf32> to vector<8xf32>
    %20 = vector.shape_cast %19 : vector<8xf32> to vector<8x1xf32>
    %cst_12 = arith.constant 3.200000e+01 : f32
    %21 = vector.broadcast %cst_12 : f32 to vector<8x1xf32>
    %22 = arith.divf %20, %21 : vector<8x1xf32>
    %23 = vector.broadcast %15 : vector<8x1xf32> to vector<8x32xf32>
    %24 = arith.subf %1, %23 : vector<8x32xf32>
    %cst_13 = arith.constant 9.99999974E-6 : f32
    %25 = vector.broadcast %cst_13 : f32 to vector<8x1xf32>
    %26 = arith.addf %22, %25 : vector<8x1xf32>
    %27 = math.rsqrt %26 : vector<8x1xf32>
    %28 = vector.broadcast %27 : vector<8x1xf32> to vector<8x32xf32>
    %29 = arith.mulf %24, %28 : vector<8x32xf32>
    %30 = vector.broadcast %9 : vector<1x32xf32> to vector<8x32xf32>
    %31 = arith.mulf %29, %30 : vector<8x32xf32>
    %32 = vector.broadcast %11 : vector<1x32xf32> to vector<8x32xf32>
    %33 = arith.addf %31, %32 : vector<8x32xf32>
    %34 = arith.truncf %33 : vector<8x32xf32> to vector<8x32xbf16>
    %c0_14 = arith.constant 0 : index
    %c0_15 = arith.constant 0 : index
    %c0_16 = arith.constant 0 : index
    %35 = vector.load %arg5[%c0_14, %c0_15, %c0_16] : memref<2x32x96xbf16, #tpu.memory_space<vmem>>, vector<1x32x96xbf16>
    %36 = vector.shape_cast %35 : vector<1x32x96xbf16> to vector<32x96xbf16>
    %cst_17 = arith.constant dense<0.000000e+00> : vector<8x96xf32>
    %37 = tpu.matmul %34, %36, %cst_17 {dimension_numbers = #tpu.dot_dimension_numbers<[1], [0], [0], [1], [0, 0, 1, 1], [], []>} : vector<8x32xbf16>, vector<32x96xbf16>, vector<8x96xf32> -> vector<8x96xf32>
    %c0_18 = arith.constant 0 : index
    %c0_19 = arith.constant 0 : index
    %c0_20 = arith.constant 0 : index
    %38 = vector.load %arg6[%c0_18, %c0_19, %c0_20] : memref<2x1x96xf32, #tpu.memory_space<vmem>>, vector<1x1x96xf32>
    %39 = vector.shape_cast %38 : vector<1x1x96xf32> to vector<1x96xf32>
    %40 = vector.broadcast %39 : vector<1x96xf32> to vector<8x96xf32>
    %41 = arith.addf %37, %40 : vector<8x96xf32>
    %42 = vector.extract_strided_slice %41 {offsets = [0, 0], sizes = [8, 32], strides = [1, 1]} : vector<8x96xf32> to vector<8x32xf32>
    %cst_21 = arith.constant 0.353553385 : f32
    %43 = vector.broadcast %cst_21 : f32 to vector<8x32xf32>
    %44 = arith.mulf %42, %43 : vector<8x32xf32>
    %45 = vector.extract_strided_slice %41 {offsets = [0, 32], sizes = [8, 32], strides = [1, 1]} : vector<8x96xf32> to vector<8x32xf32>
    %46 = vector.extract_strided_slice %41 {offsets = [0, 64], sizes = [8, 32], strides = [1, 1]} : vector<8x96xf32> to vector<8x32xf32>
    %cst_22 = arith.constant 0.000000e+00 : f32
    %47 = vector.broadcast %cst_22 : f32 to vector<8x32xf32>
    %48 = vector.extract_strided_slice %44 {offsets = [0, 0], sizes = [8, 8], strides = [1, 1]} : vector<8x32xf32> to vector<8x8xf32>
    %49 = vector.extract_strided_slice %45 {offsets = [0, 0], sizes = [8, 8], strides = [1, 1]} : vector<8x32xf32> to vector<8x8xf32>
    %50 = tpu.transpose %49, [1, 0] : vector<8x8xf32> -> vector<8x8xf32>
    %cst_23 = arith.constant dense<0.000000e+00> : vector<8x8xf32>
    %51 = tpu.matmul %48, %50, %cst_23 {dimension_numbers = #tpu.dot_dimension_numbers<[1], [0], [0], [1], [0, 0, 1, 1], [], []>} : vector<8x8xf32>, vector<8x8xf32>, vector<8x8xf32> -> vector<8x8xf32>
    %52 = arith.addf %51, %7 : vector<8x8xf32>
    %cst_24 = arith.constant dense<0xFF800000> : vector<8xf32>
    %53 = vector.multi_reduction <maximumf>, %52, %cst_24 [1] : vector<8x8xf32> to vector<8xf32>
    %54 = vector.shape_cast %53 : vector<8xf32> to vector<8x1xf32>
    %55 = vector.broadcast %54 : vector<8x1xf32> to vector<8x8xf32>
    %56 = arith.subf %52, %55 : vector<8x8xf32>
    %57 = math.exp %56 : vector<8x8xf32>
    %cst_25 = arith.constant dense<0.000000e+00> : vector<8xf32>
    %58 = vector.multi_reduction <add>, %57, %cst_25 [1] : vector<8x8xf32> to vector<8xf32>
    %59 = vector.shape_cast %58 : vector<8xf32> to vector<8x1xf32>
    %60 = tpu.reciprocal %59 {approx = true} : vector<8x1xf32> -> vector<8x1xf32>
    %61 = vector.broadcast %60 : vector<8x1xf32> to vector<8x8xf32>
    %62 = arith.mulf %57, %61 : vector<8x8xf32>
    %63 = vector.extract_strided_slice %46 {offsets = [0, 0], sizes = [8, 8], strides = [1, 1]} : vector<8x32xf32> to vector<8x8xf32>
    %cst_26 = arith.constant dense<0.000000e+00> : vector<8x8xf32>
    %64 = tpu.matmul %62, %63, %cst_26 {dimension_numbers = #tpu.dot_dimension_numbers<[1], [0], [0], [1], [0, 0, 1, 1], [], []>} : vector<8x8xf32>, vector<8x8xf32>, vector<8x8xf32> -> vector<8x8xf32>
    %65 = arith.truncf %64 : vector<8x8xf32> to vector<8x8xbf16>
    %c0_27 = arith.constant 0 : index
    %c0_28 = arith.constant 0 : index
    %c0_29 = arith.constant 0 : index
    %c0_30 = arith.constant 0 : index
    %66 = vector.load %arg7[%c0_27, %c0_28, %c0_29, %c0_30] : memref<2x4x8x32xbf16, #tpu.memory_space<vmem>>, vector<1x1x8x32xbf16>
    %67 = vector.shape_cast %66 : vector<1x1x8x32xbf16> to vector<8x32xbf16>
    %cst_31 = arith.constant dense<0.000000e+00> : vector<8x32xf32>
    %68 = tpu.matmul %65, %67, %cst_31 {dimension_numbers = #tpu.dot_dimension_numbers<[1], [0], [0], [1], [0, 0, 1, 1], [], []>} : vector<8x8xbf16>, vector<8x32xbf16>, vector<8x32xf32> -> vector<8x32xf32>
    %69 = arith.addf %47, %68 : vector<8x32xf32>
    %70 = vector.extract_strided_slice %44 {offsets = [0, 8], sizes = [8, 8], strides = [1, 1]} : vector<8x32xf32> to vector<8x8xf32>
    %71 = vector.extract_strided_slice %45 {offsets = [0, 8], sizes = [8, 8], strides = [1, 1]} : vector<8x32xf32> to vector<8x8xf32>
    %72 = tpu.transpose %71, [1, 0] : vector<8x8xf32> -> vector<8x8xf32>
    %cst_32 = arith.constant dense<0.000000e+00> : vector<8x8xf32>
    %73 = tpu.matmul %70, %72, %cst_32 {dimension_numbers = #tpu.dot_dimension_numbers<[1], [0], [0], [1], [0, 0, 1, 1], [], []>} : vector<8x8xf32>, vector<8x8xf32>, vector<8x8xf32> -> vector<8x8xf32>
    %74 = arith.addf %73, %7 : vector<8x8xf32>
    %cst_33 = arith.constant dense<0xFF800000> : vector<8xf32>
    %75 = vector.multi_reduction <maximumf>, %74, %cst_33 [1] : vector<8x8xf32> to vector<8xf32>
    %76 = vector.shape_cast %75 : vector<8xf32> to vector<8x1xf32>
    %77 = vector.broadcast %76 : vector<8x1xf32> to vector<8x8xf32>
    %78 = arith.subf %74, %77 : vector<8x8xf32>
    %79 = math.exp %78 : vector<8x8xf32>
    %cst_34 = arith.constant dense<0.000000e+00> : vector<8xf32>
    %80 = vector.multi_reduction <add>, %79, %cst_34 [1] : vector<8x8xf32> to vector<8xf32>
    %81 = vector.shape_cast %80 : vector<8xf32> to vector<8x1xf32>
    %82 = tpu.reciprocal %81 {approx = true} : vector<8x1xf32> -> vector<8x1xf32>
    %83 = vector.broadcast %82 : vector<8x1xf32> to vector<8x8xf32>
    %84 = arith.mulf %79, %83 : vector<8x8xf32>
    %85 = vector.extract_strided_slice %46 {offsets = [0, 8], sizes = [8, 8], strides = [1, 1]} : vector<8x32xf32> to vector<8x8xf32>
    %cst_35 = arith.constant dense<0.000000e+00> : vector<8x8xf32>
    %86 = tpu.matmul %84, %85, %cst_35 {dimension_numbers = #tpu.dot_dimension_numbers<[1], [0], [0], [1], [0, 0, 1, 1], [], []>} : vector<8x8xf32>, vector<8x8xf32>, vector<8x8xf32> -> vector<8x8xf32>
    %87 = arith.truncf %86 : vector<8x8xf32> to vector<8x8xbf16>
    %c0_36 = arith.constant 0 : index
    %c1 = arith.constant 1 : index
    %c0_37 = arith.constant 0 : index
    %c0_38 = arith.constant 0 : index
    %88 = vector.load %arg7[%c0_36, %c1, %c0_37, %c0_38] : memref<2x4x8x32xbf16, #tpu.memory_space<vmem>>, vector<1x1x8x32xbf16>
    %89 = vector.shape_cast %88 : vector<1x1x8x32xbf16> to vector<8x32xbf16>
    %cst_39 = arith.constant dense<0.000000e+00> : vector<8x32xf32>
    %90 = tpu.matmul %87, %89, %cst_39 {dimension_numbers = #tpu.dot_dimension_numbers<[1], [0], [0], [1], [0, 0, 1, 1], [], []>} : vector<8x8xbf16>, vector<8x32xbf16>, vector<8x32xf32> -> vector<8x32xf32>
    %91 = arith.addf %69, %90 : vector<8x32xf32>
    %92 = vector.extract_strided_slice %44 {offsets = [0, 16], sizes = [8, 8], strides = [1, 1]} : vector<8x32xf32> to vector<8x8xf32>
    %93 = vector.extract_strided_slice %45 {offsets = [0, 16], sizes = [8, 8], strides = [1, 1]} : vector<8x32xf32> to vector<8x8xf32>
    %94 = tpu.transpose %93, [1, 0] : vector<8x8xf32> -> vector<8x8xf32>
    %cst_40 = arith.constant dense<0.000000e+00> : vector<8x8xf32>
    %95 = tpu.matmul %92, %94, %cst_40 {dimension_numbers = #tpu.dot_dimension_numbers<[1], [0], [0], [1], [0, 0, 1, 1], [], []>} : vector<8x8xf32>, vector<8x8xf32>, vector<8x8xf32> -> vector<8x8xf32>
    %96 = arith.addf %95, %7 : vector<8x8xf32>
    %cst_41 = arith.constant dense<0xFF800000> : vector<8xf32>
    %97 = vector.multi_reduction <maximumf>, %96, %cst_41 [1] : vector<8x8xf32> to vector<8xf32>
    %98 = vector.shape_cast %97 : vector<8xf32> to vector<8x1xf32>
    %99 = vector.broadcast %98 : vector<8x1xf32> to vector<8x8xf32>
    %100 = arith.subf %96, %99 : vector<8x8xf32>
    %101 = math.exp %100 : vector<8x8xf32>
    %cst_42 = arith.constant dense<0.000000e+00> : vector<8xf32>
    %102 = vector.multi_reduction <add>, %101, %cst_42 [1] : vector<8x8xf32> to vector<8xf32>
    %103 = vector.shape_cast %102 : vector<8xf32> to vector<8x1xf32>
    %104 = tpu.reciprocal %103 {approx = true} : vector<8x1xf32> -> vector<8x1xf32>
    %105 = vector.broadcast %104 : vector<8x1xf32> to vector<8x8xf32>
    %106 = arith.mulf %101, %105 : vector<8x8xf32>
    %107 = vector.extract_strided_slice %46 {offsets = [0, 16], sizes = [8, 8], strides = [1, 1]} : vector<8x32xf32> to vector<8x8xf32>
    %cst_43 = arith.constant dense<0.000000e+00> : vector<8x8xf32>
    %108 = tpu.matmul %106, %107, %cst_43 {dimension_numbers = #tpu.dot_dimension_numbers<[1], [0], [0], [1], [0, 0, 1, 1], [], []>} : vector<8x8xf32>, vector<8x8xf32>, vector<8x8xf32> -> vector<8x8xf32>
    %109 = arith.truncf %108 : vector<8x8xf32> to vector<8x8xbf16>
    %c0_44 = arith.constant 0 : index
    %c2 = arith.constant 2 : index
    %c0_45 = arith.constant 0 : index
    %c0_46 = arith.constant 0 : index
    %110 = vector.load %arg7[%c0_44, %c2, %c0_45, %c0_46] : memref<2x4x8x32xbf16, #tpu.memory_space<vmem>>, vector<1x1x8x32xbf16>
    %111 = vector.shape_cast %110 : vector<1x1x8x32xbf16> to vector<8x32xbf16>
    %cst_47 = arith.constant dense<0.000000e+00> : vector<8x32xf32>
    %112 = tpu.matmul %109, %111, %cst_47 {dimension_numbers = #tpu.dot_dimension_numbers<[1], [0], [0], [1], [0, 0, 1, 1], [], []>} : vector<8x8xbf16>, vector<8x32xbf16>, vector<8x32xf32> -> vector<8x32xf32>
    %113 = arith.addf %91, %112 : vector<8x32xf32>
    %114 = vector.extract_strided_slice %44 {offsets = [0, 24], sizes = [8, 8], strides = [1, 1]} : vector<8x32xf32> to vector<8x8xf32>
    %115 = vector.extract_strided_slice %45 {offsets = [0, 24], sizes = [8, 8], strides = [1, 1]} : vector<8x32xf32> to vector<8x8xf32>
    %116 = tpu.transpose %115, [1, 0] : vector<8x8xf32> -> vector<8x8xf32>
    %cst_48 = arith.constant dense<0.000000e+00> : vector<8x8xf32>
    %117 = tpu.matmul %114, %116, %cst_48 {dimension_numbers = #tpu.dot_dimension_numbers<[1], [0], [0], [1], [0, 0, 1, 1], [], []>} : vector<8x8xf32>, vector<8x8xf32>, vector<8x8xf32> -> vector<8x8xf32>
    %118 = arith.addf %117, %7 : vector<8x8xf32>
    %cst_49 = arith.constant dense<0xFF800000> : vector<8xf32>
    %119 = vector.multi_reduction <maximumf>, %118, %cst_49 [1] : vector<8x8xf32> to vector<8xf32>
    %120 = vector.shape_cast %119 : vector<8xf32> to vector<8x1xf32>
    %121 = vector.broadcast %120 : vector<8x1xf32> to vector<8x8xf32>
    %122 = arith.subf %118, %121 : vector<8x8xf32>
    %123 = math.exp %122 : vector<8x8xf32>
    %cst_50 = arith.constant dense<0.000000e+00> : vector<8xf32>
    %124 = vector.multi_reduction <add>, %123, %cst_50 [1] : vector<8x8xf32> to vector<8xf32>
    %125 = vector.shape_cast %124 : vector<8xf32> to vector<8x1xf32>
    %126 = tpu.reciprocal %125 {approx = true} : vector<8x1xf32> -> vector<8x1xf32>
    %127 = vector.broadcast %126 : vector<8x1xf32> to vector<8x8xf32>
    %128 = arith.mulf %123, %127 : vector<8x8xf32>
    %129 = vector.extract_strided_slice %46 {offsets = [0, 24], sizes = [8, 8], strides = [1, 1]} : vector<8x32xf32> to vector<8x8xf32>
    %cst_51 = arith.constant dense<0.000000e+00> : vector<8x8xf32>
    %130 = tpu.matmul %128, %129, %cst_51 {dimension_numbers = #tpu.dot_dimension_numbers<[1], [0], [0], [1], [0, 0, 1, 1], [], []>} : vector<8x8xf32>, vector<8x8xf32>, vector<8x8xf32> -> vector<8x8xf32>
    %131 = arith.truncf %130 : vector<8x8xf32> to vector<8x8xbf16>
    %c0_52 = arith.constant 0 : index
    %c3 = arith.constant 3 : index
    %c0_53 = arith.constant 0 : index
    %c0_54 = arith.constant 0 : index
    %132 = vector.load %arg7[%c0_52, %c3, %c0_53, %c0_54] : memref<2x4x8x32xbf16, #tpu.memory_space<vmem>>, vector<1x1x8x32xbf16>
    %133 = vector.shape_cast %132 : vector<1x1x8x32xbf16> to vector<8x32xbf16>
    %cst_55 = arith.constant dense<0.000000e+00> : vector<8x32xf32>
    %134 = tpu.matmul %131, %133, %cst_55 {dimension_numbers = #tpu.dot_dimension_numbers<[1], [0], [0], [1], [0, 0, 1, 1], [], []>} : vector<8x8xbf16>, vector<8x32xbf16>, vector<8x32xf32> -> vector<8x32xf32>
    %135 = arith.addf %113, %134 : vector<8x32xf32>
    %136 = arith.addf %1, %135 : vector<8x32xf32>
    %c0_56 = arith.constant 0 : index
    %c0_57 = arith.constant 0 : index
    %c0_58 = arith.constant 0 : index
    %137 = vector.load %arg8[%c0_56, %c0_57, %c0_58] : memref<2x1x32xf32, #tpu.memory_space<vmem>>, vector<1x1x32xf32>
    %138 = vector.shape_cast %137 : vector<1x1x32xf32> to vector<1x32xf32>
    %139 = vector.broadcast %138 : vector<1x32xf32> to vector<8x32xf32>
    %140 = arith.addf %136, %139 : vector<8x32xf32>
    %c0_59 = arith.constant 0 : index
    %c0_60 = arith.constant 0 : index
    %c0_61 = arith.constant 0 : index
    %141 = vector.load %arg9[%c0_59, %c0_60, %c0_61] : memref<2x1x32xf32, #tpu.memory_space<vmem>>, vector<1x1x32xf32>
    %142 = vector.shape_cast %141 : vector<1x1x32xf32> to vector<1x32xf32>
    %c0_62 = arith.constant 0 : index
    %c0_63 = arith.constant 0 : index
    %c0_64 = arith.constant 0 : index
    %143 = vector.load %arg10[%c0_62, %c0_63, %c0_64] : memref<2x1x32xf32, #tpu.memory_space<vmem>>, vector<1x1x32xf32>
    %144 = vector.shape_cast %143 : vector<1x1x32xf32> to vector<1x32xf32>
    %cst_65 = arith.constant dense<0.000000e+00> : vector<8xf32>
    %145 = vector.multi_reduction <add>, %140, %cst_65 [1] : vector<8x32xf32> to vector<8xf32>
    %146 = vector.shape_cast %145 : vector<8xf32> to vector<8x1xf32>
    %cst_66 = arith.constant 3.200000e+01 : f32
    %147 = vector.broadcast %cst_66 : f32 to vector<8x1xf32>
    %148 = arith.divf %146, %147 : vector<8x1xf32>
    %149 = vector.broadcast %148 : vector<8x1xf32> to vector<8x32xf32>
    %150 = arith.subf %140, %149 : vector<8x32xf32>
    %151 = arith.mulf %150, %150 : vector<8x32xf32>
    %cst_67 = arith.constant dense<0.000000e+00> : vector<8xf32>
    %152 = vector.multi_reduction <add>, %151, %cst_67 [1] : vector<8x32xf32> to vector<8xf32>
    %153 = vector.shape_cast %152 : vector<8xf32> to vector<8x1xf32>
    %cst_68 = arith.constant 3.200000e+01 : f32
    %154 = vector.broadcast %cst_68 : f32 to vector<8x1xf32>
    %155 = arith.divf %153, %154 : vector<8x1xf32>
    %156 = vector.broadcast %148 : vector<8x1xf32> to vector<8x32xf32>
    %157 = arith.subf %140, %156 : vector<8x32xf32>
    %cst_69 = arith.constant 9.99999974E-6 : f32
    %158 = vector.broadcast %cst_69 : f32 to vector<8x1xf32>
    %159 = arith.addf %155, %158 : vector<8x1xf32>
    %160 = math.rsqrt %159 : vector<8x1xf32>
    %161 = vector.broadcast %160 : vector<8x1xf32> to vector<8x32xf32>
    %162 = arith.mulf %157, %161 : vector<8x32xf32>
    %163 = vector.broadcast %142 : vector<1x32xf32> to vector<8x32xf32>
    %164 = arith.mulf %162, %163 : vector<8x32xf32>
    %165 = vector.broadcast %144 : vector<1x32xf32> to vector<8x32xf32>
    %166 = arith.addf %164, %165 : vector<8x32xf32>
    %167 = arith.truncf %166 : vector<8x32xf32> to vector<8x32xbf16>
    %c0_70 = arith.constant 0 : index
    %c0_71 = arith.constant 0 : index
    %c0_72 = arith.constant 0 : index
    %168 = vector.load %arg11[%c0_70, %c0_71, %c0_72] : memref<2x32x128xbf16, #tpu.memory_space<vmem>>, vector<1x32x128xbf16>
    %169 = vector.shape_cast %168 : vector<1x32x128xbf16> to vector<32x128xbf16>
    %cst_73 = arith.constant dense<0.000000e+00> : vector<8x128xf32>
    %170 = tpu.matmul %167, %169, %cst_73 {dimension_numbers = #tpu.dot_dimension_numbers<[1], [0], [0], [1], [0, 0, 1, 1], [], []>} : vector<8x32xbf16>, vector<32x128xbf16>, vector<8x128xf32> -> vector<8x128xf32>
    %c0_74 = arith.constant 0 : index
    %c0_75 = arith.constant 0 : index
    %c0_76 = arith.constant 0 : index
    %171 = vector.load %arg12[%c0_74, %c0_75, %c0_76] : memref<2x1x128xf32, #tpu.memory_space<vmem>>, vector<1x1x128xf32>
    %172 = vector.shape_cast %171 : vector<1x1x128xf32> to vector<1x128xf32>
    %173 = vector.broadcast %172 : vector<1x128xf32> to vector<8x128xf32>
    %174 = arith.addf %170, %173 : vector<8x128xf32>
    %cst_77 = arith.constant 1.702000e+00 : f32
    %175 = vector.broadcast %cst_77 : f32 to vector<8x128xf32>
    %176 = arith.mulf %175, %174 : vector<8x128xf32>
    %177 = arith.negf %176 : vector<8x128xf32>
    %178 = math.exp %177 : vector<8x128xf32>
    %cst_78 = arith.constant 1.000000e+00 : f32
    %179 = vector.broadcast %cst_78 : f32 to vector<8x128xf32>
    %180 = arith.addf %179, %178 : vector<8x128xf32>
    %181 = arith.divf %179, %180 : vector<8x128xf32>
    %182 = arith.mulf %174, %181 : vector<8x128xf32>
    %183 = arith.truncf %182 : vector<8x128xf32> to vector<8x128xbf16>
    %c0_79 = arith.constant 0 : index
    %c0_80 = arith.constant 0 : index
    %c0_81 = arith.constant 0 : index
    %184 = vector.load %arg13[%c0_79, %c0_80, %c0_81] : memref<2x128x32xbf16, #tpu.memory_space<vmem>>, vector<1x128x32xbf16>
    %185 = vector.shape_cast %184 : vector<1x128x32xbf16> to vector<128x32xbf16>
    %cst_82 = arith.constant dense<0.000000e+00> : vector<8x32xf32>
    %186 = tpu.matmul %183, %185, %cst_82 {dimension_numbers = #tpu.dot_dimension_numbers<[1], [0], [0], [1], [0, 0, 1, 1], [], []>} : vector<8x128xbf16>, vector<128x32xbf16>, vector<8x32xf32> -> vector<8x32xf32>
    %187 = arith.addf %140, %186 : vector<8x32xf32>
    %c0_83 = arith.constant 0 : index
    %c0_84 = arith.constant 0 : index
    %c0_85 = arith.constant 0 : index
    %188 = vector.load %arg14[%c0_83, %c0_84, %c0_85] : memref<2x1x32xf32, #tpu.memory_space<vmem>>, vector<1x1x32xf32>
    %189 = vector.shape_cast %188 : vector<1x1x32xf32> to vector<1x32xf32>
    %190 = vector.broadcast %189 : vector<1x32xf32> to vector<8x32xf32>
    %191 = arith.addf %187, %190 : vector<8x32xf32>
    %c1_86 = arith.constant 1 : index
    %c0_87 = arith.constant 0 : index
    %c0_88 = arith.constant 0 : index
    %192 = vector.load %arg3[%c1_86, %c0_87, %c0_88] : memref<2x1x32xf32, #tpu.memory_space<vmem>>, vector<1x1x32xf32>
    %193 = vector.shape_cast %192 : vector<1x1x32xf32> to vector<1x32xf32>
    %c1_89 = arith.constant 1 : index
    %c0_90 = arith.constant 0 : index
    %c0_91 = arith.constant 0 : index
    %194 = vector.load %arg4[%c1_89, %c0_90, %c0_91] : memref<2x1x32xf32, #tpu.memory_space<vmem>>, vector<1x1x32xf32>
    %195 = vector.shape_cast %194 : vector<1x1x32xf32> to vector<1x32xf32>
    %cst_92 = arith.constant dense<0.000000e+00> : vector<8xf32>
    %196 = vector.multi_reduction <add>, %191, %cst_92 [1] : vector<8x32xf32> to vector<8xf32>
    %197 = vector.shape_cast %196 : vector<8xf32> to vector<8x1xf32>
    %cst_93 = arith.constant 3.200000e+01 : f32
    %198 = vector.broadcast %cst_93 : f32 to vector<8x1xf32>
    %199 = arith.divf %197, %198 : vector<8x1xf32>
    %200 = vector.broadcast %199 : vector<8x1xf32> to vector<8x32xf32>
    %201 = arith.subf %191, %200 : vector<8x32xf32>
    %202 = arith.mulf %201, %201 : vector<8x32xf32>
    %cst_94 = arith.constant dense<0.000000e+00> : vector<8xf32>
    %203 = vector.multi_reduction <add>, %202, %cst_94 [1] : vector<8x32xf32> to vector<8xf32>
    %204 = vector.shape_cast %203 : vector<8xf32> to vector<8x1xf32>
    %cst_95 = arith.constant 3.200000e+01 : f32
    %205 = vector.broadcast %cst_95 : f32 to vector<8x1xf32>
    %206 = arith.divf %204, %205 : vector<8x1xf32>
    %207 = vector.broadcast %199 : vector<8x1xf32> to vector<8x32xf32>
    %208 = arith.subf %191, %207 : vector<8x32xf32>
    %cst_96 = arith.constant 9.99999974E-6 : f32
    %209 = vector.broadcast %cst_96 : f32 to vector<8x1xf32>
    %210 = arith.addf %206, %209 : vector<8x1xf32>
    %211 = math.rsqrt %210 : vector<8x1xf32>
    %212 = vector.broadcast %211 : vector<8x1xf32> to vector<8x32xf32>
    %213 = arith.mulf %208, %212 : vector<8x32xf32>
    %214 = vector.broadcast %193 : vector<1x32xf32> to vector<8x32xf32>
    %215 = arith.mulf %213, %214 : vector<8x32xf32>
    %216 = vector.broadcast %195 : vector<1x32xf32> to vector<8x32xf32>
    %217 = arith.addf %215, %216 : vector<8x32xf32>
    %218 = arith.truncf %217 : vector<8x32xf32> to vector<8x32xbf16>
    %c1_97 = arith.constant 1 : index
    %c0_98 = arith.constant 0 : index
    %c0_99 = arith.constant 0 : index
    %219 = vector.load %arg5[%c1_97, %c0_98, %c0_99] : memref<2x32x96xbf16, #tpu.memory_space<vmem>>, vector<1x32x96xbf16>
    %220 = vector.shape_cast %219 : vector<1x32x96xbf16> to vector<32x96xbf16>
    %cst_100 = arith.constant dense<0.000000e+00> : vector<8x96xf32>
    %221 = tpu.matmul %218, %220, %cst_100 {dimension_numbers = #tpu.dot_dimension_numbers<[1], [0], [0], [1], [0, 0, 1, 1], [], []>} : vector<8x32xbf16>, vector<32x96xbf16>, vector<8x96xf32> -> vector<8x96xf32>
    %c1_101 = arith.constant 1 : index
    %c0_102 = arith.constant 0 : index
    %c0_103 = arith.constant 0 : index
    %222 = vector.load %arg6[%c1_101, %c0_102, %c0_103] : memref<2x1x96xf32, #tpu.memory_space<vmem>>, vector<1x1x96xf32>
    %223 = vector.shape_cast %222 : vector<1x1x96xf32> to vector<1x96xf32>
    %224 = vector.broadcast %223 : vector<1x96xf32> to vector<8x96xf32>
    %225 = arith.addf %221, %224 : vector<8x96xf32>
    %226 = vector.extract_strided_slice %225 {offsets = [0, 0], sizes = [8, 32], strides = [1, 1]} : vector<8x96xf32> to vector<8x32xf32>
    %cst_104 = arith.constant 0.353553385 : f32
    %227 = vector.broadcast %cst_104 : f32 to vector<8x32xf32>
    %228 = arith.mulf %226, %227 : vector<8x32xf32>
    %229 = vector.extract_strided_slice %225 {offsets = [0, 32], sizes = [8, 32], strides = [1, 1]} : vector<8x96xf32> to vector<8x32xf32>
    %230 = vector.extract_strided_slice %225 {offsets = [0, 64], sizes = [8, 32], strides = [1, 1]} : vector<8x96xf32> to vector<8x32xf32>
    %cst_105 = arith.constant 0.000000e+00 : f32
    %231 = vector.broadcast %cst_105 : f32 to vector<8x32xf32>
    %232 = vector.extract_strided_slice %228 {offsets = [0, 0], sizes = [8, 8], strides = [1, 1]} : vector<8x32xf32> to vector<8x8xf32>
    %233 = vector.extract_strided_slice %229 {offsets = [0, 0], sizes = [8, 8], strides = [1, 1]} : vector<8x32xf32> to vector<8x8xf32>
    %234 = tpu.transpose %233, [1, 0] : vector<8x8xf32> -> vector<8x8xf32>
    %cst_106 = arith.constant dense<0.000000e+00> : vector<8x8xf32>
    %235 = tpu.matmul %232, %234, %cst_106 {dimension_numbers = #tpu.dot_dimension_numbers<[1], [0], [0], [1], [0, 0, 1, 1], [], []>} : vector<8x8xf32>, vector<8x8xf32>, vector<8x8xf32> -> vector<8x8xf32>
    %236 = arith.addf %235, %7 : vector<8x8xf32>
    %cst_107 = arith.constant dense<0xFF800000> : vector<8xf32>
    %237 = vector.multi_reduction <maximumf>, %236, %cst_107 [1] : vector<8x8xf32> to vector<8xf32>
    %238 = vector.shape_cast %237 : vector<8xf32> to vector<8x1xf32>
    %239 = vector.broadcast %238 : vector<8x1xf32> to vector<8x8xf32>
    %240 = arith.subf %236, %239 : vector<8x8xf32>
    %241 = math.exp %240 : vector<8x8xf32>
    %cst_108 = arith.constant dense<0.000000e+00> : vector<8xf32>
    %242 = vector.multi_reduction <add>, %241, %cst_108 [1] : vector<8x8xf32> to vector<8xf32>
    %243 = vector.shape_cast %242 : vector<8xf32> to vector<8x1xf32>
    %244 = tpu.reciprocal %243 {approx = true} : vector<8x1xf32> -> vector<8x1xf32>
    %245 = vector.broadcast %244 : vector<8x1xf32> to vector<8x8xf32>
    %246 = arith.mulf %241, %245 : vector<8x8xf32>
    %247 = vector.extract_strided_slice %230 {offsets = [0, 0], sizes = [8, 8], strides = [1, 1]} : vector<8x32xf32> to vector<8x8xf32>
    %cst_109 = arith.constant dense<0.000000e+00> : vector<8x8xf32>
    %248 = tpu.matmul %246, %247, %cst_109 {dimension_numbers = #tpu.dot_dimension_numbers<[1], [0], [0], [1], [0, 0, 1, 1], [], []>} : vector<8x8xf32>, vector<8x8xf32>, vector<8x8xf32> -> vector<8x8xf32>
    %249 = arith.truncf %248 : vector<8x8xf32> to vector<8x8xbf16>
    %c1_110 = arith.constant 1 : index
    %c0_111 = arith.constant 0 : index
    %c0_112 = arith.constant 0 : index
    %c0_113 = arith.constant 0 : index
    %250 = vector.load %arg7[%c1_110, %c0_111, %c0_112, %c0_113] : memref<2x4x8x32xbf16, #tpu.memory_space<vmem>>, vector<1x1x8x32xbf16>
    %251 = vector.shape_cast %250 : vector<1x1x8x32xbf16> to vector<8x32xbf16>
    %cst_114 = arith.constant dense<0.000000e+00> : vector<8x32xf32>
    %252 = tpu.matmul %249, %251, %cst_114 {dimension_numbers = #tpu.dot_dimension_numbers<[1], [0], [0], [1], [0, 0, 1, 1], [], []>} : vector<8x8xbf16>, vector<8x32xbf16>, vector<8x32xf32> -> vector<8x32xf32>
    %253 = arith.addf %231, %252 : vector<8x32xf32>
    %254 = vector.extract_strided_slice %228 {offsets = [0, 8], sizes = [8, 8], strides = [1, 1]} : vector<8x32xf32> to vector<8x8xf32>
    %255 = vector.extract_strided_slice %229 {offsets = [0, 8], sizes = [8, 8], strides = [1, 1]} : vector<8x32xf32> to vector<8x8xf32>
    %256 = tpu.transpose %255, [1, 0] : vector<8x8xf32> -> vector<8x8xf32>
    %cst_115 = arith.constant dense<0.000000e+00> : vector<8x8xf32>
    %257 = tpu.matmul %254, %256, %cst_115 {dimension_numbers = #tpu.dot_dimension_numbers<[1], [0], [0], [1], [0, 0, 1, 1], [], []>} : vector<8x8xf32>, vector<8x8xf32>, vector<8x8xf32> -> vector<8x8xf32>
    %258 = arith.addf %257, %7 : vector<8x8xf32>
    %cst_116 = arith.constant dense<0xFF800000> : vector<8xf32>
    %259 = vector.multi_reduction <maximumf>, %258, %cst_116 [1] : vector<8x8xf32> to vector<8xf32>
    %260 = vector.shape_cast %259 : vector<8xf32> to vector<8x1xf32>
    %261 = vector.broadcast %260 : vector<8x1xf32> to vector<8x8xf32>
    %262 = arith.subf %258, %261 : vector<8x8xf32>
    %263 = math.exp %262 : vector<8x8xf32>
    %cst_117 = arith.constant dense<0.000000e+00> : vector<8xf32>
    %264 = vector.multi_reduction <add>, %263, %cst_117 [1] : vector<8x8xf32> to vector<8xf32>
    %265 = vector.shape_cast %264 : vector<8xf32> to vector<8x1xf32>
    %266 = tpu.reciprocal %265 {approx = true} : vector<8x1xf32> -> vector<8x1xf32>
    %267 = vector.broadcast %266 : vector<8x1xf32> to vector<8x8xf32>
    %268 = arith.mulf %263, %267 : vector<8x8xf32>
    %269 = vector.extract_strided_slice %230 {offsets = [0, 8], sizes = [8, 8], strides = [1, 1]} : vector<8x32xf32> to vector<8x8xf32>
    %cst_118 = arith.constant dense<0.000000e+00> : vector<8x8xf32>
    %270 = tpu.matmul %268, %269, %cst_118 {dimension_numbers = #tpu.dot_dimension_numbers<[1], [0], [0], [1], [0, 0, 1, 1], [], []>} : vector<8x8xf32>, vector<8x8xf32>, vector<8x8xf32> -> vector<8x8xf32>
    %271 = arith.truncf %270 : vector<8x8xf32> to vector<8x8xbf16>
    %c1_119 = arith.constant 1 : index
    %c1_120 = arith.constant 1 : index
    %c0_121 = arith.constant 0 : index
    %c0_122 = arith.constant 0 : index
    %272 = vector.load %arg7[%c1_119, %c1_120, %c0_121, %c0_122] : memref<2x4x8x32xbf16, #tpu.memory_space<vmem>>, vector<1x1x8x32xbf16>
    %273 = vector.shape_cast %272 : vector<1x1x8x32xbf16> to vector<8x32xbf16>
    %cst_123 = arith.constant dense<0.000000e+00> : vector<8x32xf32>
    %274 = tpu.matmul %271, %273, %cst_123 {dimension_numbers = #tpu.dot_dimension_numbers<[1], [0], [0], [1], [0, 0, 1, 1], [], []>} : vector<8x8xbf16>, vector<8x32xbf16>, vector<8x32xf32> -> vector<8x32xf32>
    %275 = arith.addf %253, %274 : vector<8x32xf32>
    %276 = vector.extract_strided_slice %228 {offsets = [0, 16], sizes = [8, 8], strides = [1, 1]} : vector<8x32xf32> to vector<8x8xf32>
    %277 = vector.extract_strided_slice %229 {offsets = [0, 16], sizes = [8, 8], strides = [1, 1]} : vector<8x32xf32> to vector<8x8xf32>
    %278 = tpu.transpose %277, [1, 0] : vector<8x8xf32> -> vector<8x8xf32>
    %cst_124 = arith.constant dense<0.000000e+00> : vector<8x8xf32>
    %279 = tpu.matmul %276, %278, %cst_124 {dimension_numbers = #tpu.dot_dimension_numbers<[1], [0], [0], [1], [0, 0, 1, 1], [], []>} : vector<8x8xf32>, vector<8x8xf32>, vector<8x8xf32> -> vector<8x8xf32>
    %280 = arith.addf %279, %7 : vector<8x8xf32>
    %cst_125 = arith.constant dense<0xFF800000> : vector<8xf32>
    %281 = vector.multi_reduction <maximumf>, %280, %cst_125 [1] : vector<8x8xf32> to vector<8xf32>
    %282 = vector.shape_cast %281 : vector<8xf32> to vector<8x1xf32>
    %283 = vector.broadcast %282 : vector<8x1xf32> to vector<8x8xf32>
    %284 = arith.subf %280, %283 : vector<8x8xf32>
    %285 = math.exp %284 : vector<8x8xf32>
    %cst_126 = arith.constant dense<0.000000e+00> : vector<8xf32>
    %286 = vector.multi_reduction <add>, %285, %cst_126 [1] : vector<8x8xf32> to vector<8xf32>
    %287 = vector.shape_cast %286 : vector<8xf32> to vector<8x1xf32>
    %288 = tpu.reciprocal %287 {approx = true} : vector<8x1xf32> -> vector<8x1xf32>
    %289 = vector.broadcast %288 : vector<8x1xf32> to vector<8x8xf32>
    %290 = arith.mulf %285, %289 : vector<8x8xf32>
    %291 = vector.extract_strided_slice %230 {offsets = [0, 16], sizes = [8, 8], strides = [1, 1]} : vector<8x32xf32> to vector<8x8xf32>
    %cst_127 = arith.constant dense<0.000000e+00> : vector<8x8xf32>
    %292 = tpu.matmul %290, %291, %cst_127 {dimension_numbers = #tpu.dot_dimension_numbers<[1], [0], [0], [1], [0, 0, 1, 1], [], []>} : vector<8x8xf32>, vector<8x8xf32>, vector<8x8xf32> -> vector<8x8xf32>
    %293 = arith.truncf %292 : vector<8x8xf32> to vector<8x8xbf16>
    %c1_128 = arith.constant 1 : index
    %c2_129 = arith.constant 2 : index
    %c0_130 = arith.constant 0 : index
    %c0_131 = arith.constant 0 : index
    %294 = vector.load %arg7[%c1_128, %c2_129, %c0_130, %c0_131] : memref<2x4x8x32xbf16, #tpu.memory_space<vmem>>, vector<1x1x8x32xbf16>
    %295 = vector.shape_cast %294 : vector<1x1x8x32xbf16> to vector<8x32xbf16>
    %cst_132 = arith.constant dense<0.000000e+00> : vector<8x32xf32>
    %296 = tpu.matmul %293, %295, %cst_132 {dimension_numbers = #tpu.dot_dimension_numbers<[1], [0], [0], [1], [0, 0, 1, 1], [], []>} : vector<8x8xbf16>, vector<8x32xbf16>, vector<8x32xf32> -> vector<8x32xf32>
    %297 = arith.addf %275, %296 : vector<8x32xf32>
    %298 = vector.extract_strided_slice %228 {offsets = [0, 24], sizes = [8, 8], strides = [1, 1]} : vector<8x32xf32> to vector<8x8xf32>
    %299 = vector.extract_strided_slice %229 {offsets = [0, 24], sizes = [8, 8], strides = [1, 1]} : vector<8x32xf32> to vector<8x8xf32>
    %300 = tpu.transpose %299, [1, 0] : vector<8x8xf32> -> vector<8x8xf32>
    %cst_133 = arith.constant dense<0.000000e+00> : vector<8x8xf32>
    %301 = tpu.matmul %298, %300, %cst_133 {dimension_numbers = #tpu.dot_dimension_numbers<[1], [0], [0], [1], [0, 0, 1, 1], [], []>} : vector<8x8xf32>, vector<8x8xf32>, vector<8x8xf32> -> vector<8x8xf32>
    %302 = arith.addf %301, %7 : vector<8x8xf32>
    %cst_134 = arith.constant dense<0xFF800000> : vector<8xf32>
    %303 = vector.multi_reduction <maximumf>, %302, %cst_134 [1] : vector<8x8xf32> to vector<8xf32>
    %304 = vector.shape_cast %303 : vector<8xf32> to vector<8x1xf32>
    %305 = vector.broadcast %304 : vector<8x1xf32> to vector<8x8xf32>
    %306 = arith.subf %302, %305 : vector<8x8xf32>
    %307 = math.exp %306 : vector<8x8xf32>
    %cst_135 = arith.constant dense<0.000000e+00> : vector<8xf32>
    %308 = vector.multi_reduction <add>, %307, %cst_135 [1] : vector<8x8xf32> to vector<8xf32>
    %309 = vector.shape_cast %308 : vector<8xf32> to vector<8x1xf32>
    %310 = tpu.reciprocal %309 {approx = true} : vector<8x1xf32> -> vector<8x1xf32>
    %311 = vector.broadcast %310 : vector<8x1xf32> to vector<8x8xf32>
    %312 = arith.mulf %307, %311 : vector<8x8xf32>
    %313 = vector.extract_strided_slice %230 {offsets = [0, 24], sizes = [8, 8], strides = [1, 1]} : vector<8x32xf32> to vector<8x8xf32>
    %cst_136 = arith.constant dense<0.000000e+00> : vector<8x8xf32>
    %314 = tpu.matmul %312, %313, %cst_136 {dimension_numbers = #tpu.dot_dimension_numbers<[1], [0], [0], [1], [0, 0, 1, 1], [], []>} : vector<8x8xf32>, vector<8x8xf32>, vector<8x8xf32> -> vector<8x8xf32>
    %315 = arith.truncf %314 : vector<8x8xf32> to vector<8x8xbf16>
    %c1_137 = arith.constant 1 : index
    %c3_138 = arith.constant 3 : index
    %c0_139 = arith.constant 0 : index
    %c0_140 = arith.constant 0 : index
    %316 = vector.load %arg7[%c1_137, %c3_138, %c0_139, %c0_140] : memref<2x4x8x32xbf16, #tpu.memory_space<vmem>>, vector<1x1x8x32xbf16>
    %317 = vector.shape_cast %316 : vector<1x1x8x32xbf16> to vector<8x32xbf16>
    %cst_141 = arith.constant dense<0.000000e+00> : vector<8x32xf32>
    %318 = tpu.matmul %315, %317, %cst_141 {dimension_numbers = #tpu.dot_dimension_numbers<[1], [0], [0], [1], [0, 0, 1, 1], [], []>} : vector<8x8xbf16>, vector<8x32xbf16>, vector<8x32xf32> -> vector<8x32xf32>
    %319 = arith.addf %297, %318 : vector<8x32xf32>
    %320 = arith.addf %191, %319 : vector<8x32xf32>
    %c1_142 = arith.constant 1 : index
    %c0_143 = arith.constant 0 : index
    %c0_144 = arith.constant 0 : index
    %321 = vector.load %arg8[%c1_142, %c0_143, %c0_144] : memref<2x1x32xf32, #tpu.memory_space<vmem>>, vector<1x1x32xf32>
    %322 = vector.shape_cast %321 : vector<1x1x32xf32> to vector<1x32xf32>
    %323 = vector.broadcast %322 : vector<1x32xf32> to vector<8x32xf32>
    %324 = arith.addf %320, %323 : vector<8x32xf32>
    %c1_145 = arith.constant 1 : index
    %c0_146 = arith.constant 0 : index
    %c0_147 = arith.constant 0 : index
    %325 = vector.load %arg9[%c1_145, %c0_146, %c0_147] : memref<2x1x32xf32, #tpu.memory_space<vmem>>, vector<1x1x32xf32>
    %326 = vector.shape_cast %325 : vector<1x1x32xf32> to vector<1x32xf32>
    %c1_148 = arith.constant 1 : index
    %c0_149 = arith.constant 0 : index
    %c0_150 = arith.constant 0 : index
    %327 = vector.load %arg10[%c1_148, %c0_149, %c0_150] : memref<2x1x32xf32, #tpu.memory_space<vmem>>, vector<1x1x32xf32>
    %328 = vector.shape_cast %327 : vector<1x1x32xf32> to vector<1x32xf32>
    %cst_151 = arith.constant dense<0.000000e+00> : vector<8xf32>
    %329 = vector.multi_reduction <add>, %324, %cst_151 [1] : vector<8x32xf32> to vector<8xf32>
    %330 = vector.shape_cast %329 : vector<8xf32> to vector<8x1xf32>
    %cst_152 = arith.constant 3.200000e+01 : f32
    %331 = vector.broadcast %cst_152 : f32 to vector<8x1xf32>
    %332 = arith.divf %330, %331 : vector<8x1xf32>
    %333 = vector.broadcast %332 : vector<8x1xf32> to vector<8x32xf32>
    %334 = arith.subf %324, %333 : vector<8x32xf32>
    %335 = arith.mulf %334, %334 : vector<8x32xf32>
    %cst_153 = arith.constant dense<0.000000e+00> : vector<8xf32>
    %336 = vector.multi_reduction <add>, %335, %cst_153 [1] : vector<8x32xf32> to vector<8xf32>
    %337 = vector.shape_cast %336 : vector<8xf32> to vector<8x1xf32>
    %cst_154 = arith.constant 3.200000e+01 : f32
    %338 = vector.broadcast %cst_154 : f32 to vector<8x1xf32>
    %339 = arith.divf %337, %338 : vector<8x1xf32>
    %340 = vector.broadcast %332 : vector<8x1xf32> to vector<8x32xf32>
    %341 = arith.subf %324, %340 : vector<8x32xf32>
    %cst_155 = arith.constant 9.99999974E-6 : f32
    %342 = vector.broadcast %cst_155 : f32 to vector<8x1xf32>
    %343 = arith.addf %339, %342 : vector<8x1xf32>
    %344 = math.rsqrt %343 : vector<8x1xf32>
    %345 = vector.broadcast %344 : vector<8x1xf32> to vector<8x32xf32>
    %346 = arith.mulf %341, %345 : vector<8x32xf32>
    %347 = vector.broadcast %326 : vector<1x32xf32> to vector<8x32xf32>
    %348 = arith.mulf %346, %347 : vector<8x32xf32>
    %349 = vector.broadcast %328 : vector<1x32xf32> to vector<8x32xf32>
    %350 = arith.addf %348, %349 : vector<8x32xf32>
    %351 = arith.truncf %350 : vector<8x32xf32> to vector<8x32xbf16>
    %c1_156 = arith.constant 1 : index
    %c0_157 = arith.constant 0 : index
    %c0_158 = arith.constant 0 : index
    %352 = vector.load %arg11[%c1_156, %c0_157, %c0_158] : memref<2x32x128xbf16, #tpu.memory_space<vmem>>, vector<1x32x128xbf16>
    %353 = vector.shape_cast %352 : vector<1x32x128xbf16> to vector<32x128xbf16>
    %cst_159 = arith.constant dense<0.000000e+00> : vector<8x128xf32>
    %354 = tpu.matmul %351, %353, %cst_159 {dimension_numbers = #tpu.dot_dimension_numbers<[1], [0], [0], [1], [0, 0, 1, 1], [], []>} : vector<8x32xbf16>, vector<32x128xbf16>, vector<8x128xf32> -> vector<8x128xf32>
    %c1_160 = arith.constant 1 : index
    %c0_161 = arith.constant 0 : index
    %c0_162 = arith.constant 0 : index
    %355 = vector.load %arg12[%c1_160, %c0_161, %c0_162] : memref<2x1x128xf32, #tpu.memory_space<vmem>>, vector<1x1x128xf32>
    %356 = vector.shape_cast %355 : vector<1x1x128xf32> to vector<1x128xf32>
    %357 = vector.broadcast %356 : vector<1x128xf32> to vector<8x128xf32>
    %358 = arith.addf %354, %357 : vector<8x128xf32>
    %cst_163 = arith.constant 1.702000e+00 : f32
    %359 = vector.broadcast %cst_163 : f32 to vector<8x128xf32>
    %360 = arith.mulf %359, %358 : vector<8x128xf32>
    %361 = arith.negf %360 : vector<8x128xf32>
    %362 = math.exp %361 : vector<8x128xf32>
    %cst_164 = arith.constant 1.000000e+00 : f32
    %363 = vector.broadcast %cst_164 : f32 to vector<8x128xf32>
    %364 = arith.addf %363, %362 : vector<8x128xf32>
    %365 = arith.divf %363, %364 : vector<8x128xf32>
    %366 = arith.mulf %358, %365 : vector<8x128xf32>
    %367 = arith.truncf %366 : vector<8x128xf32> to vector<8x128xbf16>
    %c1_165 = arith.constant 1 : index
    %c0_166 = arith.constant 0 : index
    %c0_167 = arith.constant 0 : index
    %368 = vector.load %arg13[%c1_165, %c0_166, %c0_167] : memref<2x128x32xbf16, #tpu.memory_space<vmem>>, vector<1x128x32xbf16>
    %369 = vector.shape_cast %368 : vector<1x128x32xbf16> to vector<128x32xbf16>
    %cst_168 = arith.constant dense<0.000000e+00> : vector<8x32xf32>
    %370 = tpu.matmul %367, %369, %cst_168 {dimension_numbers = #tpu.dot_dimension_numbers<[1], [0], [0], [1], [0, 0, 1, 1], [], []>} : vector<8x128xbf16>, vector<128x32xbf16>, vector<8x32xf32> -> vector<8x32xf32>
    %371 = arith.addf %324, %370 : vector<8x32xf32>
    %c1_169 = arith.constant 1 : index
    %c0_170 = arith.constant 0 : index
    %c0_171 = arith.constant 0 : index
    %372 = vector.load %arg14[%c1_169, %c0_170, %c0_171] : memref<2x1x32xf32, #tpu.memory_space<vmem>>, vector<1x1x32xf32>
    %373 = vector.shape_cast %372 : vector<1x1x32xf32> to vector<1x32xf32>
    %374 = vector.broadcast %373 : vector<1x32xf32> to vector<8x32xf32>
    %375 = arith.addf %371, %374 : vector<8x32xf32>
    %376 = arith.index_cast %arg0 : i32 to index
    %377 = memref.load %arg1[%376] : memref<2xi32, #tpu.memory_space<smem>>
    %378 = tpu.iota {dimensions = array<i32: 1>} : vector<1x8xi32>
    %379 = vector.broadcast %377 : i32 to vector<1x8xi32>
    %380 = arith.cmpi eq, %378, %379 : vector<1x8xi32>
    %381 = arith.extui %380 : vector<1x8xi1> to vector<1x8xi32>
    %382 = arith.sitofp %381 : vector<1x8xi32> to vector<1x8xf32>
    %cst_172 = arith.constant dense<0.000000e+00> : vector<1x32xf32>
    %383 = tpu.matmul %382, %375, %cst_172 {dimension_numbers = #tpu.dot_dimension_numbers<[1], [0], [0], [1], [0, 0, 1, 1], [], []>} : vector<1x8xf32>, vector<8x32xf32>, vector<1x32xf32> -> vector<1x32xf32>
    %c0_173 = arith.constant 0 : index
    %c0_174 = arith.constant 0 : index
    %384 = vector.load %arg15[%c0_173, %c0_174] : memref<1x32xf32, #tpu.memory_space<vmem>>, vector<1x32xf32>
    %c0_175 = arith.constant 0 : index
    %c0_176 = arith.constant 0 : index
    %385 = vector.load %arg16[%c0_175, %c0_176] : memref<1x32xf32, #tpu.memory_space<vmem>>, vector<1x32xf32>
    %cst_177 = arith.constant dense<0.000000e+00> : vector<1xf32>
    %386 = vector.multi_reduction <add>, %383, %cst_177 [1] : vector<1x32xf32> to vector<1xf32>
    %387 = vector.shape_cast %386 : vector<1xf32> to vector<1x1xf32>
    %cst_178 = arith.constant 3.200000e+01 : f32
    %388 = vector.broadcast %cst_178 : f32 to vector<1x1xf32>
    %389 = arith.divf %387, %388 : vector<1x1xf32>
    %390 = vector.broadcast %389 : vector<1x1xf32> to vector<1x32xf32>
    %391 = arith.subf %383, %390 : vector<1x32xf32>
    %392 = arith.mulf %391, %391 : vector<1x32xf32>
    %cst_179 = arith.constant dense<0.000000e+00> : vector<1xf32>
    %393 = vector.multi_reduction <add>, %392, %cst_179 [1] : vector<1x32xf32> to vector<1xf32>
    %394 = vector.shape_cast %393 : vector<1xf32> to vector<1x1xf32>
    %cst_180 = arith.constant 3.200000e+01 : f32
    %395 = vector.broadcast %cst_180 : f32 to vector<1x1xf32>
    %396 = arith.divf %394, %395 : vector<1x1xf32>
    %397 = vector.broadcast %389 : vector<1x1xf32> to vector<1x32xf32>
    %398 = arith.subf %383, %397 : vector<1x32xf32>
    %cst_181 = arith.constant 9.99999974E-6 : f32
    %399 = vector.broadcast %cst_181 : f32 to vector<1x1xf32>
    %400 = arith.addf %396, %399 : vector<1x1xf32>
    %401 = math.rsqrt %400 : vector<1x1xf32>
    %402 = vector.broadcast %401 : vector<1x1xf32> to vector<1x32xf32>
    %403 = arith.mulf %398, %402 : vector<1x32xf32>
    %404 = arith.mulf %403, %384 : vector<1x32xf32>
    %405 = arith.addf %404, %385 : vector<1x32xf32>
    %406 = arith.truncf %405 : vector<1x32xf32> to vector<1x32xbf16>
    %c0_182 = arith.constant 0 : index
    %c0_183 = arith.constant 0 : index
    %407 = vector.load %arg17[%c0_182, %c0_183] : memref<32x16xbf16, #tpu.memory_space<vmem>>, vector<32x16xbf16>
    %cst_184 = arith.constant dense<0.000000e+00> : vector<1x16xf32>
    %408 = tpu.matmul %406, %407, %cst_184 {dimension_numbers = #tpu.dot_dimension_numbers<[1], [0], [0], [1], [0, 0, 1, 1], [], []>} : vector<1x32xbf16>, vector<32x16xbf16>, vector<1x16xf32> -> vector<1x16xf32>
    %c0_185 = arith.constant 0 : index
    %c0_186 = arith.constant 0 : index
    %c0_187 = arith.constant 0 : index
    %409 = vector.load %arg18[%c0_185, %c0_186, %c0_187] : memref<1x1x16xf32, #tpu.memory_space<vmem>>, vector<1x1x16xf32>
    %410 = vector.shape_cast %409 : vector<1x1x16xf32> to vector<1x16xf32>
    %411 = vector.shape_cast %408 : vector<1x16xf32> to vector<1x1x16xf32>
    tpu.vector_store %arg18[%c0_185, %c0_186, %c0_187], %411 {strides = array<i32>} : memref<1x1x16xf32, #tpu.memory_space<vmem>>, vector<1x1x16xf32>,
    return
  }
  func.func @transform_0(%arg0: i32, %arg1: memref<2xi32, #tpu.memory_space<smem>>) -> (i32, i32, i32) {
    %c0_i32 = arith.constant 0 : i32
    %c0_i32_0 = arith.constant 0 : i32
    %c0_i32_1 = arith.constant 0 : i32
    return %arg0, %c0_i32, %c0_i32_0 : i32, i32, i32
  }
  func.func @transform_1(%arg0: i32, %arg1: memref<2xi32, #tpu.memory_space<smem>>) -> (i32, i32, i32) {
    %c0_i32 = arith.constant 0 : i32
    %c0_i32_0 = arith.constant 0 : i32
    %c0_i32_1 = arith.constant 0 : i32
    %c0_i32_2 = arith.constant 0 : i32
    return %c0_i32, %c0_i32_0, %c0_i32_1 : i32, i32, i32
  }
  func.func @transform_2(%arg0: i32, %arg1: memref<2xi32, #tpu.memory_space<smem>>) -> (i32, i32, i32) {
    %c0_i32 = arith.constant 0 : i32
    %c0_i32_0 = arith.constant 0 : i32
    %c0_i32_1 = arith.constant 0 : i32
    %c0_i32_2 = arith.constant 0 : i32
    return %c0_i32, %c0_i32_0, %c0_i32_1 : i32, i32, i32
  }
  func.func @transform_3(%arg0: i32, %arg1: memref<2xi32, #tpu.memory_space<smem>>) -> (i32, i32, i32) {
    %c0_i32 = arith.constant 0 : i32
    %c0_i32_0 = arith.constant 0 : i32
    %c0_i32_1 = arith.constant 0 : i32
    %c0_i32_2 = arith.constant 0 : i32
    return %c0_i32, %c0_i32_0, %c0_i32_1 : i32, i32, i32
  }
  func.func @transform_4(%arg0: i32, %arg1: memref<2xi32, #tpu.memory_space<smem>>) -> (i32, i32, i32) {
    %c0_i32 = arith.constant 0 : i32
    %c0_i32_0 = arith.constant 0 : i32
    %c0_i32_1 = arith.constant 0 : i32
    %c0_i32_2 = arith.constant 0 : i32
    return %c0_i32, %c0_i32_0, %c0_i32_1 : i32, i32, i32
  }
  func.func @transform_5(%arg0: i32, %arg1: memref<2xi32, #tpu.memory_space<smem>>) -> (i32, i32, i32, i32) {
    %c0_i32 = arith.constant 0 : i32
    %c0_i32_0 = arith.constant 0 : i32
    %c0_i32_1 = arith.constant 0 : i32
    %c0_i32_2 = arith.constant 0 : i32
    %c0_i32_3 = arith.constant 0 : i32
    return %c0_i32, %c0_i32_0, %c0_i32_1, %c0_i32_2 : i32, i32, i32, i32
  }
  func.func @transform_6(%arg0: i32, %arg1: memref<2xi32, #tpu.memory_space<smem>>) -> (i32, i32, i32) {
    %c0_i32 = arith.constant 0 : i32
    %c0_i32_0 = arith.constant 0 : i32
    %c0_i32_1 = arith.constant 0 : i32
    %c0_i32_2 = arith.constant 0 : i32
    return %c0_i32, %c0_i32_0, %c0_i32_1 : i32, i32, i32
  }
  func.func @transform_7(%arg0: i32, %arg1: memref<2xi32, #tpu.memory_space<smem>>) -> (i32, i32, i32) {
    %c0_i32 = arith.constant 0 : i32
    %c0_i32_0 = arith.constant 0 : i32
    %c0_i32_1 = arith.constant 0 : i32
    %c0_i32_2 = arith.constant 0 : i32
    return %c0_i32, %c0_i32_0, %c0_i32_1 : i32, i32, i32
  }
  func.func @transform_8(%arg0: i32, %arg1: memref<2xi32, #tpu.memory_space<smem>>) -> (i32, i32, i32) {
    %c0_i32 = arith.constant 0 : i32
    %c0_i32_0 = arith.constant 0 : i32
    %c0_i32_1 = arith.constant 0 : i32
    %c0_i32_2 = arith.constant 0 : i32
    return %c0_i32, %c0_i32_0, %c0_i32_1 : i32, i32, i32
  }
  func.func @transform_9(%arg0: i32, %arg1: memref<2xi32, #tpu.memory_space<smem>>) -> (i32, i32, i32) {
    %c0_i32 = arith.constant 0 : i32
    %c0_i32_0 = arith.constant 0 : i32
    %c0_i32_1 = arith.constant 0 : i32
    %c0_i32_2 = arith.constant 0 : i32
    return %c0_i32, %c0_i32_0, %c0_i32_1 : i32, i32, i32
  }
  func.func @transform_10(%arg0: i32, %arg1: memref<2xi32, #tpu.memory_space<smem>>) -> (i32, i32, i32) {
    %c0_i32 = arith.constant 0 : i32
    %c0_i32_0 = arith.constant 0 : i32
    %c0_i32_1 = arith.constant 0 : i32
    %c0_i32_2 = arith.constant 0 : i32
    return %c0_i32, %c0_i32_0, %c0_i32_1 : i32, i32, i32
  }
  func.func @transform_11(%arg0: i32, %arg1: memref<2xi32, #tpu.memory_space<smem>>) -> (i32, i32, i32) {
    %c0_i32 = arith.constant 0 : i32
    %c0_i32_0 = arith.constant 0 : i32
    %c0_i32_1 = arith.constant 0 : i32
    %c0_i32_2 = arith.constant 0 : i32
    return %c0_i32, %c0_i32_0, %c0_i32_1 : i32, i32, i32
  }
  func.func @transform_12(%arg0: i32, %arg1: memref<2xi32, #tpu.memory_space<smem>>) -> (i32, i32, i32) {
    %c0_i32 = arith.constant 0 : i32
    %c0_i32_0 = arith.constant 0 : i32
    %c0_i32_1 = arith.constant 0 : i32
    %c0_i32_2 = arith.constant 0 : i32
    return %c0_i32, %c0_i32_0, %c0_i32_1 : i32, i32, i32
  }
  func.func @transform_13(%arg0: i32, %arg1: memref<2xi32, #tpu.memory_space<smem>>) -> (i32, i32) {
    %c0_i32 = arith.constant 0 : i32
    %c0_i32_0 = arith.constant 0 : i32
    %c0_i32_1 = arith.constant 0 : i32
    return %c0_i32, %c0_i32_0 : i32, i32
  }
  func.func @transform_14(%arg0: i32, %arg1: memref<2xi32, #tpu.memory_space<smem>>) -> (i32, i32) {
    %c0_i32 = arith.constant 0 : i32
    %c0_i32_0 = arith.constant 0 : i32
    %c0_i32_1 = arith.constant 0 : i32
    return %c0_i32, %c0_i32_0 : i32, i32
  }
  func.func @transform_15(%arg0: i32, %arg1: memref<2xi32, #tpu.memory_space<smem>>) -> (i32, i32) {
    %c0_i32 = arith.constant 0 : i32
    %c0_i32_0 = arith.constant 0 : i32
    %c0_i32_1 = arith.constant 0 : i32
    return %c0_i32, %c0_i32_0 : i32, i32
  }
  func.func @transform_16(%arg0: i32, %arg1: memref<2xi32, #tpu.memory_space<smem>>) -> (i32, i32, i32) {
    %c0_i32 = arith.constant 0 : i32
    %c0_i32_0 = arith.constant 0 : i32
    %c0_i32_1 = arith.constant 0 : i32
    return %arg0, %c0_i32, %c0_i32_0 : i32, i32, i32
  }
}

</mosaic_0001>

<llo_original>
// kernel: encode_text.1
$region0: #{encode_text.1}
  #allocation0 [shape = 'u32[]', space=smem, size = 0x4, offset = 0x4, fixed_abs, tag = 'smem constant byte address 0x4 - core index']
  #allocation1 [shape = 'u32[144,128]{1,0:T(1,128)}', space=vmem, size = 0x12000, scoped, tag = 'internal scratch']
  #allocation2 [shape = 's32[1]{0}', space=sflag, size = 0x4, scoped, tag = 'scoped memory for encode_text.1']
  #allocation3 [shape = 'u8[512]{0}', space=smem, size = 0x200, scoped, tag = 'prefetched SMEM operand 0']
  %s0 = inlined_call_operand.vmem [shape: s32[2], index: 0, kind: input, shape index: {}]
  %s1 = inlined_call_operand.vmem [shape: f32[2,8,32], index: 1, kind: input, shape index: {}]
  %s2 = inlined_call_operand.vmem [shape: f32[2,1,32], index: 2, kind: input, shape index: {}]
  %s3 = inlined_call_operand.vmem [shape: f32[2,1,32], index: 3, kind: input, shape index: {}]
  %s4 = inlined_call_operand.vmem [shape: bf16[2,32,96], index: 4, kind: input, shape index: {}]
  %s5 = inlined_call_operand.vmem [shape: f32[2,1,96], index: 5, kind: input, shape index: {}]
  %s6 = inlined_call_operand.vmem [shape: bf16[2,4,8,32], index: 6, kind: input, shape index: {}]
  %s7 = inlined_call_operand.vmem [shape: f32[2,1,32], index: 7, kind: input, shape index: {}]
  %s8 = inlined_call_operand.vmem [shape: f32[2,1,32], index: 8, kind: input, shape index: {}]
  %s9 = inlined_call_operand.vmem [shape: f32[2,1,32], index: 9, kind: input, shape index: {}]
  %s10 = inlined_call_operand.vmem [shape: bf16[2,32,128], index: 10, kind: input, shape index: {}]
  %s11 = inlined_call_operand.vmem [shape: f32[2,1,128], index: 11, kind: input, shape index: {}]
  %s12 = inlined_call_operand.vmem [shape: bf16[2,128,32], index: 12, kind: input, shape index: {}]
  %s13 = inlined_call_operand.vmem [shape: f32[2,1,32], index: 13, kind: input, shape index: {}]
  %s14 = inlined_call_operand.vmem [shape: f32[1,32], index: 14, kind: input, shape index: {}]
  %s15 = inlined_call_operand.vmem [shape: f32[1,32], index: 15, kind: input, shape index: {}]
  %s16 = inlined_call_operand.vmem [shape: bf16[32,16], index: 16, kind: input, shape index: {}]
  %s17 = inlined_call_operand.hbm [shape: f32[2,1,16], index: 17, kind: output, shape index: {}]
  %s18 = sld [smem:[#allocation0]]
  $region97: #{encode_text.1} parent=0
    _
  %s20 = ssub.s32 1, %s18
  %s21 = scalar_select 0, %s20, %s18
  %s22 = sshll.u32 %s0, 4
  %s23 = int_to_ptr.vmem [resolvable:$true] %s22
  %25 = dma.vmem_to_smem %s23, 16, [#allocation3], [#allocation2]
  %26 = dma.done [#allocation2], 16
  %27 = sfence
  $region1: #{encode_text.1} parent=0
    #allocation4 [shape = 'u8[1024]{0}', space=vmem, size = 0x400, scoped, tag = 'output window, operand 0']
    #allocation5 [shape = 's32[2]{0}', space=sflag, size = 0x8, scoped, tag = 'scoped memory for encode_text.1']
    %28 = vsyncpa [#allocation5], 0
    %s29 = scalar_lea.sflag [#allocation5], 1
    %30 = vsyncpa %s29, 0
    loop: start=0, step=1, limit=4
    $region2: #{encode_text.1} parent=1 // loop_pre_header
      _
    $region3: #{encode_text.1} parent=1 // loop_header
      %s32 = sphi 0, %s36
      %p33 = scmp.ge.s32.totalorder %s32, 4
      %s42 = sphi 0, %s44
      %s45 = sphi 0, %s42
      %s46 = sphi 0, %s45
      %s62 = sphi 0, %s46
      %s66 = sphi 0, %s66
      %s68 = sphi 0, %s66
      %s69 = sphi 0, %s68
      %s83 = sphi 0, %s69
      %s87 = sphi 0, %s87
      %s89 = sphi 0, %s87
      %s90 = sphi 0, %s89
      %s104 = sphi 0, %s90
      %s108 = sphi 0, %s108
      %s110 = sphi 0, %s108
      %s111 = sphi 0, %s110
      %s125 = sphi 0, %s111
      %s129 = sphi 0, %s129
      %s131 = sphi 0, %s129
      %s132 = sphi 0, %s131
      %s146 = sphi 0, %s132
      %s150 = sphi 0, %s150
      %s152 = sphi 0, %s150
      %s153 = sphi 0, %s152
      %s167 = sphi 0, %s153
      %s171 = sphi 0, %s171
      %s173 = sphi 0, %s171
      %s174 = sphi 0, %s173
      %s188 = sphi 0, %s174
      %s192 = sphi 0, %s192
      %s194 = sphi 0, %s192
      %s195 = sphi 0, %s194
      %s209 = sphi 0, %s195
      %s213 = sphi 0, %s213
      %s215 = sphi 0, %s213
      %s216 = sphi 0, %s215
      %s230 = sphi 0, %s216
      %s234 = sphi 0, %s234
      %s236 = sphi 0, %s234
      %s237 = sphi 0, %s236
      %s251 = sphi 0, %s237
      %s255 = sphi 0, %s255
      %s257 = sphi 0, %s255
      %s258 = sphi 0, %s257
      %s272 = sphi 0, %s258
      %s276 = sphi 0, %s276
      %s278 = sphi 0, %s276
      %s279 = sphi 0, %s278
      %s293 = sphi 0, %s279
      %s297 = sphi 0, %s297
      %s299 = sphi 0, %s297
      %s300 = sphi 0, %s299
      %s314 = sphi 0, %s300
      %s318 = sphi 0, %s318
      %s320 = sphi 0, %s318
      %s321 = sphi 0, %s320
      %s335 = sphi 0, %s321
      %s339 = sphi 0, %s339
      %s341 = sphi 0, %s339
      %s342 = sphi 0, %s341
      %s356 = sphi 0, %s342
      %s360 = sphi 0, %s360
      %s362 = sphi 0, %s360
      %s363 = sphi 0, %s362
      %s377 = sphi 0, %s363
      %s383 = sphi 0, %s385
      %s386 = sphi 0, %s383
      %s387 = sphi 0, %s386
      %s403 = sphi 0, %s387
    $region4: #{encode_text.1} parent=1 // loop_header_branch
      %35 = sbr.rel (%p33) target = $region8
    $region5: #{encode_text.1} parent=1 // loop_body
      %s37 = ssub.s32 %s32, 1
      %s38 = ssub.s32 %s32, 2
      %s39 = sadd.s32 %s32, 1
      %s40 = ssub.s32 %s32, %s39
      %p41 = scmp.eq.s32.totalorder %s40, 0
      %s43 = sadd.s32 %s42, 1
      %s44 = scalar_select %p41, %s42, %s43
      %p47 = pneg %p41
      %p48 = scmp.eq.s32.totalorder %s32, 1
      %p49 = por %p47, %p48
      %p50 = scmp.ne.s32.totalorder %s42, %s45
      %p51 = scmp.eq.s32.totalorder %s32, 0
      %p52 = por %p50, %p51
      %p53 = scmp.ne.s32.totalorder %s42, %s45
      %p54 = scmp.eq.s32.totalorder %s37, 1
      %p55 = por %p53, %p54
      %p56 = scmp.ne.s32.totalorder %s45, %s46
      %p57 = scmp.eq.s32.totalorder %s37, 0
      %p58 = por %p56, %p57
      %p59 = scmp.ne.s32.totalorder %s45, %s46
      %p60 = scmp.eq.s32.totalorder %s38, 1
      %p61 = por %p59, %p60
      %p63 = scmp.ne.s32.totalorder %s46, %s62
      %p64 = scmp.eq.s32.totalorder %s38, 0
      %p65 = por %p63, %p64
      %s67 = sadd.s32 %s66, 1
      %p70 = scmp.eq.s32.totalorder %s32, 1
      %p71 = scmp.ne.s32.totalorder %s66, %s68
      %p72 = scmp.eq.s32.totalorder %s32, 0
      %p73 = por %p71, %p72
      %p74 = scmp.ne.s32.totalorder %s66, %s68
      %p75 = scmp.eq.s32.totalorder %s37, 1
      %p76 = por %p74, %p75
      %p77 = scmp.ne.s32.totalorder %s68, %s69
      %p78 = scmp.eq.s32.totalorder %s37, 0
      %p79 = por %p77, %p78
      %p80 = scmp.ne.s32.totalorder %s68, %s69
      %p81 = scmp.eq.s32.totalorder %s38, 1
      %p82 = por %p80, %p81
      %p84 = scmp.ne.s32.totalorder %s69, %s83
      %p85 = scmp.eq.s32.totalorder %s38, 0
      %p86 = por %p84, %p85
      %s88 = sadd.s32 %s87, 1
      %p91 = scmp.eq.s32.totalorder %s32, 1
      %p92 = scmp.ne.s32.totalorder %s87, %s89
      %p93 = scmp.eq.s32.totalorder %s32, 0
      %p94 = por %p92, %p93
      %p95 = scmp.ne.s32.totalorder %s87, %s89
      %p96 = scmp.eq.s32.totalorder %s37, 1
      %p97 = por %p95, %p96
      %p98 = scmp.ne.s32.totalorder %s89, %s90
      %p99 = scmp.eq.s32.totalorder %s37, 0
      %p100 = por %p98, %p99
      %p101 = scmp.ne.s32.totalorder %s89, %s90
      %p102 = scmp.eq.s32.totalorder %s38, 1
      %p103 = por %p101, %p102
      %p105 = scmp.ne.s32.totalorder %s90, %s104
      %p106 = scmp.eq.s32.totalorder %s38, 0
      %p107 = por %p105, %p106
      %s109 = sadd.s32 %s108, 1
      %p112 = scmp.eq.s32.totalorder %s32, 1
      %p113 = scmp.ne.s32.totalorder %s108, %s110
      %p114 = scmp.eq.s32.totalorder %s32, 0
      %p115 = por %p113, %p114
      %p116 = scmp.ne.s32.totalorder %s108, %s110
      %p117 = scmp.eq.s32.totalorder %s37, 1
      %p118 = por %p116, %p117
      %p119 = scmp.ne.s32.totalorder %s110, %s111
      %p120 = scmp.eq.s32.totalorder %s37, 0
      %p121 = por %p119, %p120
      %p122 = scmp.ne.s32.totalorder %s110, %s111
      %p123 = scmp.eq.s32.totalorder %s38, 1
      %p124 = por %p122, %p123
      %p126 = scmp.ne.s32.totalorder %s111, %s125
      %p127 = scmp.eq.s32.totalorder %s38, 0
      %p128 = por %p126, %p127
      %s130 = sadd.s32 %s129, 1
      %p133 = scmp.eq.s32.totalorder %s32, 1
      %p134 = scmp.ne.s32.totalorder %s129, %s131
      %p135 = scmp.eq.s32.totalorder %s32, 0
      %p136 = por %p134, %p135
      %p137 = scmp.ne.s32.totalorder %s129, %s131
      %p138 = scmp.eq.s32.totalorder %s37, 1
      %p139 = por %p137, %p138
      %p140 = scmp.ne.s32.totalorder %s131, %s132
      %p141 = scmp.eq.s32.totalorder %s37, 0
      %p142 = por %p140, %p141
      %p143 = scmp.ne.s32.totalorder %s131, %s132
      %p144 = scmp.eq.s32.totalorder %s38, 1
      %p145 = por %p143, %p144
      %p147 = scmp.ne.s32.totalorder %s132, %s146
      %p148 = scmp.eq.s32.totalorder %s38, 0
      %p149 = por %p147, %p148
      %s151 = sadd.s32 %s150, 1
      %p154 = scmp.eq.s32.totalorder %s32, 1
      %p155 = scmp.ne.s32.totalorder %s150, %s152
      %p156 = scmp.eq.s32.totalorder %s32, 0
      %p157 = por %p155, %p156
      %p158 = scmp.ne.s32.totalorder %s150, %s152
      %p159 = scmp.eq.s32.totalorder %s37, 1
      %p160 = por %p158, %p159
      %p161 = scmp.ne.s32.totalorder %s152, %s153
      %p162 = scmp.eq.s32.totalorder %s37, 0
      %p163 = por %p161, %p162
      %p164 = scmp.ne.s32.totalorder %s152, %s153
      %p165 = scmp.eq.s32.totalorder %s38, 1
      %p166 = por %p164, %p165
      %p168 = scmp.ne.s32.totalorder %s153, %s167
      %p169 = scmp.eq.s32.totalorder %s38, 0
      %p170 = por %p168, %p169
      %s172 = sadd.s32 %s171, 1
      %p175 = scmp.eq.s32.totalorder %s32, 1
      %p176 = scmp.ne.s32.totalorder %s171, %s173
      %p177 = scmp.eq.s32.totalorder %s32, 0
      %p178 = por %p176, %p177
      %p179 = scmp.ne.s32.totalorder %s171, %s173
      %p180 = scmp.eq.s32.totalorder %s37, 1
      %p181 = por %p179, %p180
      %p182 = scmp.ne.s32.totalorder %s173, %s174
      %p183 = scmp.eq.s32.totalorder %s37, 0
      %p184 = por %p182, %p183
      %p185 = scmp.ne.s32.totalorder %s173, %s174
      %p186 = scmp.eq.s32.totalorder %s38, 1
      %p187 = por %p185, %p186
      %p189 = scmp.ne.s32.totalorder %s174, %s188
      %p190 = scmp.eq.s32.totalorder %s38, 0
      %p191 = por %p189, %p190
      %s193 = sadd.s32 %s192, 1
      %p196 = scmp.eq.s32.totalorder %s32, 1
      %p197 = scmp.ne.s32.totalorder %s192, %s194
      %p198 = scmp.eq.s32.totalorder %s32, 0
      %p199 = por %p197, %p198
      %p200 = scmp.ne.s32.totalorder %s192, %s194
      %p201 = scmp.eq.s32.totalorder %s37, 1
      %p202 = por %p200, %p201
      %p203 = scmp.ne.s32.totalorder %s194, %s195
      %p204 = scmp.eq.s32.totalorder %s37, 0
      %p205 = por %p203, %p204
      %p206 = scmp.ne.s32.totalorder %s194, %s195
      %p207 = scmp.eq.s32.totalorder %s38, 1
      %p208 = por %p206, %p207
      %p210 = scmp.ne.s32.totalorder %s195, %s209
      %p211 = scmp.eq.s32.totalorder %s38, 0
      %p212 = por %p210, %p211
      %s214 = sadd.s32 %s213, 1
      %p217 = scmp.eq.s32.totalorder %s32, 1
      %p218 = scmp.ne.s32.totalorder %s213, %s215
      %p219 = scmp.eq.s32.totalorder %s32, 0
      %p220 = por %p218, %p219
      %p221 = scmp.ne.s32.totalorder %s213, %s215
      %p222 = scmp.eq.s32.totalorder %s37, 1
      %p223 = por %p221, %p222
      %p224 = scmp.ne.s32.totalorder %s215, %s216
      %p225 = scmp.eq.s32.totalorder %s37, 0
      %p226 = por %p224, %p225
      %p227 = scmp.ne.s32.totalorder %s215, %s216
      %p228 = scmp.eq.s32.totalorder %s38, 1
      %p229 = por %p227, %p228
      %p231 = scmp.ne.s32.totalorder %s216, %s230
      %p232 = scmp.eq.s32.totalorder %s38, 0
      %p233 = por %p231, %p232
      %s235 = sadd.s32 %s234, 1
      %p238 = scmp.eq.s32.totalorder %s32, 1
      %p239 = scmp.ne.s32.totalorder %s234, %s236
      %p240 = scmp.eq.s32.totalorder %s32, 0
      %p241 = por %p239, %p240
      %p242 = scmp.ne.s32.totalorder %s234, %s236
      %p243 = scmp.eq.s32.totalorder %s37, 1
      %p244 = por %p242, %p243
      %p245 = scmp.ne.s32.totalorder %s236, %s237
      %p246 = scmp.eq.s32.totalorder %s37, 0
      %p247 = por %p245, %p246
      %p248 = scmp.ne.s32.totalorder %s236, %s237
      %p249 = scmp.eq.s32.totalorder %s38, 1
      %p250 = por %p248, %p249
      %p252 = scmp.ne.s32.totalorder %s237, %s251
      %p253 = scmp.eq.s32.totalorder %s38, 0
      %p254 = por %p252, %p253
      %s256 = sadd.s32 %s255, 1
      %p259 = scmp.eq.s32.totalorder %s32, 1
      %p260 = scmp.ne.s32.totalorder %s255, %s257
      %p261 = scmp.eq.s32.totalorder %s32, 0
      %p262 = por %p260, %p261
      %p263 = scmp.ne.s32.totalorder %s255, %s257
      %p264 = scmp.eq.s32.totalorder %s37, 1
      %p265 = por %p263, %p264
      %p266 = scmp.ne.s32.totalorder %s257, %s258
      %p267 = scmp.eq.s32.totalorder %s37, 0
      %p268 = por %p266, %p267
      %p269 = scmp.ne.s32.totalorder %s257, %s258
      %p270 = scmp.eq.s32.totalorder %s38, 1
      %p271 = por %p269, %p270
      %p273 = scmp.ne.s32.totalorder %s258, %s272
      %p274 = scmp.eq.s32.totalorder %s38, 0
      %p275 = por %p273, %p274
      %s277 = sadd.s32 %s276, 1
      %p280 = scmp.eq.s32.totalorder %s32, 1
      %p281 = scmp.ne.s32.totalorder %s276, %s278
      %p282 = scmp.eq.s32.totalorder %s32, 0
      %p283 = por %p281, %p282
      %p284 = scmp.ne.s32.totalorder %s276, %s278
      %p285 = scmp.eq.s32.totalorder %s37, 1
      %p286 = por %p284, %p285
      %p287 = scmp.ne.s32.totalorder %s278, %s279
      %p288 = scmp.eq.s32.totalorder %s37, 0
      %p289 = por %p287, %p288
      %p290 = scmp.ne.s32.totalorder %s278, %s279
      %p291 = scmp.eq.s32.totalorder %s38, 1
      %p292 = por %p290, %p291
      %p294 = scmp.ne.s32.totalorder %s279, %s293
      %p295 = scmp.eq.s32.totalorder %s38, 0
      %p296 = por %p294, %p295
      %s298 = sadd.s32 %s297, 1
      %p301 = scmp.eq.s32.totalorder %s32, 1
      %p302 = scmp.ne.s32.totalorder %s297, %s299
      %p303 = scmp.eq.s32.totalorder %s32, 0
      %p304 = por %p302, %p303
      %p305 = scmp.ne.s32.totalorder %s297, %s299
      %p306 = scmp.eq.s32.totalorder %s37, 1
      %p307 = por %p305, %p306
      %p308 = scmp.ne.s32.totalorder %s299, %s300
      %p309 = scmp.eq.s32.totalorder %s37, 0
      %p310 = por %p308, %p309
      %p311 = scmp.ne.s32.totalorder %s299, %s300
      %p312 = scmp.eq.s32.totalorder %s38, 1
      %p313 = por %p311, %p312
      %p315 = scmp.ne.s32.totalorder %s300, %s314
      %p316 = scmp.eq.s32.totalorder %s38, 0
      %p317 = por %p315, %p316
      %s319 = sadd.s32 %s318, 1
      %p322 = scmp.eq.s32.totalorder %s32, 1
      %p323 = scmp.ne.s32.totalorder %s318, %s320
      %p324 = scmp.eq.s32.totalorder %s32, 0
      %p325 = por %p323, %p324
      %p326 = scmp.ne.s32.totalorder %s318, %s320
      %p327 = scmp.eq.s32.totalorder %s37, 1
      %p328 = por %p326, %p327
      %p329 = scmp.ne.s32.totalorder %s320, %s321
      %p330 = scmp.eq.s32.totalorder %s37, 0
      %p331 = por %p329, %p330
      %p332 = scmp.ne.s32.totalorder %s320, %s321
      %p333 = scmp.eq.s32.totalorder %s38, 1
      %p334 = por %p332, %p333
      %p336 = scmp.ne.s32.totalorder %s321, %s335
      %p337 = scmp.eq.s32.totalorder %s38, 0
      %p338 = por %p336, %p337
      %s340 = sadd.s32 %s339, 1
      %p343 = scmp.eq.s32.totalorder %s32, 1
      %p344 = scmp.ne.s32.totalorder %s339, %s341
      %p345 = scmp.eq.s32.totalorder %s32, 0
      %p346 = por %p344, %p345
      %p347 = scmp.ne.s32.totalorder %s339, %s341
      %p348 = scmp.eq.s32.totalorder %s37, 1
      %p349 = por %p347, %p348
      %p350 = scmp.ne.s32.totalorder %s341, %s342
      %p351 = scmp.eq.s32.totalorder %s37, 0
      %p352 = por %p350, %p351
      %p353 = scmp.ne.s32.totalorder %s341, %s342
      %p354 = scmp.eq.s32.totalorder %s38, 1
      %p355 = por %p353, %p354
      %p357 = scmp.ne.s32.totalorder %s342, %s356
      %p358 = scmp.eq.s32.totalorder %s38, 0
      %p359 = por %p357, %p358
      %s361 = sadd.s32 %s360, 1
      %p364 = scmp.eq.s32.totalorder %s32, 1
      %p365 = scmp.ne.s32.totalorder %s360, %s362
      %p366 = scmp.eq.s32.totalorder %s32, 0
      %p367 = por %p365, %p366
      %p368 = scmp.ne.s32.totalorder %s360, %s362
      %p369 = scmp.eq.s32.totalorder %s37, 1
      %p370 = por %p368, %p369
      %p371 = scmp.ne.s32.totalorder %s362, %s363
      %p372 = scmp.eq.s32.totalorder %s37, 0
      %p373 = por %p371, %p372
      %p374 = scmp.ne.s32.totalorder %s362, %s363
      %p375 = scmp.eq.s32.totalorder %s38, 1
      %p376 = por %p374, %p375
      %p378 = scmp.ne.s32.totalorder %s363, %s377
      %p379 = scmp.eq.s32.totalorder %s38, 0
      %p380 = por %p378, %p379
      %s381 = ssub.s32 %s32, %s39
      %p382 = scmp.eq.s32.totalorder %s381, 0
      %s384 = sadd.s32 %s383, 1
      %s385 = scalar_select %p382, %s383, %s384
      %p388 = pneg %p382
      %p389 = scmp.eq.s32.totalorder %s32, 1
      %p390 = por %p388, %p389
      %p391 = scmp.ne.s32.totalorder %s383, %s386
      %p392 = scmp.eq.s32.totalorder %s32, 0
      %p393 = por %p391, %p392
      %p394 = scmp.ne.s32.totalorder %s383, %s386
      %p395 = scmp.eq.s32.totalorder %s37, 1
      %p396 = por %p394, %p395
      %p397 = scmp.ne.s32.totalorder %s386, %s387
      %p398 = scmp.eq.s32.totalorder %s37, 0
      %p399 = por %p397, %p398
      %p400 = scmp.ne.s32.totalorder %s386, %s387
      %p401 = scmp.eq.s32.totalorder %s38, 1
      %p402 = por %p400, %p401
      %p404 = scmp.ne.s32.totalorder %s387, %s403
      %p405 = scmp.eq.s32.totalorder %s38, 0
      %p406 = por %p404, %p405
      %p407 = scmp.le.s32.totalorder 1, %s32
      %p408 = scmp.lt.s32.totalorder %s32, 3
      %p409 = pnand %p407, %p408
      %p410 = pneg %p409
      // Predicated region
      $region9: #{encode_text.1} parent=5 // pred_check
        _
      $region10: #{encode_text.1} parent=5 // pred_check_branch
        %412 = sbr.rel (%p409) target = $region12
      $region11: #{encode_text.1} parent=5 // pred_region
        %s413 = ssub.s32 %s32, 1
        // Predicated region
        $region13: #{encode_text.1} parent=11 // pred_check
          %p414 = pneg %p79
        $region14: #{encode_text.1} parent=11 // pred_check_branch
          %416 = sbr.rel (%p414) target = $region16
        $region15: #{encode_text.1} parent=11 // pred_region
          _
        $region16: #{encode_text.1} parent=11 // pred_fallthru
          _
        // Predicated region
        $region17: #{encode_text.1} parent=11 // pred_check
          %p417 = pneg %p100
        $region18: #{encode_text.1} parent=11 // pred_check_branch
          %419 = sbr.rel (%p417) target = $region20
        $region19: #{encode_text.1} parent=11 // pred_region
          _
        $region20: #{encode_text.1} parent=11 // pred_fallthru
          _
        // Predicated region
        $region21: #{encode_text.1} parent=11 // pred_check
          %p420 = pneg %p121
        $region22: #{encode_text.1} parent=11 // pred_check_branch
          %422 = sbr.rel (%p420) target = $region24
        $region23: #{encode_text.1} parent=11 // pred_region
          _
        $region24: #{encode_text.1} parent=11 // pred_fallthru
          _
        // Predicated region
        $region25: #{encode_text.1} parent=11 // pred_check
          %p423 = pneg %p142
        $region26: #{encode_text.1} parent=11 // pred_check_branch
          %425 = sbr.rel (%p423) target = $region28
        $region27: #{encode_text.1} parent=11 // pred_region
          _
        $region28: #{encode_text.1} parent=11 // pred_fallthru
          _
        // Predicated region
        $region29: #{encode_text.1} parent=11 // pred_check
          %p426 = pneg %p163
        $region30: #{encode_text.1} parent=11 // pred_check_branch
          %428 = sbr.rel (%p426) target = $region32
        $region31: #{encode_text.1} parent=11 // pred_region
          _
        $region32: #{encode_text.1} parent=11 // pred_fallthru
          _
        // Predicated region
        $region33: #{encode_text.1} parent=11 // pred_check
          %p429 = pneg %p184
        $region34: #{encode_text.1} parent=11 // pred_check_branch
          %431 = sbr.rel (%p429) target = $region36
        $region35: #{encode_text.1} parent=11 // pred_region
          _
        $region36: #{encode_text.1} parent=11 // pred_fallthru
          _
        // Predicated region
        $region37: #{encode_text.1} parent=11 // pred_check
          %p432 = pneg %p205
        $region38: #{encode_text.1} parent=11 // pred_check_branch
          %434 = sbr.rel (%p432) target = $region40
        $region39: #{encode_text.1} parent=11 // pred_region
          _
        $region40: #{encode_text.1} parent=11 // pred_fallthru
          _
        // Predicated region
        $region41: #{encode_text.1} parent=11 // pred_check
          %p435 = pneg %p226
        $region42: #{encode_text.1} parent=11 // pred_check_branch
          %437 = sbr.rel (%p435) target = $region44
        $region43: #{encode_text.1} parent=11 // pred_region
          _
        $region44: #{encode_text.1} parent=11 // pred_fallthru
          _
        // Predicated region
        $region45: #{encode_text.1} parent=11 // pred_check
          %p438 = pneg %p247
        $region46: #{encode_text.1} parent=11 // pred_check_branch
          %440 = sbr.rel (%p438) target = $region48
        $region47: #{encode_text.1} parent=11 // pred_region
          _
        $region48: #{encode_text.1} parent=11 // pred_fallthru
          _
        // Predicated region
        $region49: #{encode_text.1} parent=11 // pred_check
          %p441 = pneg %p268
        $region50: #{encode_text.1} parent=11 // pred_check_branch
          %443 = sbr.rel (%p441) target = $region52
        $region51: #{encode_text.1} parent=11 // pred_region
          _
        $region52: #{encode_text.1} parent=11 // pred_fallthru
          _
        // Predicated region
        $region53: #{encode_text.1} parent=11 // pred_check
          %p444 = pneg %p289
        $region54: #{encode_text.1} parent=11 // pred_check_branch
          %446 = sbr.rel (%p444) target = $region56
        $region55: #{encode_text.1} parent=11 // pred_region
          _
        $region56: #{encode_text.1} parent=11 // pred_fallthru
          _
        // Predicated region
        $region57: #{encode_text.1} parent=11 // pred_check
          %p447 = pneg %p310
        $region58: #{encode_text.1} parent=11 // pred_check_branch
          %449 = sbr.rel (%p447) target = $region60
        $region59: #{encode_text.1} parent=11 // pred_region
          _
        $region60: #{encode_text.1} parent=11 // pred_fallthru
          _
        // Predicated region
        $region61: #{encode_text.1} parent=11 // pred_check
          %p450 = pneg %p331
        $region62: #{encode_text.1} parent=11 // pred_check_branch
          %452 = sbr.rel (%p450) target = $region64
        $region63: #{encode_text.1} parent=11 // pred_region
          _
        $region64: #{encode_text.1} parent=11 // pred_fallthru
          _
        // Predicated region
        $region65: #{encode_text.1} parent=11 // pred_check
          %p453 = pneg %p352
        $region66: #{encode_text.1} parent=11 // pred_check_branch
          %455 = sbr.rel (%p453) target = $region68
        $region67: #{encode_text.1} parent=11 // pred_region
          _
        $region68: #{encode_text.1} parent=11 // pred_fallthru
          _
        // Predicated region
        $region69: #{encode_text.1} parent=11 // pred_check
          %p456 = pneg %p373
        $region70: #{encode_text.1} parent=11 // pred_check_branch
          %458 = sbr.rel (%p456) target = $region72
        $region71: #{encode_text.1} parent=11 // pred_region
          _
        $region72: #{encode_text.1} parent=11 // pred_fallthru
          _
      $region12: #{encode_text.1} parent=5 // pred_fallthru
        _
      %p459 = scmp.lt.s32.totalorder %s32, 2
      // Predicated region
      $region73: #{encode_text.1} parent=5 // pred_check
        %p460 = pneg %p459
      $region74: #{encode_text.1} parent=5 // pred_check_branch
        %462 = sbr.rel (%p460) target = $region76
      $region75: #{encode_text.1} parent=5 // pred_region
        // Predicated region
        $region77: #{encode_text.1} parent=75 // pred_check
          %p463 = pneg %p52
        $region78: #{encode_text.1} parent=75 // pred_check_branch
          %465 = sbr.rel (%p463) target = $region80
        $region79: #{encode_text.1} parent=75 // pred_region
          %p466 = scmp.lt.s32.totalorder %s32, 1
          %s467 = scalar_select %p466, %s32, 1
          %s468 = smul.addr %s467, 8
          %s469 = scalar_lea.vmem %s1, %s468
        $region80: #{encode_text.1} parent=75 // pred_fallthru
          _
      $region76: #{encode_text.1} parent=5 // pred_fallthru
        _
      %p470 = scmp.le.s32.totalorder 1, %s32
      %p471 = scmp.lt.s32.totalorder %s32, 3
      %p472 = pnand %p470, %p471
      %p473 = pneg %p472
      // Predicated region
      $region81: #{encode_text.1} parent=5 // pred_check
        _
      $region82: #{encode_text.1} parent=5 // pred_check_branch
        %475 = sbr.rel (%p472) target = $region84
      $region83: #{encode_text.1} parent=5 // pred_region
        %s476 = ssub.s32 %s32, 1
        %p477 = scmp.lt.s32.totalorder %s37, 1
        %s478 = scalar_select %p477, %s37, 1
        %s479 = smul.addr %s478, 8
        %s480 = scalar_lea.vmem %s1, %s479
        %p481 = pneg %p58
        %p482 = pneg %p55
        %p483 = pneg %p79
        %p484 = pneg %p76
        %p485 = pneg %p100
        %p486 = pneg %p97
        %p487 = pneg %p121
        %p488 = pneg %p118
        %p489 = pneg %p142
        %p490 = pneg %p139
        %p491 = pneg %p163
        %p492 = pneg %p160
        %p493 = pneg %p184
        %p494 = pneg %p181
        %p495 = pneg %p205
        %p496 = pneg %p202
        %p497 = pneg %p226
        %p498 = pneg %p223
        %p499 = pneg %p247
        %p500 = pneg %p244
        %p501 = pneg %p268
        %p502 = pneg %p265
        %p503 = pneg %p289
        %p504 = pneg %p286
        %p505 = pneg %p310
        %p506 = pneg %p307
        %p507 = pneg %p331
        %p508 = pneg %p328
        %p509 = pneg %p352
        %p510 = pneg %p349
        %p511 = pneg %p373
        %p512 = pneg %p370
        %p513 = pneg %p399
        %p514 = pneg %p396
        %s515 = sand.u32 %s386, 1
        %s516 = scalar_lea.sflag [#allocation5], %s515
        %s517 = sand.u32 %s386, 1
        %s518 = scalar_lea.vmem [#allocation4], %s517
        %p519 = scmp.lt.s32.totalorder %s37, 1
        %s520 = scalar_select %p519, %s37, 1
        %s521 = smul.addr %s520, 8
        %s522 = scalar_lea.vmem %s1, %s521
        %v524 = vld [vmem:[%s522] sm:$0xff]
        %v525 = vlaneseq
        %v526 = vshrl.u32 %v525, 7
        %v527 = vlaneseq
        %v528 = vand.u32 %v527, 127
        %vm529 = vcmp.le.s32.totalorder %v528, %v526
        %v530 = vsel %vm529, 0.0, -inf
        %v531 = vld [vmem:[%s2] sm:$0x1]
        %v532 = vld [vmem:[%s3] sm:$0x1]
        %vm533 = vcmask 261120
        %v534 = vsel %vm533, %v524, 0.0
        %535 = vadd.xlane.f32.xlu0 %v534
        %v536 = vpop.xlane.xlu0 %535
        %v537 = vrcp.pop 32.0
        %v538 = vmul.f32 %v536, %v537
        %v539 = vsub.f32 %v524, %v538
        %v540 = vmul.f32 %v539, %v539
        %v541 = vsel %vm533, %v540, 0.0
        %542 = vadd.xlane.f32.xlu0 %v541
        %v543 = vpop.xlane.xlu0 %542
        %v544 = vmul.f32 %v543, %v537
        %v545 = vadd.f32 %v544, 1e-05
        %v546 = vrsqrt.pop %v545
        %v547 = vmul.f32 %v539, %v546
        %v549 = vlaneseq
        %v550 = vshrl.u32 %v549, 7
        %v551 = vsub.s32 0, %v550
        %v552 = vrot.slane %v531, %v551
        %v554 = vmul.f32 %v547, %v552
        %v556 = vlaneseq
        %v557 = vshrl.u32 %v556, 7
        %v558 = vsub.s32 0, %v557
        %v559 = vrot.slane %v532, %v558
        %v561 = vadd.f32 %v554, %v559
        %v562 = vpack.c.bf16 %v561, %v561
        %v563 = vld [vmem:[%s4] sm:$0xf]
        %v564 = vld [vmem:[%s4 + $0x4] sm:$0xf]
        %v565 = vld [vmem:[%s4 + $0x8] sm:$0xf]
        %v566 = vld [vmem:[%s4 + $0xc] sm:$0xf]
        %v567 = vld [vmem:[%s5] sm:$0x1]
        %v569 = vlaneseq
        %v570 = vshrl.u32 %v569, 7
        %v571 = vsub.s32 0, %v570
        %v572 = vrot.slane %v567, %v571
        %v578 = vunpack.c.l.b16 %v563
        %v579 = vunpack.c.l.b16 %v564
        %v580 = vunpack.c.l.b16 %v565
        %v581 = vunpack.c.l.b16 %v566
        %v582 = vpack.c.b16 %v579, %v578
        %v583 = vpack.c.b16 %v581, %v580
        %v587 = vsel %vm533, %v562, 0
        %589 = vmatprep.subr.bf16.mxu0 0
        %590 = vmatpush1.bf16.msra.mxu0 0
        %591 = vmatprep.subr.bf16.mxu0 0
        %592 = vmatpush1.bf16.msra.mxu0 0
        %593 = vmatprep.subr.bf16.mxu0 0
        %594 = vmatpush1.bf16.msra.mxu0 0
        %595 = vmatprep.subr.bf16.mxu0 0
        %596 = vmatpush1.bf16.msra.mxu0 0
        %597 = vmatprep.subr.bf16.mxu0 0
        %598 = vmatpush1.bf16.msra.mxu0 0
        %599 = vmatprep.subr.bf16.mxu0 0
        %600 = vmatpush1.bf16.msra.mxu0 0
        %601 = vmatprep.subr.bf16.mxu0 0
        %602 = vmatpush1.bf16.msra.mxu0 %v583
        %603 = vmatprep.subr.bf16.mxu0 0
        %604 = vmatpush1.bf16.msra.mxu0 %v582
        %605 = vmatprep.subr.bf16.mxu0 0
        %606 = vmatpush2.bf16.msra.mxu0 0
        %607 = vmatprep.subr.bf16.mxu0 0
        %608 = vmatpush2.bf16.msra.mxu0 0
        %609 = vmatprep.subr.bf16.mxu0 0
        %610 = vmatpush2.bf16.msra.mxu0 0
        %611 = vmatprep.subr.bf16.mxu0 0
        %612 = vmatpush2.bf16.msra.mxu0 0
        %613 = vmatprep.subr.bf16.mxu0 0
        %614 = vmatpush2.bf16.msra.mxu0 0
        %615 = vmatprep.subr.bf16.mxu0 0
        %616 = vmatpush2.bf16.msra.mxu0 0
        %617 = vmatprep.subr.bf16.mxu0 0
        %618 = vmatpush2.bf16.msra.mxu0 0
        %619 = vmatprep.subr.bf16.mxu0 0
        %620 = vmatpush2.bf16.msra.mxu0 0
        %621 = vmatprep.mubr.bf16.mxu0 0
        %622 = vmatmul.mubr.bf16.gmra.mxu0 %v587
        %v623 = vpop.f32.mrf.mxu0
        %v624 = vadd.f32 %v572, %v623
        %v625 = vpop.f32.mrf.mxu0
        %v626 = vpop.f32.mrf.mxu0
        %v627 = vpop.f32.mrf.mxu0
        %628 = vdwg.mxu0
        %v629 = vmul.f32 %v624, 0.35355338
        %631 = vrot.lane.b32.xlu0 %v624, 96
        %v632 = vpop.permute.xlu0 %631
        %vm633 = vcmask 64512
        %v635 = vsel %vm633, %v629, 0
        %v637 = vsel %vm633, %v632, 0
        %639 = vmatprep.subr.mxu0 0.0
        %640 = vmatpush1.xpose.msra.mxu0 0.0
        %641 = vmatprep.subr.mxu0 0.0
        %642 = vmatpush1.xpose.msra.mxu0 0.0
        %643 = vmatprep.subr.mxu0 0.0
        %644 = vmatpush1.xpose.msra.mxu0 0.0
        %645 = vmatprep.subr.mxu0 0.0
        %646 = vmatpush1.xpose.msra.mxu0 0.0
        %647 = vmatprep.subr.mxu0 0.0
        %648 = vmatpush1.xpose.msra.mxu0 0.0
        %649 = vmatprep.subr.mxu0 0.0
        %650 = vmatpush1.xpose.msra.mxu0 0.0
        %651 = vmatprep.subr.mxu0 0.0
        %652 = vmatpush1.xpose.msra.mxu0 0.0
        %653 = vmatprep.subr.mxu0 0.0
        %654 = vmatpush1.xpose.msra.mxu0 0.0
        %655 = vmatprep.subr.mxu0 0.0
        %656 = vmatpush1.xpose.msra.mxu0 0.0
        %657 = vmatprep.subr.mxu0 0.0
        %658 = vmatpush1.xpose.msra.mxu0 0.0
        %659 = vmatprep.subr.mxu0 0.0
        %660 = vmatpush1.xpose.msra.mxu0 0.0
        %661 = vmatprep.subr.mxu0 0.0
        %662 = vmatpush1.xpose.msra.mxu0 0.0
        %663 = vmatprep.subr.mxu0 0.0
        %664 = vmatpush1.xpose.msra.mxu0 0.0
        %665 = vmatprep.subr.mxu0 0.0
        %666 = vmatpush1.xpose.msra.mxu0 0.0
        %667 = vmatprep.subr.mxu0 0.0
        %668 = vmatpush1.xpose.msra.mxu0 0.0
        %669 = vmatprep.subr.mxu0 0.0
        %670 = vmatpush1.xpose.msra.mxu0 %v637
        %671 = vmatprep.subr.mxu0 0.0
        %672 = vmatpush2.xpose.msra.mxu0 0.0
        %673 = vmatprep.subr.mxu0 0.0
        %674 = vmatpush2.xpose.msra.mxu0 0.0
        %675 = vmatprep.subr.mxu0 0.0
        %676 = vmatpush2.xpose.msra.mxu0 0.0
        %677 = vmatprep.subr.mxu0 0.0
        %678 = vmatpush2.xpose.msra.mxu0 0.0
        %679 = vmatprep.subr.mxu0 0.0
        %680 = vmatpush2.xpose.msra.mxu0 0.0
        %681 = vmatprep.subr.mxu0 0.0
        %682 = vmatpush2.xpose.msra.mxu0 0.0
        %683 = vmatprep.subr.mxu0 0.0
        %684 = vmatpush2.xpose.msra.mxu0 0.0
        %685 = vmatprep.subr.mxu0 0.0
        %686 = vmatpush2.xpose.msra.mxu0 0.0
        %687 = vmatprep.subr.mxu0 0.0
        %688 = vmatpush2.xpose.msra.mxu0 0.0
        %689 = vmatprep.subr.mxu0 0.0
        %690 = vmatpush2.xpose.msra.mxu0 0.0
        %691 = vmatprep.subr.mxu0 0.0
        %692 = vmatpush2.xpose.msra.mxu0 0.0
        %693 = vmatprep.subr.mxu0 0.0
        %694 = vmatpush2.xpose.msra.mxu0 0.0
        %695 = vmatprep.subr.mxu0 0.0
        %696 = vmatpush2.xpose.msra.mxu0 0.0
        %697 = vmatprep.subr.mxu0 0.0
        %698 = vmatpush2.xpose.msra.mxu0 0.0
        %699 = vmatprep.subr.mxu0 0.0
        %700 = vmatpush2.xpose.msra.mxu0 0.0
        %701 = vmatprep.subr.mxu0 0.0
        %702 = vmatpush2.xpose.msra.mxu0 0.0
        %703 = vmatprep.mubr.f32.mxu0 0.0
        %704 = vmatmul.mubr.f32.gmra.mxu0 %v635
        %v705 = vpop.f32.mrf.mxu0
        %v706 = vadd.f32 %v530, %v705
        %v707 = vpop.f32.mrf.mxu0
        %708 = vdwg.mxu0
        %v709 = vsel %vm633, %v706, -inf
        %710 = vmax.xlane.f32.xlu0 %v709
        %v711 = vpop.xlane.xlu0 %710
        %v712 = vsub.f32 %v706, %v711
        %v713 = vmul.f32 %v712, 1.442695
        %v714 = vpow.pop %v713
        %v715 = vsel %vm633, %v714, 0.0
        %716 = vadd.xlane.f32.xlu0 %v715
        %v717 = vpop.xlane.xlu0 %716
        %v718 = vrcp.pop %v717
        %v719 = vmul.f32 %v714, %v718
        %720 = vrot.lane.b32.xlu0 %v624, 64
        %v721 = vpop.permute.xlu0 %720
        %v724 = vsel %vm633, %v719, 0
        %726 = vmatprep.subr.mxu0 0.0
        %727 = vmatpush1.msra.mxu0 0.0
        %728 = vmatprep.subr.mxu0 0.0
        %729 = vmatpush1.msra.mxu0 0.0
        %730 = vmatprep.subr.mxu0 0.0
        %731 = vmatpush1.msra.mxu0 0.0
        %732 = vmatprep.subr.mxu0 0.0
        %733 = vmatpush1.msra.mxu0 0.0
        %734 = vmatprep.subr.mxu0 0.0
        %735 = vmatpush1.msra.mxu0 0.0
        %736 = vmatprep.subr.mxu0 0.0
        %737 = vmatpush1.msra.mxu0 0.0
        %738 = vmatprep.subr.mxu0 0.0
        %739 = vmatpush1.msra.mxu0 0.0
        %740 = vmatprep.subr.mxu0 0.0
        %741 = vmatpush1.msra.mxu0 0.0
        %742 = vmatprep.subr.mxu0 0.0
        %743 = vmatpush1.msra.mxu0 0.0
        %744 = vmatprep.subr.mxu0 0.0
        %745 = vmatpush1.msra.mxu0 0.0
        %746 = vmatprep.subr.mxu0 0.0
        %747 = vmatpush1.msra.mxu0 0.0
        %748 = vmatprep.subr.mxu0 0.0
        %749 = vmatpush1.msra.mxu0 0.0
        %750 = vmatprep.subr.mxu0 0.0
        %751 = vmatpush1.msra.mxu0 0.0
        %752 = vmatprep.subr.mxu0 0.0
        %753 = vmatpush1.msra.mxu0 0.0
        %754 = vmatprep.subr.mxu0 0.0
        %755 = vmatpush1.msra.mxu0 0.0
        %756 = vmatprep.subr.mxu0 0.0
        %757 = vmatpush1.msra.mxu0 %v721
        %758 = vmatprep.subr.mxu0 0.0
        %759 = vmatpush2.msra.mxu0 0.0
        %760 = vmatprep.subr.mxu0 0.0
        %761 = vmatpush2.msra.mxu0 0.0
        %762 = vmatprep.subr.mxu0 0.0
        %763 = vmatpush2.msra.mxu0 0.0
        %764 = vmatprep.subr.mxu0 0.0
        %765 = vmatpush2.msra.mxu0 0.0
        %766 = vmatprep.subr.mxu0 0.0
        %767 = vmatpush2.msra.mxu0 0.0
        %768 = vmatprep.subr.mxu0 0.0
        %769 = vmatpush2.msra.mxu0 0.0
        %770 = vmatprep.subr.mxu0 0.0
        %771 = vmatpush2.msra.mxu0 0.0
        %772 = vmatprep.subr.mxu0 0.0
        %773 = vmatpush2.msra.mxu0 0.0
        %774 = vmatprep.subr.mxu0 0.0
        %775 = vmatpush2.msra.mxu0 0.0
        %776 = vmatprep.subr.mxu0 0.0
        %777 = vmatpush2.msra.mxu0 0.0
        %778 = vmatprep.subr.mxu0 0.0
        %779 = vmatpush2.msra.mxu0 0.0
        %780 = vmatprep.subr.mxu0 0.0
        %781 = vmatpush2.msra.mxu0 0.0
        %782 = vmatprep.subr.mxu0 0.0
        %783 = vmatpush2.msra.mxu0 0.0
        %784 = vmatprep.subr.mxu0 0.0
        %785 = vmatpush2.msra.mxu0 0.0
        %786 = vmatprep.subr.mxu0 0.0
        %787 = vmatpush2.msra.mxu0 0.0
        %788 = vmatprep.subr.mxu0 0.0
        %789 = vmatpush2.msra.mxu0 0.0
        %790 = vmatprep.mubr.f32.mxu0 0.0
        %791 = vmatmul.mubr.f32.gmra.mxu0 %v724
        %v792 = vpop.f32.mrf.mxu0
        %v793 = vadd.f32 0.0, %v792
        %v794 = vpop.f32.mrf.mxu0
        %795 = vdwg.mxu0
        %v796 = vpack.c.bf16 %v793, %v793
        %v797 = vld [vmem:[%s6] sm:$0xf]
        %798 = vrot.lane.b32.xlu0 %v629, 120
        %v799 = vpop.permute.xlu0 %798
        %800 = vrot.lane.b32.xlu0 %v624, 88
        %v801 = vpop.permute.xlu0 %800
        %v802 = vsel %vm633, %v799, 0
        %v804 = vsel %vm633, %v801, 0
        %806 = vmatprep.subr.mxu0 0.0
        %807 = vmatpush1.xpose.msra.mxu0 0.0
        %808 = vmatprep.subr.mxu0 0.0
        %809 = vmatpush1.xpose.msra.mxu0 0.0
        %810 = vmatprep.subr.mxu0 0.0
        %811 = vmatpush1.xpose.msra.mxu0 0.0
        %812 = vmatprep.subr.mxu0 0.0
        %813 = vmatpush1.xpose.msra.mxu0 0.0
        %814 = vmatprep.subr.mxu0 0.0
        %815 = vmatpush1.xpose.msra.mxu0 0.0
        %816 = vmatprep.subr.mxu0 0.0
        %817 = vmatpush1.xpose.msra.mxu0 0.0
        %818 = vmatprep.subr.mxu0 0.0
        %819 = vmatpush1.xpose.msra.mxu0 0.0
        %820 = vmatprep.subr.mxu0 0.0
        %821 = vmatpush1.xpose.msra.mxu0 0.0
        %822 = vmatprep.subr.mxu0 0.0
        %823 = vmatpush1.xpose.msra.mxu0 0.0
        %824 = vmatprep.subr.mxu0 0.0
        %825 = vmatpush1.xpose.msra.mxu0 0.0
        %826 = vmatprep.subr.mxu0 0.0
        %827 = vmatpush1.xpose.msra.mxu0 0.0
        %828 = vmatprep.subr.mxu0 0.0
        %829 = vmatpush1.xpose.msra.mxu0 0.0
        %830 = vmatprep.subr.mxu0 0.0
        %831 = vmatpush1.xpose.msra.mxu0 0.0
        %832 = vmatprep.subr.mxu0 0.0
        %833 = vmatpush1.xpose.msra.mxu0 0.0
        %834 = vmatprep.subr.mxu0 0.0
        %835 = vmatpush1.xpose.msra.mxu0 0.0
        %836 = vmatprep.subr.mxu0 0.0
        %837 = vmatpush1.xpose.msra.mxu0 %v804
        %838 = vmatprep.subr.mxu0 0.0
        %839 = vmatpush2.xpose.msra.mxu0 0.0
        %840 = vmatprep.subr.mxu0 0.0
        %841 = vmatpush2.xpose.msra.mxu0 0.0
        %842 = vmatprep.subr.mxu0 0.0
        %843 = vmatpush2.xpose.msra.mxu0 0.0
        %844 = vmatprep.subr.mxu0 0.0
        %845 = vmatpush2.xpose.msra.mxu0 0.0
        %846 = vmatprep.subr.mxu0 0.0
        %847 = vmatpush2.xpose.msra.mxu0 0.0
        %848 = vmatprep.subr.mxu0 0.0
        %849 = vmatpush2.xpose.msra.mxu0 0.0
        %850 = vmatprep.subr.mxu0 0.0
        %851 = vmatpush2.xpose.msra.mxu0 0.0
        %852 = vmatprep.subr.mxu0 0.0
        %853 = vmatpush2.xpose.msra.mxu0 0.0
        %854 = vmatprep.subr.mxu0 0.0
        %855 = vmatpush2.xpose.msra.mxu0 0.0
        %856 = vmatprep.subr.mxu0 0.0
        %857 = vmatpush2.xpose.msra.mxu0 0.0
        %858 = vmatprep.subr.mxu0 0.0
        %859 = vmatpush2.xpose.msra.mxu0 0.0
        %860 = vmatprep.subr.mxu0 0.0
        %861 = vmatpush2.xpose.msra.mxu0 0.0
        %862 = vmatprep.subr.mxu0 0.0
        %863 = vmatpush2.xpose.msra.mxu0 0.0
        %864 = vmatprep.subr.mxu0 0.0
        %865 = vmatpush2.xpose.msra.mxu0 0.0
        %866 = vmatprep.subr.mxu0 0.0
        %867 = vmatpush2.xpose.msra.mxu0 0.0
        %868 = vmatprep.subr.mxu0 0.0
        %869 = vmatpush2.xpose.msra.mxu0 0.0
        %870 = vmatprep.mubr.f32.mxu0 0.0
        %871 = vmatmul.mubr.f32.gmra.mxu0 %v802
        %v872 = vpop.f32.mrf.mxu0
        %v873 = vadd.f32 %v530, %v872
        %v874 = vpop.f32.mrf.mxu0
        %875 = vdwg.mxu0
        %v876 = vsel %vm633, %v873, -inf
        %877 = vmax.xlane.f32.xlu0 %v876
        %v878 = vpop.xlane.xlu0 %877
        %v879 = vsub.f32 %v873, %v878
        %v880 = vmul.f32 %v879, 1.442695
        %v881 = vpow.pop %v880
        %v882 = vsel %vm633, %v881, 0.0
        %883 = vadd.xlane.f32.xlu0 %v882
        %v884 = vpop.xlane.xlu0 %883
        %v885 = vrcp.pop %v884
        %v886 = vmul.f32 %v881, %v885
        %887 = vrot.lane.b32.xlu0 %v624, 56
        %v888 = vpop.permute.xlu0 %887
        %v891 = vsel %vm633, %v886, 0
        %893 = vmatprep.subr.mxu0 0.0
        %894 = vmatpush1.msra.mxu0 0.0
        %895 = vmatprep.subr.mxu0 0.0
        %896 = vmatpush1.msra.mxu0 0.0
        %897 = vmatprep.subr.mxu0 0.0
        %898 = vmatpush1.msra.mxu0 0.0
        %899 = vmatprep.subr.mxu0 0.0
        %900 = vmatpush1.msra.mxu0 0.0
        %901 = vmatprep.subr.mxu0 0.0
        %902 = vmatpush1.msra.mxu0 0.0
        %903 = vmatprep.subr.mxu0 0.0
        %904 = vmatpush1.msra.mxu0 0.0
        %905 = vmatprep.subr.mxu0 0.0
        %906 = vmatpush1.msra.mxu0 0.0
        %907 = vmatprep.subr.mxu0 0.0
        %908 = vmatpush1.msra.mxu0 0.0
        %909 = vmatprep.subr.mxu0 0.0
        %910 = vmatpush1.msra.mxu0 0.0
        %911 = vmatprep.subr.mxu0 0.0
        %912 = vmatpush1.msra.mxu0 0.0
        %913 = vmatprep.subr.mxu0 0.0
        %914 = vmatpush1.msra.mxu0 0.0
        %915 = vmatprep.subr.mxu0 0.0
        %916 = vmatpush1.msra.mxu0 0.0
        %917 = vmatprep.subr.mxu0 0.0
        %918 = vmatpush1.msra.mxu0 0.0
        %919 = vmatprep.subr.mxu0 0.0
        %920 = vmatpush1.msra.mxu0 0.0
        %921 = vmatprep.subr.mxu0 0.0
        %922 = vmatpush1.msra.mxu0 0.0
        %923 = vmatprep.subr.mxu0 0.0
        %924 = vmatpush1.msra.mxu0 %v888
        %925 = vmatprep.subr.mxu0 0.0
        %926 = vmatpush2.msra.mxu0 0.0
        %927 = vmatprep.subr.mxu0 0.0
        %928 = vmatpush2.msra.mxu0 0.0
        %929 = vmatprep.subr.mxu0 0.0
        %930 = vmatpush2.msra.mxu0 0.0
        %931 = vmatprep.subr.mxu0 0.0
        %932 = vmatpush2.msra.mxu0 0.0
        %933 = vmatprep.subr.mxu0 0.0
        %934 = vmatpush2.msra.mxu0 0.0
        %935 = vmatprep.subr.mxu0 0.0
        %936 = vmatpush2.msra.mxu0 0.0
        %937 = vmatprep.subr.mxu0 0.0
        %938 = vmatpush2.msra.mxu0 0.0
        %939 = vmatprep.subr.mxu0 0.0
        %940 = vmatpush2.msra.mxu0 0.0
        %941 = vmatprep.subr.mxu0 0.0
        %942 = vmatpush2.msra.mxu0 0.0
        %943 = vmatprep.subr.mxu0 0.0
        %944 = vmatpush2.msra.mxu0 0.0
        %945 = vmatprep.subr.mxu0 0.0
        %946 = vmatpush2.msra.mxu0 0.0
        %947 = vmatprep.subr.mxu0 0.0
        %948 = vmatpush2.msra.mxu0 0.0
        %949 = vmatprep.subr.mxu0 0.0
        %950 = vmatpush2.msra.mxu0 0.0
        %951 = vmatprep.subr.mxu0 0.0
        %952 = vmatpush2.msra.mxu0 0.0
        %953 = vmatprep.subr.mxu0 0.0
        %954 = vmatpush2.msra.mxu0 0.0
        %955 = vmatprep.subr.mxu0 0.0
        %956 = vmatpush2.msra.mxu0 0.0
        %957 = vmatprep.mubr.f32.mxu0 0.0
        %958 = vmatmul.mubr.f32.gmra.mxu0 %v891
        %v959 = vpop.f32.mrf.mxu0
        %v960 = vadd.f32 0.0, %v959
        %v961 = vpop.f32.mrf.mxu0
        %962 = vdwg.mxu0
        %v963 = vpack.c.bf16 %v960, %v960
        %s964 = scalar_lea.vmem %s6, 4
        %v965 = vld [vmem:[%s964] sm:$0xf]
        %v967 = vsel %vm633, %v963, 0
        %vm969 = vcmask 1043456
        %v971 = vsel %vm969, %v965, 0
        %973 = vmatprep.subr.bf16.mxu0 0
        %974 = vmatpush1.bf16.msra.mxu0 0
        %975 = vmatprep.subr.bf16.mxu0 0
        %976 = vmatpush1.bf16.msra.mxu0 0
        %977 = vmatprep.subr.bf16.mxu0 0
        %978 = vmatpush1.bf16.msra.mxu0 0
        %979 = vmatprep.subr.bf16.mxu0 0
        %980 = vmatpush1.bf16.msra.mxu0 0
        %981 = vmatprep.subr.bf16.mxu0 0
        %982 = vmatpush1.bf16.msra.mxu0 0
        %983 = vmatprep.subr.bf16.mxu0 0
        %984 = vmatpush1.bf16.msra.mxu0 0
        %985 = vmatprep.subr.bf16.mxu0 0
        %986 = vmatpush1.bf16.msra.mxu0 0
        %987 = vmatprep.subr.bf16.mxu0 0
        %988 = vmatpush1.bf16.msra.mxu0 %v971
        %989 = vmatprep.subr.bf16.mxu0 0
        %990 = vmatpush2.bf16.msra.mxu0 0
        %991 = vmatprep.subr.bf16.mxu0 0
        %992 = vmatpush2.bf16.msra.mxu0 0
        %993 = vmatprep.subr.bf16.mxu0 0
        %994 = vmatpush2.bf16.msra.mxu0 0
        %995 = vmatprep.subr.bf16.mxu0 0
        %996 = vmatpush2.bf16.msra.mxu0 0
        %997 = vmatprep.subr.bf16.mxu0 0
        %998 = vmatpush2.bf16.msra.mxu0 0
        %999 = vmatprep.subr.bf16.mxu0 0
        %1000 = vmatpush2.bf16.msra.mxu0 0
        %1001 = vmatprep.subr.bf16.mxu0 0
        %1002 = vmatpush2.bf16.msra.mxu0 0
        %1003 = vmatprep.subr.bf16.mxu0 0
        %1004 = vmatpush2.bf16.msra.mxu0 0
        %1005 = vmatprep.mubr.bf16.mxu0 0
        %1006 = vmatmul.mubr.bf16.gmra.mxu0 %v967
        %v1007 = vpop.f32.mrf.mxu0
        %v1008 = vadd.f32 0.0, %v1007
        %v1009 = vpop.f32.mrf.mxu0
        %v1010 = vpop.f32.mrf.mxu0
        %v1011 = vpop.f32.mrf.mxu0
        %1012 = vdwg.mxu0
        %v1014 = vsel %vm633, %v796, 0
        %v1017 = vsel %vm969, %v797, 0
        %1019 = vmatprep.subr.bf16.mxu0 0
        %1020 = vmatpush1.bf16.msra.mxu0 0
        %1021 = vmatprep.subr.bf16.mxu0 0
        %1022 = vmatpush1.bf16.msra.mxu0 0
        %1023 = vmatprep.subr.bf16.mxu0 0
        %1024 = vmatpush1.bf16.msra.mxu0 0
        %1025 = vmatprep.subr.bf16.mxu0 0
        %1026 = vmatpush1.bf16.msra.mxu0 0
        %1027 = vmatprep.subr.bf16.mxu0 0
        %1028 = vmatpush1.bf16.msra.mxu0 0
        %1029 = vmatprep.subr.bf16.mxu0 0
        %1030 = vmatpush1.bf16.msra.mxu0 0
        %1031 = vmatprep.subr.bf16.mxu0 0
        %1032 = vmatpush1.bf16.msra.mxu0 0
        %1033 = vmatprep.subr.bf16.mxu0 0
        %1034 = vmatpush1.bf16.msra.mxu0 %v1017
        %1035 = vmatprep.subr.bf16.mxu0 0
        %1036 = vmatpush2.bf16.msra.mxu0 0
        %1037 = vmatprep.subr.bf16.mxu0 0
        %1038 = vmatpush2.bf16.msra.mxu0 0
        %1039 = vmatprep.subr.bf16.mxu0 0
        %1040 = vmatpush2.bf16.msra.mxu0 0
        %1041 = vmatprep.subr.bf16.mxu0 0
        %1042 = vmatpush2.bf16.msra.mxu0 0
        %1043 = vmatprep.subr.bf16.mxu0 0
        %1044 = vmatpush2.bf16.msra.mxu0 0
        %1045 = vmatprep.subr.bf16.mxu0 0
        %1046 = vmatpush2.bf16.msra.mxu0 0
        %1047 = vmatprep.subr.bf16.mxu0 0
        %1048 = vmatpush2.bf16.msra.mxu0 0
        %1049 = vmatprep.subr.bf16.mxu0 0
        %1050 = vmatpush2.bf16.msra.mxu0 0
        %1051 = vmatprep.mubr.bf16.mxu0 0
        %1052 = vmatmul.mubr.bf16.gmra.mxu0 %v1014
        %v1053 = vpop.f32.mrf.mxu0
        %v1054 = vadd.f32 %v1008, %v1053
        %v1055 = vpop.f32.mrf.mxu0
        %v1056 = vpop.f32.mrf.mxu0
        %v1057 = vpop.f32.mrf.mxu0
        %1058 = vdwg.mxu0
        %1059 = vrot.lane.b32.xlu0 %v629, 112
        %v1060 = vpop.permute.xlu0 %1059
        %1061 = vrot.lane.b32.xlu0 %v624, 80
        %v1062 = vpop.permute.xlu0 %1061
        %v1063 = vsel %vm633, %v1060, 0
        %v1065 = vsel %vm633, %v1062, 0
        %1067 = vmatprep.subr.mxu0 0.0
        %1068 = vmatpush1.xpose.msra.mxu0 0.0
        %1069 = vmatprep.subr.mxu0 0.0
        %1070 = vmatpush1.xpose.msra.mxu0 0.0
        %1071 = vmatprep.subr.mxu0 0.0
        %1072 = vmatpush1.xpose.msra.mxu0 0.0
        %1073 = vmatprep.subr.mxu0 0.0
        %1074 = vmatpush1.xpose.msra.mxu0 0.0
        %1075 = vmatprep.subr.mxu0 0.0
        %1076 = vmatpush1.xpose.msra.mxu0 0.0
        %1077 = vmatprep.subr.mxu0 0.0
        %1078 = vmatpush1.xpose.msra.mxu0 0.0
        %1079 = vmatprep.subr.mxu0 0.0
        %1080 = vmatpush1.xpose.msra.mxu0 0.0
        %1081 = vmatprep.subr.mxu0 0.0
        %1082 = vmatpush1.xpose.msra.mxu0 0.0
        %1083 = vmatprep.subr.mxu0 0.0
        %1084 = vmatpush1.xpose.msra.mxu0 0.0
        %1085 = vmatprep.subr.mxu0 0.0
        %1086 = vmatpush1.xpose.msra.mxu0 0.0
        %1087 = vmatprep.subr.mxu0 0.0
        %1088 = vmatpush1.xpose.msra.mxu0 0.0
        %1089 = vmatprep.subr.mxu0 0.0
        %1090 = vmatpush1.xpose.msra.mxu0 0.0
        %1091 = vmatprep.subr.mxu0 0.0
        %1092 = vmatpush1.xpose.msra.mxu0 0.0
        %1093 = vmatprep.subr.mxu0 0.0
        %1094 = vmatpush1.xpose.msra.mxu0 0.0
        %1095 = vmatprep.subr.mxu0 0.0
        %1096 = vmatpush1.xpose.msra.mxu0 0.0
        %1097 = vmatprep.subr.mxu0 0.0
        %1098 = vmatpush1.xpose.msra.mxu0 %v1065
        %1099 = vmatprep.subr.mxu0 0.0
        %1100 = vmatpush2.xpose.msra.mxu0 0.0
        %1101 = vmatprep.subr.mxu0 0.0
        %1102 = vmatpush2.xpose.msra.mxu0 0.0
        %1103 = vmatprep.subr.mxu0 0.0
        %1104 = vmatpush2.xpose.msra.mxu0 0.0
        %1105 = vmatprep.subr.mxu0 0.0
        %1106 = vmatpush2.xpose.msra.mxu0 0.0
        %1107 = vmatprep.subr.mxu0 0.0
        %1108 = vmatpush2.xpose.msra.mxu0 0.0
        %1109 = vmatprep.subr.mxu0 0.0
        %1110 = vmatpush2.xpose.msra.mxu0 0.0
        %1111 = vmatprep.subr.mxu0 0.0
        %1112 = vmatpush2.xpose.msra.mxu0 0.0
        %1113 = vmatprep.subr.mxu0 0.0
        %1114 = vmatpush2.xpose.msra.mxu0 0.0
        %1115 = vmatprep.subr.mxu0 0.0
        %1116 = vmatpush2.xpose.msra.mxu0 0.0
        %1117 = vmatprep.subr.mxu0 0.0
        %1118 = vmatpush2.xpose.msra.mxu0 0.0
        %1119 = vmatprep.subr.mxu0 0.0
        %1120 = vmatpush2.xpose.msra.mxu0 0.0
        %1121 = vmatprep.subr.mxu0 0.0
        %1122 = vmatpush2.xpose.msra.mxu0 0.0
        %1123 = vmatprep.subr.mxu0 0.0
        %1124 = vmatpush2.xpose.msra.mxu0 0.0
        %1125 = vmatprep.subr.mxu0 0.0
        %1126 = vmatpush2.xpose.msra.mxu0 0.0
        %1127 = vmatprep.subr.mxu0 0.0
        %1128 = vmatpush2.xpose.msra.mxu0 0.0
        %1129 = vmatprep.subr.mxu0 0.0
        %1130 = vmatpush2.xpose.msra.mxu0 0.0
        %1131 = vmatprep.mubr.f32.mxu0 0.0
        %1132 = vmatmul.mubr.f32.gmra.mxu0 %v1063
        %v1133 = vpop.f32.mrf.mxu0
        %v1134 = vadd.f32 %v530, %v1133
        %v1135 = vpop.f32.mrf.mxu0
        %1136 = vdwg.mxu0
        %v1137 = vsel %vm633, %v1134, -inf
        %1138 = vmax.xlane.f32.xlu0 %v1137
        %v1139 = vpop.xlane.xlu0 %1138
        %v1140 = vsub.f32 %v1134, %v1139
        %v1141 = vmul.f32 %v1140, 1.442695
        %v1142 = vpow.pop %v1141
        %v1143 = vsel %vm633, %v1142, 0.0
        %1144 = vadd.xlane.f32.xlu0 %v1143
        %v1145 = vpop.xlane.xlu0 %1144
        %v1146 = vrcp.pop %v1145
        %v1147 = vmul.f32 %v1142, %v1146
        %1148 = vrot.lane.b32.xlu0 %v624, 48
        %v1149 = vpop.permute.xlu0 %1148
        %v1152 = vsel %vm633, %v1147, 0
        %1154 = vmatprep.subr.mxu0 0.0
        %1155 = vmatpush1.msra.mxu0 0.0
        %1156 = vmatprep.subr.mxu0 0.0
        %1157 = vmatpush1.msra.mxu0 0.0
        %1158 = vmatprep.subr.mxu0 0.0
        %1159 = vmatpush1.msra.mxu0 0.0
        %1160 = vmatprep.subr.mxu0 0.0
        %1161 = vmatpush1.msra.mxu0 0.0
        %1162 = vmatprep.subr.mxu0 0.0
        %1163 = vmatpush1.msra.mxu0 0.0
        %1164 = vmatprep.subr.mxu0 0.0
        %1165 = vmatpush1.msra.mxu0 0.0
        %1166 = vmatprep.subr.mxu0 0.0
        %1167 = vmatpush1.msra.mxu0 0.0
        %1168 = vmatprep.subr.mxu0 0.0
        %1169 = vmatpush1.msra.mxu0 0.0
        %1170 = vmatprep.subr.mxu0 0.0
        %1171 = vmatpush1.msra.mxu0 0.0
        %1172 = vmatprep.subr.mxu0 0.0
        %1173 = vmatpush1.msra.mxu0 0.0
        %1174 = vmatprep.subr.mxu0 0.0
        %1175 = vmatpush1.msra.mxu0 0.0
        %1176 = vmatprep.subr.mxu0 0.0
        %1177 = vmatpush1.msra.mxu0 0.0
        %1178 = vmatprep.subr.mxu0 0.0
        %1179 = vmatpush1.msra.mxu0 0.0
        %1180 = vmatprep.subr.mxu0 0.0
        %1181 = vmatpush1.msra.mxu0 0.0
        %1182 = vmatprep.subr.mxu0 0.0
        %1183 = vmatpush1.msra.mxu0 0.0
        %1184 = vmatprep.subr.mxu0 0.0
        %1185 = vmatpush1.msra.mxu0 %v1149
        %1186 = vmatprep.subr.mxu0 0.0
        %1187 = vmatpush2.msra.mxu0 0.0
        %1188 = vmatprep.subr.mxu0 0.0
        %1189 = vmatpush2.msra.mxu0 0.0
        %1190 = vmatprep.subr.mxu0 0.0
        %1191 = vmatpush2.msra.mxu0 0.0
        %1192 = vmatprep.subr.mxu0 0.0
        %1193 = vmatpush2.msra.mxu0 0.0
        %1194 = vmatprep.subr.mxu0 0.0
        %1195 = vmatpush2.msra.mxu0 0.0
        %1196 = vmatprep.subr.mxu0 0.0
        %1197 = vmatpush2.msra.mxu0 0.0
        %1198 = vmatprep.subr.mxu0 0.0
        %1199 = vmatpush2.msra.mxu0 0.0
        %1200 = vmatprep.subr.mxu0 0.0
        %1201 = vmatpush2.msra.mxu0 0.0
        %1202 = vmatprep.subr.mxu0 0.0
        %1203 = vmatpush2.msra.mxu0 0.0
        %1204 = vmatprep.subr.mxu0 0.0
        %1205 = vmatpush2.msra.mxu0 0.0
        %1206 = vmatprep.subr.mxu0 0.0
        %1207 = vmatpush2.msra.mxu0 0.0
        %1208 = vmatprep.subr.mxu0 0.0
        %1209 = vmatpush2.msra.mxu0 0.0
        %1210 = vmatprep.subr.mxu0 0.0
        %1211 = vmatpush2.msra.mxu0 0.0
        %1212 = vmatprep.subr.mxu0 0.0
        %1213 = vmatpush2.msra.mxu0 0.0
        %1214 = vmatprep.subr.mxu0 0.0
        %1215 = vmatpush2.msra.mxu0 0.0
        %1216 = vmatprep.subr.mxu0 0.0
        %1217 = vmatpush2.msra.mxu0 0.0
        %1218 = vmatprep.mubr.f32.mxu0 0.0
        %1219 = vmatmul.mubr.f32.gmra.mxu0 %v1152
        %v1220 = vpop.f32.mrf.mxu0
        %v1221 = vadd.f32 0.0, %v1220
        %v1222 = vpop.f32.mrf.mxu0
        %1223 = vdwg.mxu0
        %v1224 = vpack.c.bf16 %v1221, %v1221
        %s1225 = scalar_lea.vmem %s6, 8
        %v1226 = vld [vmem:[%s1225] sm:$0xf]
        %v1228 = vsel %vm633, %v1224, 0
        %v1231 = vsel %vm969, %v1226, 0
        %1233 = vmatprep.subr.bf16.mxu0 0
        %1234 = vmatpush1.bf16.msra.mxu0 0
        %1235 = vmatprep.subr.bf16.mxu0 0
        %1236 = vmatpush1.bf16.msra.mxu0 0
        %1237 = vmatprep.subr.bf16.mxu0 0
        %1238 = vmatpush1.bf16.msra.mxu0 0
        %1239 = vmatprep.subr.bf16.mxu0 0
        %1240 = vmatpush1.bf16.msra.mxu0 0
        %1241 = vmatprep.subr.bf16.mxu0 0
        %1242 = vmatpush1.bf16.msra.mxu0 0
        %1243 = vmatprep.subr.bf16.mxu0 0
        %1244 = vmatpush1.bf16.msra.mxu0 0
        %1245 = vmatprep.subr.bf16.mxu0 0
        %1246 = vmatpush1.bf16.msra.mxu0 0
        %1247 = vmatprep.subr.bf16.mxu0 0
        %1248 = vmatpush1.bf16.msra.mxu0 %v1231
        %1249 = vmatprep.subr.bf16.mxu0 0
        %1250 = vmatpush2.bf16.msra.mxu0 0
        %1251 = vmatprep.subr.bf16.mxu0 0
        %1252 = vmatpush2.bf16.msra.mxu0 0
        %1253 = vmatprep.subr.bf16.mxu0 0
        %1254 = vmatpush2.bf16.msra.mxu0 0
        %1255 = vmatprep.subr.bf16.mxu0 0
        %1256 = vmatpush2.bf16.msra.mxu0 0
        %1257 = vmatprep.subr.bf16.mxu0 0
        %1258 = vmatpush2.bf16.msra.mxu0 0
        %1259 = vmatprep.subr.bf16.mxu0 0
        %1260 = vmatpush2.bf16.msra.mxu0 0
        %1261 = vmatprep.subr.bf16.mxu0 0
        %1262 = vmatpush2.bf16.msra.mxu0 0
        %1263 = vmatprep.subr.bf16.mxu0 0
        %1264 = vmatpush2.bf16.msra.mxu0 0
        %1265 = vmatprep.mubr.bf16.mxu0 0
        %1266 = vmatmul.mubr.bf16.gmra.mxu0 %v1228
        %v1267 = vpop.f32.mrf.mxu0
        %v1268 = vadd.f32 0.0, %v1267
        %v1269 = vpop.f32.mrf.mxu0
        %v1270 = vpop.f32.mrf.mxu0
        %v1271 = vpop.f32.mrf.mxu0
        %1272 = vdwg.mxu0
        %v1273 = vadd.f32 %v1054, %v1268
        %1274 = vrot.lane.b32.xlu0 %v629, 104
        %v1275 = vpop.permute.xlu0 %1274
        %1276 = vrot.lane.b32.xlu0 %v624, 72
        %v1277 = vpop.permute.xlu0 %1276
        %v1278 = vsel %vm633, %v1275, 0
        %v1280 = vsel %vm633, %v1277, 0
        %1282 = vmatprep.subr.mxu0 0.0
        %1283 = vmatpush1.xpose.msra.mxu0 0.0
        %1284 = vmatprep.subr.mxu0 0.0
        %1285 = vmatpush1.xpose.msra.mxu0 0.0
        %1286 = vmatprep.subr.mxu0 0.0
        %1287 = vmatpush1.xpose.msra.mxu0 0.0
        %1288 = vmatprep.subr.mxu0 0.0
        %1289 = vmatpush1.xpose.msra.mxu0 0.0
        %1290 = vmatprep.subr.mxu0 0.0
        %1291 = vmatpush1.xpose.msra.mxu0 0.0
        %1292 = vmatprep.subr.mxu0 0.0
        %1293 = vmatpush1.xpose.msra.mxu0 0.0
        %1294 = vmatprep.subr.mxu0 0.0
        %1295 = vmatpush1.xpose.msra.mxu0 0.0
        %1296 = vmatprep.subr.mxu0 0.0
        %1297 = vmatpush1.xpose.msra.mxu0 0.0
        %1298 = vmatprep.subr.mxu0 0.0
        %1299 = vmatpush1.xpose.msra.mxu0 0.0
        %1300 = vmatprep.subr.mxu0 0.0
        %1301 = vmatpush1.xpose.msra.mxu0 0.0
        %1302 = vmatprep.subr.mxu0 0.0
        %1303 = vmatpush1.xpose.msra.mxu0 0.0
        %1304 = vmatprep.subr.mxu0 0.0
        %1305 = vmatpush1.xpose.msra.mxu0 0.0
        %1306 = vmatprep.subr.mxu0 0.0
        %1307 = vmatpush1.xpose.msra.mxu0 0.0
        %1308 = vmatprep.subr.mxu0 0.0
        %1309 = vmatpush1.xpose.msra.mxu0 0.0
        %1310 = vmatprep.subr.mxu0 0.0
        %1311 = vmatpush1.xpose.msra.mxu0 0.0
        %1312 = vmatprep.subr.mxu0 0.0
        %1313 = vmatpush1.xpose.msra.mxu0 %v1280
        %1314 = vmatprep.subr.mxu0 0.0
        %1315 = vmatpush2.xpose.msra.mxu0 0.0
        %1316 = vmatprep.subr.mxu0 0.0
        %1317 = vmatpush2.xpose.msra.mxu0 0.0
        %1318 = vmatprep.subr.mxu0 0.0
        %1319 = vmatpush2.xpose.msra.mxu0 0.0
        %1320 = vmatprep.subr.mxu0 0.0
        %1321 = vmatpush2.xpose.msra.mxu0 0.0
        %1322 = vmatprep.subr.mxu0 0.0
        %1323 = vmatpush2.xpose.msra.mxu0 0.0
        %1324 = vmatprep.subr.mxu0 0.0
        %1325 = vmatpush2.xpose.msra.mxu0 0.0
        %1326 = vmatprep.subr.mxu0 0.0
        %1327 = vmatpush2.xpose.msra.mxu0 0.0
        %1328 = vmatprep.subr.mxu0 0.0
        %1329 = vmatpush2.xpose.msra.mxu0 0.0
        %1330 = vmatprep.subr.mxu0 0.0
        %1331 = vmatpush2.xpose.msra.mxu0 0.0
        %1332 = vmatprep.subr.mxu0 0.0
        %1333 = vmatpush2.xpose.msra.mxu0 0.0
        %1334 = vmatprep.subr.mxu0 0.0
        %1335 = vmatpush2.xpose.msra.mxu0 0.0
        %1336 = vmatprep.subr.mxu0 0.0
        %1337 = vmatpush2.xpose.msra.mxu0 0.0
        %1338 = vmatprep.subr.mxu0 0.0
        %1339 = vmatpush2.xpose.msra.mxu0 0.0
        %1340 = vmatprep.subr.mxu0 0.0
        %1341 = vmatpush2.xpose.msra.mxu0 0.0
        %1342 = vmatprep.subr.mxu0 0.0
        %1343 = vmatpush2.xpose.msra.mxu0 0.0
        %1344 = vmatprep.subr.mxu0 0.0
        %1345 = vmatpush2.xpose.msra.mxu0 0.0
        %1346 = vmatprep.mubr.f32.mxu0 0.0
        %1347 = vmatmul.mubr.f32.gmra.mxu0 %v1278
        %v1348 = vpop.f32.mrf.mxu0
        %v1349 = vadd.f32 %v530, %v1348
        %v1350 = vpop.f32.mrf.mxu0
        %1351 = vdwg.mxu0
        %v1352 = vsel %vm633, %v1349, -inf
        %1353 = vmax.xlane.f32.xlu0 %v1352
        %v1354 = vpop.xlane.xlu0 %1353
        %v1355 = vsub.f32 %v1349, %v1354
        %v1356 = vmul.f32 %v1355, 1.442695
        %v1357 = vpow.pop %v1356
        %v1358 = vsel %vm633, %v1357, 0.0
        %1359 = vadd.xlane.f32.xlu0 %v1358
        %v1360 = vpop.xlane.xlu0 %1359
        %v1361 = vrcp.pop %v1360
        %v1362 = vmul.f32 %v1357, %v1361
        %1363 = vrot.lane.b32.xlu0 %v624, 40
        %v1364 = vpop.permute.xlu0 %1363
        %v1367 = vsel %vm633, %v1362, 0
        %1369 = vmatprep.subr.mxu0 0.0
        %1370 = vmatpush1.msra.mxu0 0.0
        %1371 = vmatprep.subr.mxu0 0.0
        %1372 = vmatpush1.msra.mxu0 0.0
        %1373 = vmatprep.subr.mxu0 0.0
        %1374 = vmatpush1.msra.mxu0 0.0
        %1375 = vmatprep.subr.mxu0 0.0
        %1376 = vmatpush1.msra.mxu0 0.0
        %1377 = vmatprep.subr.mxu0 0.0
        %1378 = vmatpush1.msra.mxu0 0.0
        %1379 = vmatprep.subr.mxu0 0.0
        %1380 = vmatpush1.msra.mxu0 0.0
        %1381 = vmatprep.subr.mxu0 0.0
        %1382 = vmatpush1.msra.mxu0 0.0
        %1383 = vmatprep.subr.mxu0 0.0
        %1384 = vmatpush1.msra.mxu0 0.0
        %1385 = vmatprep.subr.mxu0 0.0
        %1386 = vmatpush1.msra.mxu0 0.0
        %1387 = vmatprep.subr.mxu0 0.0
        %1388 = vmatpush1.msra.mxu0 0.0
        %1389 = vmatprep.subr.mxu0 0.0
        %1390 = vmatpush1.msra.mxu0 0.0
        %1391 = vmatprep.subr.mxu0 0.0
        %1392 = vmatpush1.msra.mxu0 0.0
        %1393 = vmatprep.subr.mxu0 0.0
        %1394 = vmatpush1.msra.mxu0 0.0
        %1395 = vmatprep.subr.mxu0 0.0
        %1396 = vmatpush1.msra.mxu0 0.0
        %1397 = vmatprep.subr.mxu0 0.0
        %1398 = vmatpush1.msra.mxu0 0.0
        %1399 = vmatprep.subr.mxu0 0.0
        %1400 = vmatpush1.msra.mxu0 %v1364
        %1401 = vmatprep.subr.mxu0 0.0
        %1402 = vmatpush2.msra.mxu0 0.0
        %1403 = vmatprep.subr.mxu0 0.0
        %1404 = vmatpush2.msra.mxu0 0.0
        %1405 = vmatprep.subr.mxu0 0.0
        %1406 = vmatpush2.msra.mxu0 0.0
        %1407 = vmatprep.subr.mxu0 0.0
        %1408 = vmatpush2.msra.mxu0 0.0
        %1409 = vmatprep.subr.mxu0 0.0
        %1410 = vmatpush2.msra.mxu0 0.0
        %1411 = vmatprep.subr.mxu0 0.0
        %1412 = vmatpush2.msra.mxu0 0.0
        %1413 = vmatprep.subr.mxu0 0.0
        %1414 = vmatpush2.msra.mxu0 0.0
        %1415 = vmatprep.subr.mxu0 0.0
        %1416 = vmatpush2.msra.mxu0 0.0
        %1417 = vmatprep.subr.mxu0 0.0
        %1418 = vmatpush2.msra.mxu0 0.0
        %1419 = vmatprep.subr.mxu0 0.0
        %1420 = vmatpush2.msra.mxu0 0.0
        %1421 = vmatprep.subr.mxu0 0.0
        %1422 = vmatpush2.msra.mxu0 0.0
        %1423 = vmatprep.subr.mxu0 0.0
        %1424 = vmatpush2.msra.mxu0 0.0
        %1425 = vmatprep.subr.mxu0 0.0
        %1426 = vmatpush2.msra.mxu0 0.0
        %1427 = vmatprep.subr.mxu0 0.0
        %1428 = vmatpush2.msra.mxu0 0.0
        %1429 = vmatprep.subr.mxu0 0.0
        %1430 = vmatpush2.msra.mxu0 0.0
        %1431 = vmatprep.subr.mxu0 0.0
        %1432 = vmatpush2.msra.mxu0 0.0
        %1433 = vmatprep.mubr.f32.mxu0 0.0
        %1434 = vmatmul.mubr.f32.gmra.mxu0 %v1367
        %v1435 = vpop.f32.mrf.mxu0
        %v1436 = vadd.f32 0.0, %v1435
        %v1437 = vpop.f32.mrf.mxu0
        %1438 = vdwg.mxu0
        %v1439 = vpack.c.bf16 %v1436, %v1436
        %s1440 = scalar_lea.vmem %s6, 12
        %v1441 = vld [vmem:[%s1440] sm:$0xf]
        %v1443 = vsel %vm633, %v1439, 0
        %v1446 = vsel %vm969, %v1441, 0
        %1448 = vmatprep.subr.bf16.mxu0 0
        %1449 = vmatpush1.bf16.msra.mxu0 0
        %1450 = vmatprep.subr.bf16.mxu0 0
        %1451 = vmatpush1.bf16.msra.mxu0 0
        %1452 = vmatprep.subr.bf16.mxu0 0
        %1453 = vmatpush1.bf16.msra.mxu0 0
        %1454 = vmatprep.subr.bf16.mxu0 0
        %1455 = vmatpush1.bf16.msra.mxu0 0
        %1456 = vmatprep.subr.bf16.mxu0 0
        %1457 = vmatpush1.bf16.msra.mxu0 0
        %1458 = vmatprep.subr.bf16.mxu0 0
        %1459 = vmatpush1.bf16.msra.mxu0 0
        %1460 = vmatprep.subr.bf16.mxu0 0
        %1461 = vmatpush1.bf16.msra.mxu0 0
        %1462 = vmatprep.subr.bf16.mxu0 0
        %1463 = vmatpush1.bf16.msra.mxu0 %v1446
        %1464 = vmatprep.subr.bf16.mxu0 0
        %1465 = vmatpush2.bf16.msra.mxu0 0
        %1466 = vmatprep.subr.bf16.mxu0 0
        %1467 = vmatpush2.bf16.msra.mxu0 0
        %1468 = vmatprep.subr.bf16.mxu0 0
        %1469 = vmatpush2.bf16.msra.mxu0 0
        %1470 = vmatprep.subr.bf16.mxu0 0
        %1471 = vmatpush2.bf16.msra.mxu0 0
        %1472 = vmatprep.subr.bf16.mxu0 0
        %1473 = vmatpush2.bf16.msra.mxu0 0
        %1474 = vmatprep.subr.bf16.mxu0 0
        %1475 = vmatpush2.bf16.msra.mxu0 0
        %1476 = vmatprep.subr.bf16.mxu0 0
        %1477 = vmatpush2.bf16.msra.mxu0 0
        %1478 = vmatprep.subr.bf16.mxu0 0
        %1479 = vmatpush2.bf16.msra.mxu0 0
        %1480 = vmatprep.mubr.bf16.mxu0 0
        %1481 = vmatmul.mubr.bf16.gmra.mxu0 %v1443
        %v1482 = vpop.f32.mrf.mxu0
        %v1483 = vadd.f32 0.0, %v1482
        %v1484 = vpop.f32.mrf.mxu0
        %v1485 = vpop.f32.mrf.mxu0
        %v1486 = vpop.f32.mrf.mxu0
        %1487 = vdwg.mxu0
        %v1488 = vadd.f32 %v1273, %v1483
        %v1489 = vadd.f32 %v524, %v1488
        %v1490 = vld [vmem:[%s7] sm:$0x1]
        %v1492 = vlaneseq
        %v1493 = vshrl.u32 %v1492, 7
        %v1494 = vsub.s32 0, %v1493
        %v1495 = vrot.slane %v1490, %v1494
        %v1497 = vadd.f32 %v1489, %v1495
        %v1498 = vld [vmem:[%s8] sm:$0x1]
        %v1499 = vld [vmem:[%s9] sm:$0x1]
        %v1500 = vsel %vm533, %v1497, 0.0
        %1501 = vadd.xlane.f32.xlu0 %v1500
        %v1502 = vpop.xlane.xlu0 %1501
        %v1503 = vmul.f32 %v1502, %v537
        %v1504 = vsub.f32 %v1497, %v1503
        %v1505 = vmul.f32 %v1504, %v1504
        %v1506 = vsel %vm533, %v1505, 0.0
        %1507 = vadd.xlane.f32.xlu0 %v1506
        %v1508 = vpop.xlane.xlu0 %1507
        %v1509 = vmul.f32 %v1508, %v537
        %v1510 = vadd.f32 %v1509, 1e-05
        %v1511 = vrsqrt.pop %v1510
        %v1512 = vmul.f32 %v1504, %v1511
        %v1514 = vlaneseq
        %v1515 = vshrl.u32 %v1514, 7
        %v1516 = vsub.s32 0, %v1515
        %v1517 = vrot.slane %v1498, %v1516
        %v1519 = vmul.f32 %v1512, %v1517
        %v1521 = vlaneseq
        %v1522 = vshrl.u32 %v1521, 7
        %v1523 = vsub.s32 0, %v1522
        %v1524 = vrot.slane %v1499, %v1523
        %v1526 = vadd.f32 %v1519, %v1524
        %v1527 = vpack.c.bf16 %v1526, %v1526
        %v1528 = vld [vmem:[%s10] sm:$0xf]
        %v1529 = vld [vmem:[%s10 + $0x4] sm:$0xf]
        %v1530 = vld [vmem:[%s10 + $0x8] sm:$0xf]
        %v1531 = vld [vmem:[%s10 + $0xc] sm:$0xf]
        %v1532 = vld [vmem:[%s11] sm:$0x1]
        %v1534 = vlaneseq
        %v1535 = vshrl.u32 %v1534, 7
        %v1536 = vsub.s32 0, %v1535
        %v1537 = vrot.slane %v1532, %v1536
        %v1543 = vunpack.c.l.b16 %v1528
        %v1544 = vunpack.c.l.b16 %v1529
        %v1545 = vunpack.c.l.b16 %v1530
        %v1546 = vunpack.c.l.b16 %v1531
        %v1547 = vpack.c.b16 %v1544, %v1543
        %v1548 = vpack.c.b16 %v1546, %v1545
        %v1552 = vsel %vm533, %v1527, 0
        %1554 = vmatprep.subr.bf16.mxu0 0
        %1555 = vmatpush1.bf16.msra.mxu0 0
        %1556 = vmatprep.subr.bf16.mxu0 0
        %1557 = vmatpush1.bf16.msra.mxu0 0
        %1558 = vmatprep.subr.bf16.mxu0 0
        %1559 = vmatpush1.bf16.msra.mxu0 0
        %1560 = vmatprep.subr.bf16.mxu0 0
        %1561 = vmatpush1.bf16.msra.mxu0 0
        %1562 = vmatprep.subr.bf16.mxu0 0
        %1563 = vmatpush1.bf16.msra.mxu0 0
        %1564 = vmatprep.subr.bf16.mxu0 0
        %1565 = vmatpush1.bf16.msra.mxu0 0
        %1566 = vmatprep.subr.bf16.mxu0 0
        %1567 = vmatpush1.bf16.msra.mxu0 %v1548
        %1568 = vmatprep.subr.bf16.mxu0 0
        %1569 = vmatpush1.bf16.msra.mxu0 %v1547
        %1570 = vmatprep.subr.bf16.mxu0 0
        %1571 = vmatpush2.bf16.msra.mxu0 0
        %1572 = vmatprep.subr.bf16.mxu0 0
        %1573 = vmatpush2.bf16.msra.mxu0 0
        %1574 = vmatprep.subr.bf16.mxu0 0
        %1575 = vmatpush2.bf16.msra.mxu0 0
        %1576 = vmatprep.subr.bf16.mxu0 0
        %1577 = vmatpush2.bf16.msra.mxu0 0
        %1578 = vmatprep.subr.bf16.mxu0 0
        %1579 = vmatpush2.bf16.msra.mxu0 0
        %1580 = vmatprep.subr.bf16.mxu0 0
        %1581 = vmatpush2.bf16.msra.mxu0 0
        %1582 = vmatprep.subr.bf16.mxu0 0
        %1583 = vmatpush2.bf16.msra.mxu0 0
        %1584 = vmatprep.subr.bf16.mxu0 0
        %1585 = vmatpush2.bf16.msra.mxu0 0
        %1586 = vmatprep.mubr.bf16.mxu0 0
        %1587 = vmatmul.mubr.bf16.gmra.mxu0 %v1552
        %v1588 = vpop.f32.mrf.mxu0
        %v1589 = vadd.f32 %v1537, %v1588
        %v1590 = vpop.f32.mrf.mxu0
        %v1591 = vpop.f32.mrf.mxu0
        %v1592 = vpop.f32.mrf.mxu0
        %1593 = vdwg.mxu0
        %v1594 = vmul.f32 %v1589, 1.702
        %v1595 = vxor.u32 %v1594, 2147483648
        %v1596 = vmul.f32 %v1595, 1.442695
        %v1597 = vpow.pop %v1596
        %v1598 = vadd.f32 %v1597, 1.0
        %v1599 = vrcp.pop %v1598
        %v1600 = vmul.f32 1.0, %v1599
        %v1601 = vmul.f32 %v1589, %v1600
        %v1602 = vpack.c.bf16 %v1601, %v1601
        %v1603 = vld [vmem:[%s12] sm:$0xf]
        %v1604 = vld [vmem:[%s12 + $0x4] sm:$0xf]
        %v1605 = vld [vmem:[%s12 + $0x8] sm:$0xf]
        %v1606 = vld [vmem:[%s12 + $0xc] sm:$0xf]
        %v1607 = vld [vmem:[%s12 + $0x10] sm:$0xf]
        %v1608 = vld [vmem:[%s12 + $0x14] sm:$0xf]
        %v1609 = vld [vmem:[%s12 + $0x18] sm:$0xf]
        %v1610 = vld [vmem:[%s12 + $0x1c] sm:$0xf]
        %v1611 = vld [vmem:[%s12 + $0x20] sm:$0xf]
        %v1612 = vld [vmem:[%s12 + $0x24] sm:$0xf]
        %v1613 = vld [vmem:[%s12 + $0x28] sm:$0xf]
        %v1614 = vld [vmem:[%s12 + $0x2c] sm:$0xf]
        %v1615 = vld [vmem:[%s12 + $0x30] sm:$0xf]
        %v1616 = vld [vmem:[%s12 + $0x34] sm:$0xf]
        %v1617 = vld [vmem:[%s12 + $0x38] sm:$0xf]
        %v1618 = vld [vmem:[%s12 + $0x3c] sm:$0xf]
        %v1635 = vunpack.c.l.b16 %v1603
        %v1636 = vunpack.c.l.b16 %v1604
        %v1637 = vunpack.c.l.b16 %v1605
        %v1638 = vunpack.c.l.b16 %v1606
        %v1639 = vunpack.c.l.b16 %v1607
        %v1640 = vunpack.c.l.b16 %v1608
        %v1641 = vunpack.c.l.b16 %v1609
        %v1642 = vunpack.c.l.b16 %v1610
        %v1643 = vunpack.c.l.b16 %v1611
        %v1644 = vunpack.c.l.b16 %v1612
        %v1645 = vunpack.c.l.b16 %v1613
        %v1646 = vunpack.c.l.b16 %v1614
        %v1647 = vunpack.c.l.b16 %v1615
        %v1648 = vunpack.c.l.b16 %v1616
        %v1649 = vunpack.c.l.b16 %v1617
        %v1650 = vunpack.c.l.b16 %v1618
        %v1651 = vpack.c.b16 %v1636, %v1635
        %v1652 = vpack.c.b16 %v1638, %v1637
        %v1653 = vpack.c.b16 %v1640, %v1639
        %v1654 = vpack.c.b16 %v1642, %v1641
        %v1655 = vpack.c.b16 %v1644, %v1643
        %v1656 = vpack.c.b16 %v1646, %v1645
        %v1657 = vpack.c.b16 %v1648, %v1647
        %v1658 = vpack.c.b16 %v1650, %v1649
        %1667 = vmatprep.subr.bf16.mxu0 0
        %1668 = vmatpush1.bf16.msra.mxu0 %v1658
        %1669 = vmatprep.subr.bf16.mxu0 0
        %1670 = vmatpush1.bf16.msra.mxu0 %v1657
        %1671 = vmatprep.subr.bf16.mxu0 0
        %1672 = vmatpush1.bf16.msra.mxu0 %v1656
        %1673 = vmatprep.subr.bf16.mxu0 0
        %1674 = vmatpush1.bf16.msra.mxu0 %v1655
        %1675 = vmatprep.subr.bf16.mxu0 0
        %1676 = vmatpush1.bf16.msra.mxu0 %v1654
        %1677 = vmatprep.subr.bf16.mxu0 0
        %1678 = vmatpush1.bf16.msra.mxu0 %v1653
        %1679 = vmatprep.subr.bf16.mxu0 0
        %1680 = vmatpush1.bf16.msra.mxu0 %v1652
        %1681 = vmatprep.subr.bf16.mxu0 0
        %1682 = vmatpush1.bf16.msra.mxu0 %v1651
        %1683 = vmatprep.subr.bf16.mxu0 0
        %1684 = vmatpush2.bf16.msra.mxu0 0
        %1685 = vmatprep.subr.bf16.mxu0 0
        %1686 = vmatpush2.bf16.msra.mxu0 0
        %1687 = vmatprep.subr.bf16.mxu0 0
        %1688 = vmatpush2.bf16.msra.mxu0 0
        %1689 = vmatprep.subr.bf16.mxu0 0
        %1690 = vmatpush2.bf16.msra.mxu0 0
        %1691 = vmatprep.subr.bf16.mxu0 0
        %1692 = vmatpush2.bf16.msra.mxu0 0
        %1693 = vmatprep.subr.bf16.mxu0 0
        %1694 = vmatpush2.bf16.msra.mxu0 0
        %1695 = vmatprep.subr.bf16.mxu0 0
        %1696 = vmatpush2.bf16.msra.mxu0 0
        %1697 = vmatprep.subr.bf16.mxu0 0
        %1698 = vmatpush2.bf16.msra.mxu0 0
        %1699 = vmatprep.mubr.bf16.mxu0 0
        %1700 = vmatmul.mubr.bf16.gmra.mxu0 %v1602
        %v1701 = vpop.f32.mrf.mxu0
        %v1702 = vadd.f32 0.0, %v1701
        %v1703 = vpop.f32.mrf.mxu0
        %v1704 = vpop.f32.mrf.mxu0
        %v1705 = vpop.f32.mrf.mxu0
        %1706 = vdwg.mxu0
        %v1707 = vadd.f32 %v1497, %v1702
        %v1708 = vld [vmem:[%s13] sm:$0x1]
        %v1710 = vlaneseq
        %v1711 = vshrl.u32 %v1710, 7
        %v1712 = vsub.s32 0, %v1711
        %v1713 = vrot.slane %v1708, %v1712
        %v1715 = vadd.f32 %v1707, %v1713
        %s1716 = scalar_lea.vmem %s2, 1
        %v1717 = vld [vmem:[%s1716] sm:$0x1]
        %s1718 = scalar_lea.vmem %s3, 1
        %v1719 = vld [vmem:[%s1718] sm:$0x1]
        %v1720 = vsel %vm533, %v1715, 0.0
        %1721 = vadd.xlane.f32.xlu0 %v1720
        %v1722 = vpop.xlane.xlu0 %1721
        %v1723 = vmul.f32 %v1722, %v537
        %v1724 = vsub.f32 %v1715, %v1723
        %v1725 = vmul.f32 %v1724, %v1724
        %v1726 = vsel %vm533, %v1725, 0.0
        %1727 = vadd.xlane.f32.xlu0 %v1726
        %v1728 = vpop.xlane.xlu0 %1727
        %v1729 = vmul.f32 %v1728, %v537
        %v1730 = vadd.f32 %v1729, 1e-05
        %v1731 = vrsqrt.pop %v1730
        %v1732 = vmul.f32 %v1724, %v1731
        %v1734 = vlaneseq
        %v1735 = vshrl.u32 %v1734, 7
        %v1736 = vsub.s32 0, %v1735
        %v1737 = vrot.slane %v1717, %v1736
        %v1739 = vmul.f32 %v1732, %v1737
        %v1741 = vlaneseq
        %v1742 = vshrl.u32 %v1741, 7
        %v1743 = vsub.s32 0, %v1742
        %v1744 = vrot.slane %v1719, %v1743
        %v1746 = vadd.f32 %v1739, %v1744
        %v1747 = vpack.c.bf16 %v1746, %v1746
        %s1748 = scalar_lea.vmem %s4, 16
        %v1749 = vld [vmem:[%s1748] sm:$0xf]
        %v1750 = vld [vmem:[%s1748 + $0x4] sm:$0xf]
        %v1751 = vld [vmem:[%s1748 + $0x8] sm:$0xf]
        %v1752 = vld [vmem:[%s1748 + $0xc] sm:$0xf]
        %s1753 = scalar_lea.vmem %s5, 1
        %v1754 = vld [vmem:[%s1753] sm:$0x1]
        %v1756 = vlaneseq
        %v1757 = vshrl.u32 %v1756, 7
        %v1758 = vsub.s32 0, %v1757
        %v1759 = vrot.slane %v1754, %v1758
        %v1765 = vunpack.c.l.b16 %v1749
        %v1766 = vunpack.c.l.b16 %v1750
        %v1767 = vunpack.c.l.b16 %v1751
        %v1768 = vunpack.c.l.b16 %v1752
        %v1769 = vpack.c.b16 %v1766, %v1765
        %v1770 = vpack.c.b16 %v1768, %v1767
        %v1774 = vsel %vm533, %v1747, 0
        %1776 = vmatprep.subr.bf16.mxu0 0
        %1777 = vmatpush1.bf16.msra.mxu0 0
        %1778 = vmatprep.subr.bf16.mxu0 0
        %1779 = vmatpush1.bf16.msra.mxu0 0
        %1780 = vmatprep.subr.bf16.mxu0 0
        %1781 = vmatpush1.bf16.msra.mxu0 0
        %1782 = vmatprep.subr.bf16.mxu0 0
        %1783 = vmatpush1.bf16.msra.mxu0 0
        %1784 = vmatprep.subr.bf16.mxu0 0
        %1785 = vmatpush1.bf16.msra.mxu0 0
        %1786 = vmatprep.subr.bf16.mxu0 0
        %1787 = vmatpush1.bf16.msra.mxu0 0
        %1788 = vmatprep.subr.bf16.mxu0 0
        %1789 = vmatpush1.bf16.msra.mxu0 %v1770
        %1790 = vmatprep.subr.bf16.mxu0 0
        %1791 = vmatpush1.bf16.msra.mxu0 %v1769
        %1792 = vmatprep.subr.bf16.mxu0 0
        %1793 = vmatpush2.bf16.msra.mxu0 0
        %1794 = vmatprep.subr.bf16.mxu0 0
        %1795 = vmatpush2.bf16.msra.mxu0 0
        %1796 = vmatprep.subr.bf16.mxu0 0
        %1797 = vmatpush2.bf16.msra.mxu0 0
        %1798 = vmatprep.subr.bf16.mxu0 0
        %1799 = vmatpush2.bf16.msra.mxu0 0
        %1800 = vmatprep.subr.bf16.mxu0 0
        %1801 = vmatpush2.bf16.msra.mxu0 0
        %1802 = vmatprep.subr.bf16.mxu0 0
        %1803 = vmatpush2.bf16.msra.mxu0 0
        %1804 = vmatprep.subr.bf16.mxu0 0
        %1805 = vmatpush2.bf16.msra.mxu0 0
        %1806 = vmatprep.subr.bf16.mxu0 0
        %1807 = vmatpush2.bf16.msra.mxu0 0
        %1808 = vmatprep.mubr.bf16.mxu0 0
        %1809 = vmatmul.mubr.bf16.gmra.mxu0 %v1774
        %v1810 = vpop.f32.mrf.mxu0
        %v1811 = vadd.f32 %v1759, %v1810
        %v1812 = vpop.f32.mrf.mxu0
        %v1813 = vpop.f32.mrf.mxu0
        %v1814 = vpop.f32.mrf.mxu0
        %1815 = vdwg.mxu0
        %v1816 = vmul.f32 %v1811, 0.35355338
        %1818 = vrot.lane.b32.xlu0 %v1811, 96
        %v1819 = vpop.permute.xlu0 %1818
        %v1821 = vsel %vm633, %v1816, 0
        %v1823 = vsel %vm633, %v1819, 0
        %1825 = vmatprep.subr.mxu0 0.0
        %1826 = vmatpush1.xpose.msra.mxu0 0.0
        %1827 = vmatprep.subr.mxu0 0.0
        %1828 = vmatpush1.xpose.msra.mxu0 0.0
        %1829 = vmatprep.subr.mxu0 0.0
        %1830 = vmatpush1.xpose.msra.mxu0 0.0
        %1831 = vmatprep.subr.mxu0 0.0
        %1832 = vmatpush1.xpose.msra.mxu0 0.0
        %1833 = vmatprep.subr.mxu0 0.0
        %1834 = vmatpush1.xpose.msra.mxu0 0.0
        %1835 = vmatprep.subr.mxu0 0.0
        %1836 = vmatpush1.xpose.msra.mxu0 0.0
        %1837 = vmatprep.subr.mxu0 0.0
        %1838 = vmatpush1.xpose.msra.mxu0 0.0
        %1839 = vmatprep.subr.mxu0 0.0
        %1840 = vmatpush1.xpose.msra.mxu0 0.0
        %1841 = vmatprep.subr.mxu0 0.0
        %1842 = vmatpush1.xpose.msra.mxu0 0.0
        %1843 = vmatprep.subr.mxu0 0.0
        %1844 = vmatpush1.xpose.msra.mxu0 0.0
        %1845 = vmatprep.subr.mxu0 0.0
        %1846 = vmatpush1.xpose.msra.mxu0 0.0
        %1847 = vmatprep.subr.mxu0 0.0
        %1848 = vmatpush1.xpose.msra.mxu0 0.0
        %1849 = vmatprep.subr.mxu0 0.0
        %1850 = vmatpush1.xpose.msra.mxu0 0.0
        %1851 = vmatprep.subr.mxu0 0.0
        %1852 = vmatpush1.xpose.msra.mxu0 0.0
        %1853 = vmatprep.subr.mxu0 0.0
        %1854 = vmatpush1.xpose.msra.mxu0 0.0
        %1855 = vmatprep.subr.mxu0 0.0
        %1856 = vmatpush1.xpose.msra.mxu0 %v1823
        %1857 = vmatprep.subr.mxu0 0.0
        %1858 = vmatpush2.xpose.msra.mxu0 0.0
        %1859 = vmatprep.subr.mxu0 0.0
        %1860 = vmatpush2.xpose.msra.mxu0 0.0
        %1861 = vmatprep.subr.mxu0 0.0
        %1862 = vmatpush2.xpose.msra.mxu0 0.0
        %1863 = vmatprep.subr.mxu0 0.0
        %1864 = vmatpush2.xpose.msra.mxu0 0.0
        %1865 = vmatprep.subr.mxu0 0.0
        %1866 = vmatpush2.xpose.msra.mxu0 0.0
        %1867 = vmatprep.subr.mxu0 0.0
        %1868 = vmatpush2.xpose.msra.mxu0 0.0
        %1869 = vmatprep.subr.mxu0 0.0
        %1870 = vmatpush2.xpose.msra.mxu0 0.0
        %1871 = vmatprep.subr.mxu0 0.0
        %1872 = vmatpush2.xpose.msra.mxu0 0.0
        %1873 = vmatprep.subr.mxu0 0.0
        %1874 = vmatpush2.xpose.msra.mxu0 0.0
        %1875 = vmatprep.subr.mxu0 0.0
        %1876 = vmatpush2.xpose.msra.mxu0 0.0
        %1877 = vmatprep.subr.mxu0 0.0
        %1878 = vmatpush2.xpose.msra.mxu0 0.0
        %1879 = vmatprep.subr.mxu0 0.0
        %1880 = vmatpush2.xpose.msra.mxu0 0.0
        %1881 = vmatprep.subr.mxu0 0.0
        %1882 = vmatpush2.xpose.msra.mxu0 0.0
        %1883 = vmatprep.subr.mxu0 0.0
        %1884 = vmatpush2.xpose.msra.mxu0 0.0
        %1885 = vmatprep.subr.mxu0 0.0
        %1886 = vmatpush2.xpose.msra.mxu0 0.0
        %1887 = vmatprep.subr.mxu0 0.0
        %1888 = vmatpush2.xpose.msra.mxu0 0.0
        %1889 = vmatprep.mubr.f32.mxu0 0.0
        %1890 = vmatmul.mubr.f32.gmra.mxu0 %v1821
        %v1891 = vpop.f32.mrf.mxu0
        %v1892 = vadd.f32 %v530, %v1891
        %v1893 = vpop.f32.mrf.mxu0
        %1894 = vdwg.mxu0
        %v1895 = vsel %vm633, %v1892, -inf
        %1896 = vmax.xlane.f32.xlu0 %v1895
        %v1897 = vpop.xlane.xlu0 %1896
        %v1898 = vsub.f32 %v1892, %v1897
        %v1899 = vmul.f32 %v1898, 1.442695
        %v1900 = vpow.pop %v1899
        %v1901 = vsel %vm633, %v1900, 0.0
        %1902 = vadd.xlane.f32.xlu0 %v1901
        %v1903 = vpop.xlane.xlu0 %1902
        %v1904 = vrcp.pop %v1903
        %v1905 = vmul.f32 %v1900, %v1904
        %1906 = vrot.lane.b32.xlu0 %v1811, 64
        %v1907 = vpop.permute.xlu0 %1906
        %v1910 = vsel %vm633, %v1905, 0
        %1912 = vmatprep.subr.mxu0 0.0
        %1913 = vmatpush1.msra.mxu0 0.0
        %1914 = vmatprep.subr.mxu0 0.0
        %1915 = vmatpush1.msra.mxu0 0.0
        %1916 = vmatprep.subr.mxu0 0.0
        %1917 = vmatpush1.msra.mxu0 0.0
        %1918 = vmatprep.subr.mxu0 0.0
        %1919 = vmatpush1.msra.mxu0 0.0
        %1920 = vmatprep.subr.mxu0 0.0
        %1921 = vmatpush1.msra.mxu0 0.0
        %1922 = vmatprep.subr.mxu0 0.0
        %1923 = vmatpush1.msra.mxu0 0.0
        %1924 = vmatprep.subr.mxu0 0.0
        %1925 = vmatpush1.msra.mxu0 0.0
        %1926 = vmatprep.subr.mxu0 0.0
        %1927 = vmatpush1.msra.mxu0 0.0
        %1928 = vmatprep.subr.mxu0 0.0
        %1929 = vmatpush1.msra.mxu0 0.0
        %1930 = vmatprep.subr.mxu0 0.0
        %1931 = vmatpush1.msra.mxu0 0.0
        %1932 = vmatprep.subr.mxu0 0.0
        %1933 = vmatpush1.msra.mxu0 0.0
        %1934 = vmatprep.subr.mxu0 0.0
        %1935 = vmatpush1.msra.mxu0 0.0
        %1936 = vmatprep.subr.mxu0 0.0
        %1937 = vmatpush1.msra.mxu0 0.0
        %1938 = vmatprep.subr.mxu0 0.0
        %1939 = vmatpush1.msra.mxu0 0.0
        %1940 = vmatprep.subr.mxu0 0.0
        %1941 = vmatpush1.msra.mxu0 0.0
        %1942 = vmatprep.subr.mxu0 0.0
        %1943 = vmatpush1.msra.mxu0 %v1907
        %1944 = vmatprep.subr.mxu0 0.0
        %1945 = vmatpush2.msra.mxu0 0.0
        %1946 = vmatprep.subr.mxu0 0.0
        %1947 = vmatpush2.msra.mxu0 0.0
        %1948 = vmatprep.subr.mxu0 0.0
        %1949 = vmatpush2.msra.mxu0 0.0
        %1950 = vmatprep.subr.mxu0 0.0
        %1951 = vmatpush2.msra.mxu0 0.0
        %1952 = vmatprep.subr.mxu0 0.0
        %1953 = vmatpush2.msra.mxu0 0.0
        %1954 = vmatprep.subr.mxu0 0.0
        %1955 = vmatpush2.msra.mxu0 0.0
        %1956 = vmatprep.subr.mxu0 0.0
        %1957 = vmatpush2.msra.mxu0 0.0
        %1958 = vmatprep.subr.mxu0 0.0
        %1959 = vmatpush2.msra.mxu0 0.0
        %1960 = vmatprep.subr.mxu0 0.0
        %1961 = vmatpush2.msra.mxu0 0.0
        %1962 = vmatprep.subr.mxu0 0.0
        %1963 = vmatpush2.msra.mxu0 0.0
        %1964 = vmatprep.subr.mxu0 0.0
        %1965 = vmatpush2.msra.mxu0 0.0
        %1966 = vmatprep.subr.mxu0 0.0
        %1967 = vmatpush2.msra.mxu0 0.0
        %1968 = vmatprep.subr.mxu0 0.0
        %1969 = vmatpush2.msra.mxu0 0.0
        %1970 = vmatprep.subr.mxu0 0.0
        %1971 = vmatpush2.msra.mxu0 0.0
        %1972 = vmatprep.subr.mxu0 0.0
        %1973 = vmatpush2.msra.mxu0 0.0
        %1974 = vmatprep.subr.mxu0 0.0
        %1975 = vmatpush2.msra.mxu0 0.0
        %1976 = vmatprep.mubr.f32.mxu0 0.0
        %1977 = vmatmul.mubr.f32.gmra.mxu0 %v1910
        %v1978 = vpop.f32.mrf.mxu0
        %v1979 = vadd.f32 0.0, %v1978
        %v1980 = vpop.f32.mrf.mxu0
        %1981 = vdwg.mxu0
        %v1982 = vpack.c.bf16 %v1979, %v1979
        %s1983 = scalar_lea.vmem %s6, 16
        %v1984 = vld [vmem:[%s1983] sm:$0xf]
        %1985 = vrot.lane.b32.xlu0 %v1816, 120
        %v1986 = vpop.permute.xlu0 %1985
        %1987 = vrot.lane.b32.xlu0 %v1811, 88
        %v1988 = vpop.permute.xlu0 %1987
        %v1989 = vsel %vm633, %v1986, 0
        %v1991 = vsel %vm633, %v1988, 0
        %1993 = vmatprep.subr.mxu0 0.0
        %1994 = vmatpush1.xpose.msra.mxu0 0.0
        %1995 = vmatprep.subr.mxu0 0.0
        %1996 = vmatpush1.xpose.msra.mxu0 0.0
        %1997 = vmatprep.subr.mxu0 0.0
        %1998 = vmatpush1.xpose.msra.mxu0 0.0
        %1999 = vmatprep.subr.mxu0 0.0
        %2000 = vmatpush1.xpose.msra.mxu0 0.0
        %2001 = vmatprep.subr.mxu0 0.0
        %2002 = vmatpush1.xpose.msra.mxu0 0.0
        %2003 = vmatprep.subr.mxu0 0.0
        %2004 = vmatpush1.xpose.msra.mxu0 0.0
        %2005 = vmatprep.subr.mxu0 0.0
        %2006 = vmatpush1.xpose.msra.mxu0 0.0
        %2007 = vmatprep.subr.mxu0 0.0
        %2008 = vmatpush1.xpose.msra.mxu0 0.0
        %2009 = vmatprep.subr.mxu0 0.0
        %2010 = vmatpush1.xpose.msra.mxu0 0.0
        %2011 = vmatprep.subr.mxu0 0.0
        %2012 = vmatpush1.xpose.msra.mxu0 0.0
        %2013 = vmatprep.subr.mxu0 0.0
        %2014 = vmatpush1.xpose.msra.mxu0 0.0
        %2015 = vmatprep.subr.mxu0 0.0
        %2016 = vmatpush1.xpose.msra.mxu0 0.0
        %2017 = vmatprep.subr.mxu0 0.0
        %2018 = vmatpush1.xpose.msra.mxu0 0.0
        %2019 = vmatprep.subr.mxu0 0.0
        %2020 = vmatpush1.xpose.msra.mxu0 0.0
        %2021 = vmatprep.subr.mxu0 0.0
        %2022 = vmatpush1.xpose.msra.mxu0 0.0
        %2023 = vmatprep.subr.mxu0 0.0
        %2024 = vmatpush1.xpose.msra.mxu0 %v1991
        %2025 = vmatprep.subr.mxu0 0.0
        %2026 = vmatpush2.xpose.msra.mxu0 0.0
        %2027 = vmatprep.subr.mxu0 0.0
        %2028 = vmatpush2.xpose.msra.mxu0 0.0
        %2029 = vmatprep.subr.mxu0 0.0
        %2030 = vmatpush2.xpose.msra.mxu0 0.0
        %2031 = vmatprep.subr.mxu0 0.0
        %2032 = vmatpush2.xpose.msra.mxu0 0.0
        %2033 = vmatprep.subr.mxu0 0.0
        %2034 = vmatpush2.xpose.msra.mxu0 0.0
        %2035 = vmatprep.subr.mxu0 0.0
        %2036 = vmatpush2.xpose.msra.mxu0 0.0
        %2037 = vmatprep.subr.mxu0 0.0
        %2038 = vmatpush2.xpose.msra.mxu0 0.0
        %2039 = vmatprep.subr.mxu0 0.0
        %2040 = vmatpush2.xpose.msra.mxu0 0.0
        %2041 = vmatprep.subr.mxu0 0.0
        %2042 = vmatpush2.xpose.msra.mxu0 0.0
        %2043 = vmatprep.subr.mxu0 0.0
        %2044 = vmatpush2.xpose.msra.mxu0 0.0
        %2045 = vmatprep.subr.mxu0 0.0
        %2046 = vmatpush2.xpose.msra.mxu0 0.0
        %2047 = vmatprep.subr.mxu0 0.0
        %2048 = vmatpush2.xpose.msra.mxu0 0.0
        %2049 = vmatprep.subr.mxu0 0.0
        %2050 = vmatpush2.xpose.msra.mxu0 0.0
        %2051 = vmatprep.subr.mxu0 0.0
        %2052 = vmatpush2.xpose.msra.mxu0 0.0
        %2053 = vmatprep.subr.mxu0 0.0
        %2054 = vmatpush2.xpose.msra.mxu0 0.0
        %2055 = vmatprep.subr.mxu0 0.0
        %2056 = vmatpush2.xpose.msra.mxu0 0.0
        %2057 = vmatprep.mubr.f32.mxu0 0.0
        %2058 = vmatmul.mubr.f32.gmra.mxu0 %v1989
        %v2059 = vpop.f32.mrf.mxu0
        %v2060 = vadd.f32 %v530, %v2059
        %v2061 = vpop.f32.mrf.mxu0
        %2062 = vdwg.mxu0
        %v2063 = vsel %vm633, %v2060, -inf
        %2064 = vmax.xlane.f32.xlu0 %v2063
        %v2065 = vpop.xlane.xlu0 %2064
        %v2066 = vsub.f32 %v2060, %v2065
        %v2067 = vmul.f32 %v2066, 1.442695
        %v2068 = vpow.pop %v2067
        %v2069 = vsel %vm633, %v2068, 0.0
        %2070 = vadd.xlane.f32.xlu0 %v2069
        %v2071 = vpop.xlane.xlu0 %2070
        %v2072 = vrcp.pop %v2071
        %v2073 = vmul.f32 %v2068, %v2072
        %2074 = vrot.lane.b32.xlu0 %v1811, 56
        %v2075 = vpop.permute.xlu0 %2074
        %v2078 = vsel %vm633, %v2073, 0
        %2080 = vmatprep.subr.mxu0 0.0
        %2081 = vmatpush1.msra.mxu0 0.0
        %2082 = vmatprep.subr.mxu0 0.0
        %2083 = vmatpush1.msra.mxu0 0.0
        %2084 = vmatprep.subr.mxu0 0.0
        %2085 = vmatpush1.msra.mxu0 0.0
        %2086 = vmatprep.subr.mxu0 0.0
        %2087 = vmatpush1.msra.mxu0 0.0
        %2088 = vmatprep.subr.mxu0 0.0
        %2089 = vmatpush1.msra.mxu0 0.0
        %2090 = vmatprep.subr.mxu0 0.0
        %2091 = vmatpush1.msra.mxu0 0.0
        %2092 = vmatprep.subr.mxu0 0.0
        %2093 = vmatpush1.msra.mxu0 0.0
        %2094 = vmatprep.subr.mxu0 0.0
        %2095 = vmatpush1.msra.mxu0 0.0
        %2096 = vmatprep.subr.mxu0 0.0
        %2097 = vmatpush1.msra.mxu0 0.0
        %2098 = vmatprep.subr.mxu0 0.0
        %2099 = vmatpush1.msra.mxu0 0.0
        %2100 = vmatprep.subr.mxu0 0.0
        %2101 = vmatpush1.msra.mxu0 0.0
        %2102 = vmatprep.subr.mxu0 0.0
        %2103 = vmatpush1.msra.mxu0 0.0
        %2104 = vmatprep.subr.mxu0 0.0
        %2105 = vmatpush1.msra.mxu0 0.0
        %2106 = vmatprep.subr.mxu0 0.0
        %2107 = vmatpush1.msra.mxu0 0.0
        %2108 = vmatprep.subr.mxu0 0.0
        %2109 = vmatpush1.msra.mxu0 0.0
        %2110 = vmatprep.subr.mxu0 0.0
        %2111 = vmatpush1.msra.mxu0 %v2075
        %2112 = vmatprep.subr.mxu0 0.0
        %2113 = vmatpush2.msra.mxu0 0.0
        %2114 = vmatprep.subr.mxu0 0.0
        %2115 = vmatpush2.msra.mxu0 0.0
        %2116 = vmatprep.subr.mxu0 0.0
        %2117 = vmatpush2.msra.mxu0 0.0
        %2118 = vmatprep.subr.mxu0 0.0
        %2119 = vmatpush2.msra.mxu0 0.0
        %2120 = vmatprep.subr.mxu0 0.0
        %2121 = vmatpush2.msra.mxu0 0.0
        %2122 = vmatprep.subr.mxu0 0.0
        %2123 = vmatpush2.msra.mxu0 0.0
        %2124 = vmatprep.subr.mxu0 0.0
        %2125 = vmatpush2.msra.mxu0 0.0
        %2126 = vmatprep.subr.mxu0 0.0
        %2127 = vmatpush2.msra.mxu0 0.0
        %2128 = vmatprep.subr.mxu0 0.0
        %2129 = vmatpush2.msra.mxu0 0.0
        %2130 = vmatprep.subr.mxu0 0.0
        %2131 = vmatpush2.msra.mxu0 0.0
        %2132 = vmatprep.subr.mxu0 0.0
        %2133 = vmatpush2.msra.mxu0 0.0
        %2134 = vmatprep.subr.mxu0 0.0
        %2135 = vmatpush2.msra.mxu0 0.0
        %2136 = vmatprep.subr.mxu0 0.0
        %2137 = vmatpush2.msra.mxu0 0.0
        %2138 = vmatprep.subr.mxu0 0.0
        %2139 = vmatpush2.msra.mxu0 0.0
        %2140 = vmatprep.subr.mxu0 0.0
        %2141 = vmatpush2.msra.mxu0 0.0
        %2142 = vmatprep.subr.mxu0 0.0
        %2143 = vmatpush2.msra.mxu0 0.0
        %2144 = vmatprep.mubr.f32.mxu0 0.0
        %2145 = vmatmul.mubr.f32.gmra.mxu0 %v2078
        %v2146 = vpop.f32.mrf.mxu0
        %v2147 = vadd.f32 0.0, %v2146
        %v2148 = vpop.f32.mrf.mxu0
        %2149 = vdwg.mxu0
        %v2150 = vpack.c.bf16 %v2147, %v2147
        %s2151 = scalar_lea.vmem %s6, 20
        %v2152 = vld [vmem:[%s2151] sm:$0xf]
        %v2154 = vsel %vm633, %v2150, 0
        %v2157 = vsel %vm969, %v2152, 0
        %2159 = vmatprep.subr.bf16.mxu0 0
        %2160 = vmatpush1.bf16.msra.mxu0 0
        %2161 = vmatprep.subr.bf16.mxu0 0
        %2162 = vmatpush1.bf16.msra.mxu0 0
        %2163 = vmatprep.subr.bf16.mxu0 0
        %2164 = vmatpush1.bf16.msra.mxu0 0
        %2165 = vmatprep.subr.bf16.mxu0 0
        %2166 = vmatpush1.bf16.msra.mxu0 0
        %2167 = vmatprep.subr.bf16.mxu0 0
        %2168 = vmatpush1.bf16.msra.mxu0 0
        %2169 = vmatprep.subr.bf16.mxu0 0
        %2170 = vmatpush1.bf16.msra.mxu0 0
        %2171 = vmatprep.subr.bf16.mxu0 0
        %2172 = vmatpush1.bf16.msra.mxu0 0
        %2173 = vmatprep.subr.bf16.mxu0 0
        %2174 = vmatpush1.bf16.msra.mxu0 %v2157
        %2175 = vmatprep.subr.bf16.mxu0 0
        %2176 = vmatpush2.bf16.msra.mxu0 0
        %2177 = vmatprep.subr.bf16.mxu0 0
        %2178 = vmatpush2.bf16.msra.mxu0 0
        %2179 = vmatprep.subr.bf16.mxu0 0
        %2180 = vmatpush2.bf16.msra.mxu0 0
        %2181 = vmatprep.subr.bf16.mxu0 0
        %2182 = vmatpush2.bf16.msra.mxu0 0
        %2183 = vmatprep.subr.bf16.mxu0 0
        %2184 = vmatpush2.bf16.msra.mxu0 0
        %2185 = vmatprep.subr.bf16.mxu0 0
        %2186 = vmatpush2.bf16.msra.mxu0 0
        %2187 = vmatprep.subr.bf16.mxu0 0
        %2188 = vmatpush2.bf16.msra.mxu0 0
        %2189 = vmatprep.subr.bf16.mxu0 0
        %2190 = vmatpush2.bf16.msra.mxu0 0
        %2191 = vmatprep.mubr.bf16.mxu0 0
        %2192 = vmatmul.mubr.bf16.gmra.mxu0 %v2154
        %v2193 = vpop.f32.mrf.mxu0
        %v2194 = vadd.f32 0.0, %v2193
        %v2195 = vpop.f32.mrf.mxu0
        %v2196 = vpop.f32.mrf.mxu0
        %v2197 = vpop.f32.mrf.mxu0
        %2198 = vdwg.mxu0
        %v2200 = vsel %vm633, %v1982, 0
        %v2203 = vsel %vm969, %v1984, 0
        %2205 = vmatprep.subr.bf16.mxu0 0
        %2206 = vmatpush1.bf16.msra.mxu0 0
        %2207 = vmatprep.subr.bf16.mxu0 0
        %2208 = vmatpush1.bf16.msra.mxu0 0
        %2209 = vmatprep.subr.bf16.mxu0 0
        %2210 = vmatpush1.bf16.msra.mxu0 0
        %2211 = vmatprep.subr.bf16.mxu0 0
        %2212 = vmatpush1.bf16.msra.mxu0 0
        %2213 = vmatprep.subr.bf16.mxu0 0
        %2214 = vmatpush1.bf16.msra.mxu0 0
        %2215 = vmatprep.subr.bf16.mxu0 0
        %2216 = vmatpush1.bf16.msra.mxu0 0
        %2217 = vmatprep.subr.bf16.mxu0 0
        %2218 = vmatpush1.bf16.msra.mxu0 0
        %2219 = vmatprep.subr.bf16.mxu0 0
        %2220 = vmatpush1.bf16.msra.mxu0 %v2203
        %2221 = vmatprep.subr.bf16.mxu0 0
        %2222 = vmatpush2.bf16.msra.mxu0 0
        %2223 = vmatprep.subr.bf16.mxu0 0
        %2224 = vmatpush2.bf16.msra.mxu0 0
        %2225 = vmatprep.subr.bf16.mxu0 0
        %2226 = vmatpush2.bf16.msra.mxu0 0
        %2227 = vmatprep.subr.bf16.mxu0 0
        %2228 = vmatpush2.bf16.msra.mxu0 0
        %2229 = vmatprep.subr.bf16.mxu0 0
        %2230 = vmatpush2.bf16.msra.mxu0 0
        %2231 = vmatprep.subr.bf16.mxu0 0
        %2232 = vmatpush2.bf16.msra.mxu0 0
        %2233 = vmatprep.subr.bf16.mxu0 0
        %2234 = vmatpush2.bf16.msra.mxu0 0
        %2235 = vmatprep.subr.bf16.mxu0 0
        %2236 = vmatpush2.bf16.msra.mxu0 0
        %2237 = vmatprep.mubr.bf16.mxu0 0
        %2238 = vmatmul.mubr.bf16.gmra.mxu0 %v2200
        %v2239 = vpop.f32.mrf.mxu0
        %v2240 = vadd.f32 %v2194, %v2239
        %v2241 = vpop.f32.mrf.mxu0
        %v2242 = vpop.f32.mrf.mxu0
        %v2243 = vpop.f32.mrf.mxu0
        %2244 = vdwg.mxu0
        %2245 = vrot.lane.b32.xlu0 %v1816, 112
        %v2246 = vpop.permute.xlu0 %2245
        %2247 = vrot.lane.b32.xlu0 %v1811, 80
        %v2248 = vpop.permute.xlu0 %2247
        %v2249 = vsel %vm633, %v2246, 0
        %v2251 = vsel %vm633, %v2248, 0
        %2253 = vmatprep.subr.mxu0 0.0
        %2254 = vmatpush1.xpose.msra.mxu0 0.0
        %2255 = vmatprep.subr.mxu0 0.0
        %2256 = vmatpush1.xpose.msra.mxu0 0.0
        %2257 = vmatprep.subr.mxu0 0.0
        %2258 = vmatpush1.xpose.msra.mxu0 0.0
        %2259 = vmatprep.subr.mxu0 0.0
        %2260 = vmatpush1.xpose.msra.mxu0 0.0
        %2261 = vmatprep.subr.mxu0 0.0
        %2262 = vmatpush1.xpose.msra.mxu0 0.0
        %2263 = vmatprep.subr.mxu0 0.0
        %2264 = vmatpush1.xpose.msra.mxu0 0.0
        %2265 = vmatprep.subr.mxu0 0.0
        %2266 = vmatpush1.xpose.msra.mxu0 0.0
        %2267 = vmatprep.subr.mxu0 0.0
        %2268 = vmatpush1.xpose.msra.mxu0 0.0
        %2269 = vmatprep.subr.mxu0 0.0
        %2270 = vmatpush1.xpose.msra.mxu0 0.0
        %2271 = vmatprep.subr.mxu0 0.0
        %2272 = vmatpush1.xpose.msra.mxu0 0.0
        %2273 = vmatprep.subr.mxu0 0.0
        %2274 = vmatpush1.xpose.msra.mxu0 0.0
        %2275 = vmatprep.subr.mxu0 0.0
        %2276 = vmatpush1.xpose.msra.mxu0 0.0
        %2277 = vmatprep.subr.mxu0 0.0
        %2278 = vmatpush1.xpose.msra.mxu0 0.0
        %2279 = vmatprep.subr.mxu0 0.0
        %2280 = vmatpush1.xpose.msra.mxu0 0.0
        %2281 = vmatprep.subr.mxu0 0.0
        %2282 = vmatpush1.xpose.msra.mxu0 0.0
        %2283 = vmatprep.subr.mxu0 0.0
        %2284 = vmatpush1.xpose.msra.mxu0 %v2251
        %2285 = vmatprep.subr.mxu0 0.0
        %2286 = vmatpush2.xpose.msra.mxu0 0.0
        %2287 = vmatprep.subr.mxu0 0.0
        %2288 = vmatpush2.xpose.msra.mxu0 0.0
        %2289 = vmatprep.subr.mxu0 0.0
        %2290 = vmatpush2.xpose.msra.mxu0 0.0
        %2291 = vmatprep.subr.mxu0 0.0
        %2292 = vmatpush2.xpose.msra.mxu0 0.0
        %2293 = vmatprep.subr.mxu0 0.0
        %2294 = vmatpush2.xpose.msra.mxu0 0.0
        %2295 = vmatprep.subr.mxu0 0.0
        %2296 = vmatpush2.xpose.msra.mxu0 0.0
        %2297 = vmatprep.subr.mxu0 0.0
        %2298 = vmatpush2.xpose.msra.mxu0 0.0
        %2299 = vmatprep.subr.mxu0 0.0
        %2300 = vmatpush2.xpose.msra.mxu0 0.0
        %2301 = vmatprep.subr.mxu0 0.0
        %2302 = vmatpush2.xpose.msra.mxu0 0.0
        %2303 = vmatprep.subr.mxu0 0.0
        %2304 = vmatpush2.xpose.msra.mxu0 0.0
        %2305 = vmatprep.subr.mxu0 0.0
        %2306 = vmatpush2.xpose.msra.mxu0 0.0
        %2307 = vmatprep.subr.mxu0 0.0
        %2308 = vmatpush2.xpose.msra.mxu0 0.0
        %2309 = vmatprep.subr.mxu0 0.0
        %2310 = vmatpush2.xpose.msra.mxu0 0.0
        %2311 = vmatprep.subr.mxu0 0.0
        %2312 = vmatpush2.xpose.msra.mxu0 0.0
        %2313 = vmatprep.subr.mxu0 0.0
        %2314 = vmatpush2.xpose.msra.mxu0 0.0
        %2315 = vmatprep.subr.mxu0 0.0
        %2316 = vmatpush2.xpose.msra.mxu0 0.0
        %2317 = vmatprep.mubr.f32.mxu0 0.0
        %2318 = vmatmul.mubr.f32.gmra.mxu0 %v2249
        %v2319 = vpop.f32.mrf.mxu0
        %v2320 = vadd.f32 %v530, %v2319
        %v2321 = vpop.f32.mrf.mxu0
        %2322 = vdwg.mxu0
        %v2323 = vsel %vm633, %v2320, -inf
        %2324 = vmax.xlane.f32.xlu0 %v2323
        %v2325 = vpop.xlane.xlu0 %2324
        %v2326 = vsub.f32 %v2320, %v2325
        %v2327 = vmul.f32 %v2326, 1.442695
        %v2328 = vpow.pop %v2327
        %v2329 = vsel %vm633, %v2328, 0.0
        %2330 = vadd.xlane.f32.xlu0 %v2329
        %v2331 = vpop.xlane.xlu0 %2330
        %v2332 = vrcp.pop %v2331
        %v2333 = vmul.f32 %v2328, %v2332
        %2334 = vrot.lane.b32.xlu0 %v1811, 48
        %v2335 = vpop.permute.xlu0 %2334
        %v2338 = vsel %vm633, %v2333, 0
        %2340 = vmatprep.subr.mxu0 0.0
        %2341 = vmatpush1.msra.mxu0 0.0
        %2342 = vmatprep.subr.mxu0 0.0
        %2343 = vmatpush1.msra.mxu0 0.0
        %2344 = vmatprep.subr.mxu0 0.0
        %2345 = vmatpush1.msra.mxu0 0.0
        %2346 = vmatprep.subr.mxu0 0.0
        %2347 = vmatpush1.msra.mxu0 0.0
        %2348 = vmatprep.subr.mxu0 0.0
        %2349 = vmatpush1.msra.mxu0 0.0
        %2350 = vmatprep.subr.mxu0 0.0
        %2351 = vmatpush1.msra.mxu0 0.0
        %2352 = vmatprep.subr.mxu0 0.0
        %2353 = vmatpush1.msra.mxu0 0.0
        %2354 = vmatprep.subr.mxu0 0.0
        %2355 = vmatpush1.msra.mxu0 0.0
        %2356 = vmatprep.subr.mxu0 0.0
        %2357 = vmatpush1.msra.mxu0 0.0
        %2358 = vmatprep.subr.mxu0 0.0
        %2359 = vmatpush1.msra.mxu0 0.0
        %2360 = vmatprep.subr.mxu0 0.0
        %2361 = vmatpush1.msra.mxu0 0.0
        %2362 = vmatprep.subr.mxu0 0.0
        %2363 = vmatpush1.msra.mxu0 0.0
        %2364 = vmatprep.subr.mxu0 0.0
        %2365 = vmatpush1.msra.mxu0 0.0
        %2366 = vmatprep.subr.mxu0 0.0
        %2367 = vmatpush1.msra.mxu0 0.0
        %2368 = vmatprep.subr.mxu0 0.0
        %2369 = vmatpush1.msra.mxu0 0.0
        %2370 = vmatprep.subr.mxu0 0.0
        %2371 = vmatpush1.msra.mxu0 %v2335
        %2372 = vmatprep.subr.mxu0 0.0
        %2373 = vmatpush2.msra.mxu0 0.0
        %2374 = vmatprep.subr.mxu0 0.0
        %2375 = vmatpush2.msra.mxu0 0.0
        %2376 = vmatprep.subr.mxu0 0.0
        %2377 = vmatpush2.msra.mxu0 0.0
        %2378 = vmatprep.subr.mxu0 0.0
        %2379 = vmatpush2.msra.mxu0 0.0
        %2380 = vmatprep.subr.mxu0 0.0
        %2381 = vmatpush2.msra.mxu0 0.0
        %2382 = vmatprep.subr.mxu0 0.0
        %2383 = vmatpush2.msra.mxu0 0.0
        %2384 = vmatprep.subr.mxu0 0.0
        %2385 = vmatpush2.msra.mxu0 0.0
        %2386 = vmatprep.subr.mxu0 0.0
        %2387 = vmatpush2.msra.mxu0 0.0
        %2388 = vmatprep.subr.mxu0 0.0
        %2389 = vmatpush2.msra.mxu0 0.0
        %2390 = vmatprep.subr.mxu0 0.0
        %2391 = vmatpush2.msra.mxu0 0.0
        %2392 = vmatprep.subr.mxu0 0.0
        %2393 = vmatpush2.msra.mxu0 0.0
        %2394 = vmatprep.subr.mxu0 0.0
        %2395 = vmatpush2.msra.mxu0 0.0
        %2396 = vmatprep.subr.mxu0 0.0
        %2397 = vmatpush2.msra.mxu0 0.0
        %2398 = vmatprep.subr.mxu0 0.0
        %2399 = vmatpush2.msra.mxu0 0.0
        %2400 = vmatprep.subr.mxu0 0.0
        %2401 = vmatpush2.msra.mxu0 0.0
        %2402 = vmatprep.subr.mxu0 0.0
        %2403 = vmatpush2.msra.mxu0 0.0
        %2404 = vmatprep.mubr.f32.mxu0 0.0
        %2405 = vmatmul.mubr.f32.gmra.mxu0 %v2338
        %v2406 = vpop.f32.mrf.mxu0
        %v2407 = vadd.f32 0.0, %v2406
        %v2408 = vpop.f32.mrf.mxu0
        %2409 = vdwg.mxu0
        %v2410 = vpack.c.bf16 %v2407, %v2407
        %s2411 = scalar_lea.vmem %s6, 24
        %v2412 = vld [vmem:[%s2411] sm:$0xf]
        %v2414 = vsel %vm633, %v2410, 0
        %v2417 = vsel %vm969, %v2412, 0
        %2419 = vmatprep.subr.bf16.mxu0 0
        %2420 = vmatpush1.bf16.msra.mxu0 0
        %2421 = vmatprep.subr.bf16.mxu0 0
        %2422 = vmatpush1.bf16.msra.mxu0 0
        %2423 = vmatprep.subr.bf16.mxu0 0
        %2424 = vmatpush1.bf16.msra.mxu0 0
        %2425 = vmatprep.subr.bf16.mxu0 0
        %2426 = vmatpush1.bf16.msra.mxu0 0
        %2427 = vmatprep.subr.bf16.mxu0 0
        %2428 = vmatpush1.bf16.msra.mxu0 0
        %2429 = vmatprep.subr.bf16.mxu0 0
        %2430 = vmatpush1.bf16.msra.mxu0 0
        %2431 = vmatprep.subr.bf16.mxu0 0
        %2432 = vmatpush1.bf16.msra.mxu0 0
        %2433 = vmatprep.subr.bf16.mxu0 0
        %2434 = vmatpush1.bf16.msra.mxu0 %v2417
        %2435 = vmatprep.subr.bf16.mxu0 0
        %2436 = vmatpush2.bf16.msra.mxu0 0
        %2437 = vmatprep.subr.bf16.mxu0 0
        %2438 = vmatpush2.bf16.msra.mxu0 0
        %2439 = vmatprep.subr.bf16.mxu0 0
        %2440 = vmatpush2.bf16.msra.mxu0 0
        %2441 = vmatprep.subr.bf16.mxu0 0
        %2442 = vmatpush2.bf16.msra.mxu0 0
        %2443 = vmatprep.subr.bf16.mxu0 0
        %2444 = vmatpush2.bf16.msra.mxu0 0
        %2445 = vmatprep.subr.bf16.mxu0 0
        %2446 = vmatpush2.bf16.msra.mxu0 0
        %2447 = vmatprep.subr.bf16.mxu0 0
        %2448 = vmatpush2.bf16.msra.mxu0 0
        %2449 = vmatprep.subr.bf16.mxu0 0
        %2450 = vmatpush2.bf16.msra.mxu0 0
        %2451 = vmatprep.mubr.bf16.mxu0 0
        %2452 = vmatmul.mubr.bf16.gmra.mxu0 %v2414
        %v2453 = vpop.f32.mrf.mxu0
        %v2454 = vadd.f32 0.0, %v2453
        %v2455 = vpop.f32.mrf.mxu0
        %v2456 = vpop.f32.mrf.mxu0
        %v2457 = vpop.f32.mrf.mxu0
        %2458 = vdwg.mxu0
        %v2459 = vadd.f32 %v2240, %v2454
        %2460 = vrot.lane.b32.xlu0 %v1816, 104
        %v2461 = vpop.permute.xlu0 %2460
        %2462 = vrot.lane.b32.xlu0 %v1811, 72
        %v2463 = vpop.permute.xlu0 %2462
        %v2464 = vsel %vm633, %v2461, 0
        %v2466 = vsel %vm633, %v2463, 0
        %2468 = vmatprep.subr.mxu0 0.0
        %2469 = vmatpush1.xpose.msra.mxu0 0.0
        %2470 = vmatprep.subr.mxu0 0.0
        %2471 = vmatpush1.xpose.msra.mxu0 0.0
        %2472 = vmatprep.subr.mxu0 0.0
        %2473 = vmatpush1.xpose.msra.mxu0 0.0
        %2474 = vmatprep.subr.mxu0 0.0
        %2475 = vmatpush1.xpose.msra.mxu0 0.0
        %2476 = vmatprep.subr.mxu0 0.0
        %2477 = vmatpush1.xpose.msra.mxu0 0.0
        %2478 = vmatprep.subr.mxu0 0.0
        %2479 = vmatpush1.xpose.msra.mxu0 0.0
        %2480 = vmatprep.subr.mxu0 0.0
        %2481 = vmatpush1.xpose.msra.mxu0 0.0
        %2482 = vmatprep.subr.mxu0 0.0
        %2483 = vmatpush1.xpose.msra.mxu0 0.0
        %2484 = vmatprep.subr.mxu0 0.0
        %2485 = vmatpush1.xpose.msra.mxu0 0.0
        %2486 = vmatprep.subr.mxu0 0.0
        %2487 = vmatpush1.xpose.msra.mxu0 0.0
        %2488 = vmatprep.subr.mxu0 0.0
        %2489 = vmatpush1.xpose.msra.mxu0 0.0
        %2490 = vmatprep.subr.mxu0 0.0
        %2491 = vmatpush1.xpose.msra.mxu0 0.0
        %2492 = vmatprep.subr.mxu0 0.0
        %2493 = vmatpush1.xpose.msra.mxu0 0.0
        %2494 = vmatprep.subr.mxu0 0.0
        %2495 = vmatpush1.xpose.msra.mxu0 0.0
        %2496 = vmatprep.subr.mxu0 0.0
        %2497 = vmatpush1.xpose.msra.mxu0 0.0
        %2498 = vmatprep.subr.mxu0 0.0
        %2499 = vmatpush1.xpose.msra.mxu0 %v2466
        %2500 = vmatprep.subr.mxu0 0.0
        %2501 = vmatpush2.xpose.msra.mxu0 0.0
        %2502 = vmatprep.subr.mxu0 0.0
        %2503 = vmatpush2.xpose.msra.mxu0 0.0
        %2504 = vmatprep.subr.mxu0 0.0
        %2505 = vmatpush2.xpose.msra.mxu0 0.0
        %2506 = vmatprep.subr.mxu0 0.0
        %2507 = vmatpush2.xpose.msra.mxu0 0.0
        %2508 = vmatprep.subr.mxu0 0.0
        %2509 = vmatpush2.xpose.msra.mxu0 0.0
        %2510 = vmatprep.subr.mxu0 0.0
        %2511 = vmatpush2.xpose.msra.mxu0 0.0
        %2512 = vmatprep.subr.mxu0 0.0
        %2513 = vmatpush2.xpose.msra.mxu0 0.0
        %2514 = vmatprep.subr.mxu0 0.0
        %2515 = vmatpush2.xpose.msra.mxu0 0.0
        %2516 = vmatprep.subr.mxu0 0.0
        %2517 = vmatpush2.xpose.msra.mxu0 0.0
        %2518 = vmatprep.subr.mxu0 0.0
        %2519 = vmatpush2.xpose.msra.mxu0 0.0
        %2520 = vmatprep.subr.mxu0 0.0
        %2521 = vmatpush2.xpose.msra.mxu0 0.0
        %2522 = vmatprep.subr.mxu0 0.0
        %2523 = vmatpush2.xpose.msra.mxu0 0.0
        %2524 = vmatprep.subr.mxu0 0.0
        %2525 = vmatpush2.xpose.msra.mxu0 0.0
        %2526 = vmatprep.subr.mxu0 0.0
        %2527 = vmatpush2.xpose.msra.mxu0 0.0
        %2528 = vmatprep.subr.mxu0 0.0
        %2529 = vmatpush2.xpose.msra.mxu0 0.0
        %2530 = vmatprep.subr.mxu0 0.0
        %2531 = vmatpush2.xpose.msra.mxu0 0.0
        %2532 = vmatprep.mubr.f32.mxu0 0.0
        %2533 = vmatmul.mubr.f32.gmra.mxu0 %v2464
        %v2534 = vpop.f32.mrf.mxu0
        %v2535 = vadd.f32 %v530, %v2534
        %v2536 = vpop.f32.mrf.mxu0
        %2537 = vdwg.mxu0
        %v2538 = vsel %vm633, %v2535, -inf
        %2539 = vmax.xlane.f32.xlu0 %v2538
        %v2540 = vpop.xlane.xlu0 %2539
        %v2541 = vsub.f32 %v2535, %v2540
        %v2542 = vmul.f32 %v2541, 1.442695
        %v2543 = vpow.pop %v2542
        %v2544 = vsel %vm633, %v2543, 0.0
        %2545 = vadd.xlane.f32.xlu0 %v2544
        %v2546 = vpop.xlane.xlu0 %2545
        %v2547 = vrcp.pop %v2546
        %v2548 = vmul.f32 %v2543, %v2547
        %2549 = vrot.lane.b32.xlu0 %v1811, 40
        %v2550 = vpop.permute.xlu0 %2549
        %v2553 = vsel %vm633, %v2548, 0
        %2555 = vmatprep.subr.mxu0 0.0
        %2556 = vmatpush1.msra.mxu0 0.0
        %2557 = vmatprep.subr.mxu0 0.0
        %2558 = vmatpush1.msra.mxu0 0.0
        %2559 = vmatprep.subr.mxu0 0.0
        %2560 = vmatpush1.msra.mxu0 0.0
        %2561 = vmatprep.subr.mxu0 0.0
        %2562 = vmatpush1.msra.mxu0 0.0
        %2563 = vmatprep.subr.mxu0 0.0
        %2564 = vmatpush1.msra.mxu0 0.0
        %2565 = vmatprep.subr.mxu0 0.0
        %2566 = vmatpush1.msra.mxu0 0.0
        %2567 = vmatprep.subr.mxu0 0.0
        %2568 = vmatpush1.msra.mxu0 0.0
        %2569 = vmatprep.subr.mxu0 0.0
        %2570 = vmatpush1.msra.mxu0 0.0
        %2571 = vmatprep.subr.mxu0 0.0
        %2572 = vmatpush1.msra.mxu0 0.0
        %2573 = vmatprep.subr.mxu0 0.0
        %2574 = vmatpush1.msra.mxu0 0.0
        %2575 = vmatprep.subr.mxu0 0.0
        %2576 = vmatpush1.msra.mxu0 0.0
        %2577 = vmatprep.subr.mxu0 0.0
        %2578 = vmatpush1.msra.mxu0 0.0
        %2579 = vmatprep.subr.mxu0 0.0
        %2580 = vmatpush1.msra.mxu0 0.0
        %2581 = vmatprep.subr.mxu0 0.0
        %2582 = vmatpush1.msra.mxu0 0.0
        %2583 = vmatprep.subr.mxu0 0.0
        %2584 = vmatpush1.msra.mxu0 0.0
        %2585 = vmatprep.subr.mxu0 0.0
        %2586 = vmatpush1.msra.mxu0 %v2550
        %2587 = vmatprep.subr.mxu0 0.0
        %2588 = vmatpush2.msra.mxu0 0.0
        %2589 = vmatprep.subr.mxu0 0.0
        %2590 = vmatpush2.msra.mxu0 0.0
        %2591 = vmatprep.subr.mxu0 0.0
        %2592 = vmatpush2.msra.mxu0 0.0
        %2593 = vmatprep.subr.mxu0 0.0
        %2594 = vmatpush2.msra.mxu0 0.0
        %2595 = vmatprep.subr.mxu0 0.0
        %2596 = vmatpush2.msra.mxu0 0.0
        %2597 = vmatprep.subr.mxu0 0.0
        %2598 = vmatpush2.msra.mxu0 0.0
        %2599 = vmatprep.subr.mxu0 0.0
        %2600 = vmatpush2.msra.mxu0 0.0
        %2601 = vmatprep.subr.mxu0 0.0
        %2602 = vmatpush2.msra.mxu0 0.0
        %2603 = vmatprep.subr.mxu0 0.0
        %2604 = vmatpush2.msra.mxu0 0.0
        %2605 = vmatprep.subr.mxu0 0.0
        %2606 = vmatpush2.msra.mxu0 0.0
        %2607 = vmatprep.subr.mxu0 0.0
        %2608 = vmatpush2.msra.mxu0 0.0
        %2609 = vmatprep.subr.mxu0 0.0
        %2610 = vmatpush2.msra.mxu0 0.0
        %2611 = vmatprep.subr.mxu0 0.0
        %2612 = vmatpush2.msra.mxu0 0.0
        %2613 = vmatprep.subr.mxu0 0.0
        %2614 = vmatpush2.msra.mxu0 0.0
        %2615 = vmatprep.subr.mxu0 0.0
        %2616 = vmatpush2.msra.mxu0 0.0
        %2617 = vmatprep.subr.mxu0 0.0
        %2618 = vmatpush2.msra.mxu0 0.0
        %2619 = vmatprep.mubr.f32.mxu0 0.0
        %2620 = vmatmul.mubr.f32.gmra.mxu0 %v2553
        %v2621 = vpop.f32.mrf.mxu0
        %v2622 = vadd.f32 0.0, %v2621
        %v2623 = vpop.f32.mrf.mxu0
        %2624 = vdwg.mxu0
        %v2625 = vpack.c.bf16 %v2622, %v2622
        %s2626 = scalar_lea.vmem %s6, 28
        %v2627 = vld [vmem:[%s2626] sm:$0xf]
        %v2629 = vsel %vm633, %v2625, 0
        %v2632 = vsel %vm969, %v2627, 0
        %2634 = vmatprep.subr.bf16.mxu0 0
        %2635 = vmatpush1.bf16.msra.mxu0 0
        %2636 = vmatprep.subr.bf16.mxu0 0
        %2637 = vmatpush1.bf16.msra.mxu0 0
        %2638 = vmatprep.subr.bf16.mxu0 0
        %2639 = vmatpush1.bf16.msra.mxu0 0
        %2640 = vmatprep.subr.bf16.mxu0 0
        %2641 = vmatpush1.bf16.msra.mxu0 0
        %2642 = vmatprep.subr.bf16.mxu0 0
        %2643 = vmatpush1.bf16.msra.mxu0 0
        %2644 = vmatprep.subr.bf16.mxu0 0
        %2645 = vmatpush1.bf16.msra.mxu0 0
        %2646 = vmatprep.subr.bf16.mxu0 0
        %2647 = vmatpush1.bf16.msra.mxu0 0
        %2648 = vmatprep.subr.bf16.mxu0 0
        %2649 = vmatpush1.bf16.msra.mxu0 %v2632
        %2650 = vmatprep.subr.bf16.mxu0 0
        %2651 = vmatpush2.bf16.msra.mxu0 0
        %2652 = vmatprep.subr.bf16.mxu0 0
        %2653 = vmatpush2.bf16.msra.mxu0 0
        %2654 = vmatprep.subr.bf16.mxu0 0
        %2655 = vmatpush2.bf16.msra.mxu0 0
        %2656 = vmatprep.subr.bf16.mxu0 0
        %2657 = vmatpush2.bf16.msra.mxu0 0
        %2658 = vmatprep.subr.bf16.mxu0 0
        %2659 = vmatpush2.bf16.msra.mxu0 0
        %2660 = vmatprep.subr.bf16.mxu0 0
        %2661 = vmatpush2.bf16.msra.mxu0 0
        %2662 = vmatprep.subr.bf16.mxu0 0
        %2663 = vmatpush2.bf16.msra.mxu0 0
        %2664 = vmatprep.subr.bf16.mxu0 0
        %2665 = vmatpush2.bf16.msra.mxu0 0
        %2666 = vmatprep.mubr.bf16.mxu0 0
        %2667 = vmatmul.mubr.bf16.gmra.mxu0 %v2629
        %v2668 = vpop.f32.mrf.mxu0
        %v2669 = vadd.f32 0.0, %v2668
        %v2670 = vpop.f32.mrf.mxu0
        %v2671 = vpop.f32.mrf.mxu0
        %v2672 = vpop.f32.mrf.mxu0
        %2673 = vdwg.mxu0
        %v2674 = vadd.f32 %v2459, %v2669
        %v2675 = vadd.f32 %v1715, %v2674
        %s2676 = scalar_lea.vmem %s7, 1
        %v2677 = vld [vmem:[%s2676] sm:$0x1]
        %v2679 = vlaneseq
        %v2680 = vshrl.u32 %v2679, 7
        %v2681 = vsub.s32 0, %v2680
        %v2682 = vrot.slane %v2677, %v2681
        %v2684 = vadd.f32 %v2675, %v2682
        %s2685 = scalar_lea.vmem %s8, 1
        %v2686 = vld [vmem:[%s2685] sm:$0x1]
        %s2687 = scalar_lea.vmem %s9, 1
        %v2688 = vld [vmem:[%s2687] sm:$0x1]
        %v2689 = vsel %vm533, %v2684, 0.0
        %2690 = vadd.xlane.f32.xlu0 %v2689
        %v2691 = vpop.xlane.xlu0 %2690
        %v2692 = vmul.f32 %v2691, %v537
        %v2693 = vsub.f32 %v2684, %v2692
        %v2694 = vmul.f32 %v2693, %v2693
        %v2695 = vsel %vm533, %v2694, 0.0
        %2696 = vadd.xlane.f32.xlu0 %v2695
        %v2697 = vpop.xlane.xlu0 %2696
        %v2698 = vmul.f32 %v2697, %v537
        %v2699 = vadd.f32 %v2698, 1e-05
        %v2700 = vrsqrt.pop %v2699
        %v2701 = vmul.f32 %v2693, %v2700
        %v2703 = vlaneseq
        %v2704 = vshrl.u32 %v2703, 7
        %v2705 = vsub.s32 0, %v2704
        %v2706 = vrot.slane %v2686, %v2705
        %v2708 = vmul.f32 %v2701, %v2706
        %v2710 = vlaneseq
        %v2711 = vshrl.u32 %v2710, 7
        %v2712 = vsub.s32 0, %v2711
        %v2713 = vrot.slane %v2688, %v2712
        %v2715 = vadd.f32 %v2708, %v2713
        %v2716 = vpack.c.bf16 %v2715, %v2715
        %s2717 = scalar_lea.vmem %s10, 16
        %v2718 = vld [vmem:[%s2717] sm:$0xf]
        %v2719 = vld [vmem:[%s2717 + $0x4] sm:$0xf]
        %v2720 = vld [vmem:[%s2717 + $0x8] sm:$0xf]
        %v2721 = vld [vmem:[%s2717 + $0xc] sm:$0xf]
        %s2722 = scalar_lea.vmem %s11, 1
        %v2723 = vld [vmem:[%s2722] sm:$0x1]
        %v2725 = vlaneseq
        %v2726 = vshrl.u32 %v2725, 7
        %v2727 = vsub.s32 0, %v2726
        %v2728 = vrot.slane %v2723, %v2727
        %v2734 = vunpack.c.l.b16 %v2718
        %v2735 = vunpack.c.l.b16 %v2719
        %v2736 = vunpack.c.l.b16 %v2720
        %v2737 = vunpack.c.l.b16 %v2721
        %v2738 = vpack.c.b16 %v2735, %v2734
        %v2739 = vpack.c.b16 %v2737, %v2736
        %v2743 = vsel %vm533, %v2716, 0
        %2745 = vmatprep.subr.bf16.mxu0 0
        %2746 = vmatpush1.bf16.msra.mxu0 0
        %2747 = vmatprep.subr.bf16.mxu0 0
        %2748 = vmatpush1.bf16.msra.mxu0 0
        %2749 = vmatprep.subr.bf16.mxu0 0
        %2750 = vmatpush1.bf16.msra.mxu0 0
        %2751 = vmatprep.subr.bf16.mxu0 0
        %2752 = vmatpush1.bf16.msra.mxu0 0
        %2753 = vmatprep.subr.bf16.mxu0 0
        %2754 = vmatpush1.bf16.msra.mxu0 0
        %2755 = vmatprep.subr.bf16.mxu0 0
        %2756 = vmatpush1.bf16.msra.mxu0 0
        %2757 = vmatprep.subr.bf16.mxu0 0
        %2758 = vmatpush1.bf16.msra.mxu0 %v2739
        %2759 = vmatprep.subr.bf16.mxu0 0
        %2760 = vmatpush1.bf16.msra.mxu0 %v2738
        %2761 = vmatprep.subr.bf16.mxu0 0
        %2762 = vmatpush2.bf16.msra.mxu0 0
        %2763 = vmatprep.subr.bf16.mxu0 0
        %2764 = vmatpush2.bf16.msra.mxu0 0
        %2765 = vmatprep.subr.bf16.mxu0 0
        %2766 = vmatpush2.bf16.msra.mxu0 0
        %2767 = vmatprep.subr.bf16.mxu0 0
        %2768 = vmatpush2.bf16.msra.mxu0 0
        %2769 = vmatprep.subr.bf16.mxu0 0
        %2770 = vmatpush2.bf16.msra.mxu0 0
        %2771 = vmatprep.subr.bf16.mxu0 0
        %2772 = vmatpush2.bf16.msra.mxu0 0
        %2773 = vmatprep.subr.bf16.mxu0 0
        %2774 = vmatpush2.bf16.msra.mxu0 0
        %2775 = vmatprep.subr.bf16.mxu0 0
        %2776 = vmatpush2.bf16.msra.mxu0 0
        %2777 = vmatprep.mubr.bf16.mxu0 0
        %2778 = vmatmul.mubr.bf16.gmra.mxu0 %v2743
        %v2779 = vpop.f32.mrf.mxu0
        %v2780 = vadd.f32 %v2728, %v2779
        %v2781 = vpop.f32.mrf.mxu0
        %v2782 = vpop.f32.mrf.mxu0
        %v2783 = vpop.f32.mrf.mxu0
        %2784 = vdwg.mxu0
        %v2785 = vmul.f32 %v2780, 1.702
        %v2786 = vxor.u32 %v2785, 2147483648
        %v2787 = vmul.f32 %v2786, 1.442695
        %v2788 = vpow.pop %v2787
        %v2789 = vadd.f32 %v2788, 1.0
        %v2790 = vrcp.pop %v2789
        %v2791 = vmul.f32 1.0, %v2790
        %v2792 = vmul.f32 %v2780, %v2791
        %v2793 = vpack.c.bf16 %v2792, %v2792
        %s2794 = scalar_lea.vmem %s12, 64
        %v2795 = vld [vmem:[%s2794] sm:$0xf]
        %v2796 = vld [vmem:[%s2794 + $0x4] sm:$0xf]
        %v2797 = vld [vmem:[%s2794 + $0x8] sm:$0xf]
        %v2798 = vld [vmem:[%s2794 + $0xc] sm:$0xf]
        %v2799 = vld [vmem:[%s2794 + $0x10] sm:$0xf]
        %v2800 = vld [vmem:[%s2794 + $0x14] sm:$0xf]
        %v2801 = vld [vmem:[%s2794 + $0x18] sm:$0xf]
        %v2802 = vld [vmem:[%s2794 + $0x1c] sm:$0xf]
        %v2803 = vld [vmem:[%s2794 + $0x20] sm:$0xf]
        %v2804 = vld [vmem:[%s2794 + $0x24] sm:$0xf]
        %v2805 = vld [vmem:[%s2794 + $0x28] sm:$0xf]
        %v2806 = vld [vmem:[%s2794 + $0x2c] sm:$0xf]
        %v2807 = vld [vmem:[%s2794 + $0x30] sm:$0xf]
        %v2808 = vld [vmem:[%s2794 + $0x34] sm:$0xf]
        %v2809 = vld [vmem:[%s2794 + $0x38] sm:$0xf]
        %v2810 = vld [vmem:[%s2794 + $0x3c] sm:$0xf]
        %v2827 = vunpack.c.l.b16 %v2795
        %v2828 = vunpack.c.l.b16 %v2796
        %v2829 = vunpack.c.l.b16 %v2797
        %v2830 = vunpack.c.l.b16 %v2798
        %v2831 = vunpack.c.l.b16 %v2799
        %v2832 = vunpack.c.l.b16 %v2800
        %v2833 = vunpack.c.l.b16 %v2801
        %v2834 = vunpack.c.l.b16 %v2802
        %v2835 = vunpack.c.l.b16 %v2803
        %v2836 = vunpack.c.l.b16 %v2804
        %v2837 = vunpack.c.l.b16 %v2805
        %v2838 = vunpack.c.l.b16 %v2806
        %v2839 = vunpack.c.l.b16 %v2807
        %v2840 = vunpack.c.l.b16 %v2808
        %v2841 = vunpack.c.l.b16 %v2809
        %v2842 = vunpack.c.l.b16 %v2810
        %v2843 = vpack.c.b16 %v2828, %v2827
        %v2844 = vpack.c.b16 %v2830, %v2829
        %v2845 = vpack.c.b16 %v2832, %v2831
        %v2846 = vpack.c.b16 %v2834, %v2833
        %v2847 = vpack.c.b16 %v2836, %v2835
        %v2848 = vpack.c.b16 %v2838, %v2837
        %v2849 = vpack.c.b16 %v2840, %v2839
        %v2850 = vpack.c.b16 %v2842, %v2841
        %2859 = vmatprep.subr.bf16.mxu0 0
        %2860 = vmatpush1.bf16.msra.mxu0 %v2850
        %2861 = vmatprep.subr.bf16.mxu0 0
        %2862 = vmatpush1.bf16.msra.mxu0 %v2849
        %2863 = vmatprep.subr.bf16.mxu0 0
        %2864 = vmatpush1.bf16.msra.mxu0 %v2848
        %2865 = vmatprep.subr.bf16.mxu0 0
        %2866 = vmatpush1.bf16.msra.mxu0 %v2847
        %2867 = vmatprep.subr.bf16.mxu0 0
        %2868 = vmatpush1.bf16.msra.mxu0 %v2846
        %2869 = vmatprep.subr.bf16.mxu0 0
        %2870 = vmatpush1.bf16.msra.mxu0 %v2845
        %2871 = vmatprep.subr.bf16.mxu0 0
        %2872 = vmatpush1.bf16.msra.mxu0 %v2844
        %2873 = vmatprep.subr.bf16.mxu0 0
        %2874 = vmatpush1.bf16.msra.mxu0 %v2843
        %2875 = vmatprep.subr.bf16.mxu0 0
        %2876 = vmatpush2.bf16.msra.mxu0 0
        %2877 = vmatprep.subr.bf16.mxu0 0
        %2878 = vmatpush2.bf16.msra.mxu0 0
        %2879 = vmatprep.subr.bf16.mxu0 0
        %2880 = vmatpush2.bf16.msra.mxu0 0
        %2881 = vmatprep.subr.bf16.mxu0 0
        %2882 = vmatpush2.bf16.msra.mxu0 0
        %2883 = vmatprep.subr.bf16.mxu0 0
        %2884 = vmatpush2.bf16.msra.mxu0 0
        %2885 = vmatprep.subr.bf16.mxu0 0
        %2886 = vmatpush2.bf16.msra.mxu0 0
        %2887 = vmatprep.subr.bf16.mxu0 0
        %2888 = vmatpush2.bf16.msra.mxu0 0
        %2889 = vmatprep.subr.bf16.mxu0 0
        %2890 = vmatpush2.bf16.msra.mxu0 0
        %2891 = vmatprep.mubr.bf16.mxu0 0
        %2892 = vmatmul.mubr.bf16.gmra.mxu0 %v2793
        %v2893 = vpop.f32.mrf.mxu0
        %v2894 = vadd.f32 0.0, %v2893
        %v2895 = vpop.f32.mrf.mxu0
        %v2896 = vpop.f32.mrf.mxu0
        %v2897 = vpop.f32.mrf.mxu0
        %2898 = vdwg.mxu0
        %v2899 = vadd.f32 %v2684, %v2894
        %s2900 = scalar_lea.vmem %s13, 1
        %v2901 = vld [vmem:[%s2900] sm:$0x1]
        %v2903 = vlaneseq
        %v2904 = vshrl.u32 %v2903, 7
        %v2905 = vsub.s32 0, %v2904
        %v2906 = vrot.slane %v2901, %v2905
        %v2908 = vadd.f32 %v2899, %v2906
        %s2909 = sld [smem:[#allocation3 + %s37]]
        %v2910 = vstv %s2909
        %vm2911 = vcmp.eq.s32.totalorder %v528, %v2910
        %v2912 = vsel %vm2911, 1, 0
        %v2913 = vcvt.s32.f32 %v2912
        %v2915 = vsel %vm633, %v2913, 0
        %2917 = vmatprep.subr.mxu0 0.0
        %2918 = vmatpush1.msra.mxu0 0.0
        %2919 = vmatprep.subr.mxu0 0.0
        %2920 = vmatpush1.msra.mxu0 0.0
        %2921 = vmatprep.subr.mxu0 0.0
        %2922 = vmatpush1.msra.mxu0 0.0
        %2923 = vmatprep.subr.mxu0 0.0
        %2924 = vmatpush1.msra.mxu0 0.0
        %2925 = vmatprep.subr.mxu0 0.0
        %2926 = vmatpush1.msra.mxu0 0.0
        %2927 = vmatprep.subr.mxu0 0.0
        %2928 = vmatpush1.msra.mxu0 0.0
        %2929 = vmatprep.subr.mxu0 0.0
        %2930 = vmatpush1.msra.mxu0 0.0
        %2931 = vmatprep.subr.mxu0 0.0
        %2932 = vmatpush1.msra.mxu0 0.0
        %2933 = vmatprep.subr.mxu0 0.0
        %2934 = vmatpush1.msra.mxu0 0.0
        %2935 = vmatprep.subr.mxu0 0.0
        %2936 = vmatpush1.msra.mxu0 0.0
        %2937 = vmatprep.subr.mxu0 0.0
        %2938 = vmatpush1.msra.mxu0 0.0
        %2939 = vmatprep.subr.mxu0 0.0
        %2940 = vmatpush1.msra.mxu0 0.0
        %2941 = vmatprep.subr.mxu0 0.0
        %2942 = vmatpush1.msra.mxu0 0.0
        %2943 = vmatprep.subr.mxu0 0.0
        %2944 = vmatpush1.msra.mxu0 0.0
        %2945 = vmatprep.subr.mxu0 0.0
        %2946 = vmatpush1.msra.mxu0 0.0
        %2947 = vmatprep.subr.mxu0 0.0
        %2948 = vmatpush1.msra.mxu0 %v2908
        %2949 = vmatprep.subr.mxu0 0.0
        %2950 = vmatpush2.msra.mxu0 0.0
        %2951 = vmatprep.subr.mxu0 0.0
        %2952 = vmatpush2.msra.mxu0 0.0
        %2953 = vmatprep.subr.mxu0 0.0
        %2954 = vmatpush2.msra.mxu0 0.0
        %2955 = vmatprep.subr.mxu0 0.0
        %2956 = vmatpush2.msra.mxu0 0.0
        %2957 = vmatprep.subr.mxu0 0.0
        %2958 = vmatpush2.msra.mxu0 0.0
        %2959 = vmatprep.subr.mxu0 0.0
        %2960 = vmatpush2.msra.mxu0 0.0
        %2961 = vmatprep.subr.mxu0 0.0
        %2962 = vmatpush2.msra.mxu0 0.0
        %2963 = vmatprep.subr.mxu0 0.0
        %2964 = vmatpush2.msra.mxu0 0.0
        %2965 = vmatprep.subr.mxu0 0.0
        %2966 = vmatpush2.msra.mxu0 0.0
        %2967 = vmatprep.subr.mxu0 0.0
        %2968 = vmatpush2.msra.mxu0 0.0
        %2969 = vmatprep.subr.mxu0 0.0
        %2970 = vmatpush2.msra.mxu0 0.0
        %2971 = vmatprep.subr.mxu0 0.0
        %2972 = vmatpush2.msra.mxu0 0.0
        %2973 = vmatprep.subr.mxu0 0.0
        %2974 = vmatpush2.msra.mxu0 0.0
        %2975 = vmatprep.subr.mxu0 0.0
        %2976 = vmatpush2.msra.mxu0 0.0
        %2977 = vmatprep.subr.mxu0 0.0
        %2978 = vmatpush2.msra.mxu0 0.0
        %2979 = vmatprep.subr.mxu0 0.0
        %2980 = vmatpush2.msra.mxu0 0.0
        %2981 = vmatprep.mubr.f32.mxu0 0.0
        %2982 = vmatmul.mubr.f32.gmra.mxu0 %v2915
        %v2983 = vpop.f32.mrf.mxu0
        %v2984 = vadd.f32 0.0, %v2983
        %v2985 = vpop.f32.mrf.mxu0
        %2986 = vdwg.mxu0
        %v2987 = vld [vmem:[%s14] sm:$0x1]
        %v2988 = vld [vmem:[%s15] sm:$0x1]
        %vm2989 = vcmask 253952
        %v2990 = vsel %vm2989, %v2984, 0.0
        %2991 = vadd.xlane.f32.xlu0 %v2990
        %v2992 = vpop.xlane.xlu0 %2991
        %v2993 = vmul.f32 %v2992, %v537
        %v2994 = vsub.f32 %v2984, %v2993
        %v2995 = vmul.f32 %v2994, %v2994
        %v2996 = vsel %vm2989, %v2995, 0.0
        %2997 = vadd.xlane.f32.xlu0 %v2996
        %v2998 = vpop.xlane.xlu0 %2997
        %v2999 = vmul.f32 %v2998, %v537
        %v3000 = vadd.f32 %v2999, 1e-05
        %v3001 = vrsqrt.pop %v3000
        %v3002 = vmul.f32 %v2994, %v3001
        %v3003 = vmul.f32 %v3002, %v2987
        %v3004 = vadd.f32 %v3003, %v2988
        %v3005 = vpack.c.bf16 %v3004, %v3004
        %v3006 = vld [vmem:[%s16] sm:$0xf]
        %v3007 = vld [vmem:[%s16 + $0x4] sm:$0xf]
        %v3008 = vld [vmem:[%s16 + $0x8] sm:$0xf]
        %v3009 = vld [vmem:[%s16 + $0xc] sm:$0xf]
        %v3014 = vunpack.c.l.b16 %v3006
        %v3015 = vunpack.c.l.b16 %v3007
        %v3016 = vunpack.c.l.b16 %v3008
        %v3017 = vunpack.c.l.b16 %v3009
        %v3018 = vpack.c.b16 %v3015, %v3014
        %v3019 = vpack.c.b16 %v3017, %v3016
        %v3023 = vsel %vm533, %v3005, 0
        %3025 = vmatprep.subr.bf16.mxu0 0
        %3026 = vmatpush1.bf16.msra.mxu0 0
        %3027 = vmatprep.subr.bf16.mxu0 0
        %3028 = vmatpush1.bf16.msra.mxu0 0
        %3029 = vmatprep.subr.bf16.mxu0 0
        %3030 = vmatpush1.bf16.msra.mxu0 0
        %3031 = vmatprep.subr.bf16.mxu0 0
        %3032 = vmatpush1.bf16.msra.mxu0 0
        %3033 = vmatprep.subr.bf16.mxu0 0
        %3034 = vmatpush1.bf16.msra.mxu0 0
        %3035 = vmatprep.subr.bf16.mxu0 0
        %3036 = vmatpush1.bf16.msra.mxu0 0
        %3037 = vmatprep.subr.bf16.mxu0 0
        %3038 = vmatpush1.bf16.msra.mxu0 %v3019
        %3039 = vmatprep.subr.bf16.mxu0 0
        %3040 = vmatpush1.bf16.msra.mxu0 %v3018
        %3041 = vmatprep.subr.bf16.mxu0 0
        %3042 = vmatpush2.bf16.msra.mxu0 0
        %3043 = vmatprep.subr.bf16.mxu0 0
        %3044 = vmatpush2.bf16.msra.mxu0 0
        %3045 = vmatprep.subr.bf16.mxu0 0
        %3046 = vmatpush2.bf16.msra.mxu0 0
        %3047 = vmatprep.subr.bf16.mxu0 0
        %3048 = vmatpush2.bf16.msra.mxu0 0
        %3049 = vmatprep.subr.bf16.mxu0 0
        %3050 = vmatpush2.bf16.msra.mxu0 0
        %3051 = vmatprep.subr.bf16.mxu0 0
        %3052 = vmatpush2.bf16.msra.mxu0 0
        %3053 = vmatprep.subr.bf16.mxu0 0
        %3054 = vmatpush2.bf16.msra.mxu0 0
        %3055 = vmatprep.subr.bf16.mxu0 0
        %3056 = vmatpush2.bf16.msra.mxu0 0
        %3057 = vmatprep.mubr.bf16.mxu0 0
        %3058 = vmatmul.mubr.bf16.gmra.mxu0 %v3023
        %v3059 = vpop.f32.mrf.mxu0
        %v3060 = vadd.f32 0.0, %v3059
        %v3061 = vpop.f32.mrf.mxu0
        %v3062 = vpop.f32.mrf.mxu0
        %v3063 = vpop.f32.mrf.mxu0
        %3064 = vdwg.mxu0
        %vm3065 = vcmask 122880
        %3066 = vst.msk [vmem:[%s518] sm:$0x1] %vm3065, %v3060
        %s3067 = sand.u32 %s386, 1
        %s3068 = scalar_lea.sflag [#allocation5], %s3067
        %s3069 = sand.u32 %s386, 1
        %s3070 = scalar_lea.vmem [#allocation4], %s3069
        // Predicated region
        $region85: #{encode_text.1} parent=83 // pred_check
          %p3071 = pneg %p396
        $region86: #{encode_text.1} parent=83 // pred_check_branch
          %3073 = sbr.rel (%p3071) target = $region88
        $region87: #{encode_text.1} parent=83 // pred_region
          %s3075 = ssub.s32 16, 16
          %3076 = vsyncadd %s3068, %s3075
          %s3077 = smul.addr %s37, 16
          %s3078 = scalar_lea.hbm %s17, %s3077
          %s3080 = sshll.u32 %s3070, 4
          %s3081 = int_to_ptr.vmem [resolvable:$true] %s3080
          %3083 = dma.vmem_to_hbm [thread:$0]  %s3081, 16, %s3078, %s3068
        $region88: #{encode_text.1} parent=83 // pred_fallthru
          _
      $region84: #{encode_text.1} parent=5 // pred_fallthru
        _
      %p3084 = scmp.le.s32.totalorder 2, %s32
      // Predicated region
      $region89: #{encode_text.1} parent=5 // pred_check
        %p3085 = pneg %p3084
      $region90: #{encode_text.1} parent=5 // pred_check_branch
        %3087 = sbr.rel (%p3085) target = $region92
      $region91: #{encode_text.1} parent=5 // pred_region
        %s3088 = ssub.s32 %s32, 2
        // Predicated region
        $region93: #{encode_text.1} parent=91 // pred_check
          %p3089 = pneg %p402
        $region94: #{encode_text.1} parent=91 // pred_check_branch
          %3091 = sbr.rel (%p3089) target = $region96
        $region95: #{encode_text.1} parent=91 // pred_region
          %s3092 = sand.u32 %s387, 1
          %s3093 = scalar_lea.sflag [#allocation5], %s3092
          %s3094 = sand.u32 %s387, 1
          %s3095 = scalar_lea.vmem [#allocation4], %s3094
          %3096 = dma.done %s3093, 16
        $region96: #{encode_text.1} parent=91 // pred_fallthru
          _
      $region92: #{encode_text.1} parent=5 // pred_fallthru
        _
    $region6: #{encode_text.1} parent=1 // loop_footer
      %s36 = sadd.s32 1, %s32
    $region7: #{encode_text.1} parent=1 // loop_footer_branch
      %31 = sbr.rel target = $region3
    $region8: #{encode_text.1} parent=1 // loop_exit
      _
    %3097 = vsyncpa [#allocation5], 1
    %s3098 = scalar_lea.sflag [#allocation5], 1
    %3099 = vsyncpa %s3098, 1

</llo_original>
